<compile_context>
chip_gen: v7x
topology: tpu7x:2x2x1
jax: 0.10.0
libtpu: 0.0.40
codegen_flags: <defaults>
</compile_context>

<pallas_src>
import functools

import jax
import jax.numpy as jnp
from jax.experimental import pallas as pl
from jax.experimental.pallas import tpu as pltpu


# ----------------------------------------------------------------------------
# Pallas kernels
# ----------------------------------------------------------------------------
def _relu_conv_bn_kernel(x_ref, w_ref, g_ref, b_ref, mask_ref, o_ref, *, taps, inv_count):
    """Fused ReLU -> (2x2-tap superpixel) Conv -> BatchNorm (training mode).

    x_ref:    (Min, Cs)  f32, zero-padded + space-to-depth'd input, flattened rows.
    w_ref:    (T, Cs, Cout) bf16, per-tap weight matrices.
    g_ref/b_ref: (1, Cout) f32 BN affine params.
    mask_ref: (M, 1) f32, 1.0 on rows that correspond to valid output pixels.
    o_ref:    (M, Cout) f32 (invalid rows contain don't-care values, sliced away outside).
    """
    m = o_ref.shape[0]
    x = x_ref[...]
    xr = jnp.maximum(x, 0.0)                       # ReLU before the conv (ReLUConvBN)
    acc = jnp.zeros(o_ref.shape, jnp.float32)
    for t, off in enumerate(taps):                 # static unroll over taps
        a = xr[off:off + m, :].astype(jnp.bfloat16)
        acc = acc + jnp.dot(a, w_ref[t], preferred_element_type=jnp.float32)

    # Training-mode BatchNorm over valid rows only (mask excludes padded/garbage rows).
    mask = mask_ref[...]
    mean = jnp.sum(acc * mask, axis=0, keepdims=True) * inv_count
    d = (acc - mean) * mask
    var = jnp.sum(d * d, axis=0, keepdims=True) * inv_count
    o_ref[...] = (acc - mean) * jax.lax.rsqrt(var + 1e-5) * g_ref[...] + b_ref[...]


def _residual_kernel(x_ref, w3_ref, w1_ref, o_ref, *, taps, center):
    """Fused ResidualLayer: out = x + Conv1x1(ReLU(Conv3x3(ReLU(x)))).

    x_ref:  (Min, C) f32, zero-padded input, flattened rows (pre-ReLU).
    w3_ref: (9, C, Ch) bf16 per-tap 3x3 weights;  w1_ref: (Ch, Cout) bf16.
    o_ref:  (M, Cout) f32.
    """
    m = o_ref.shape[0]
    x = x_ref[...]
    xr = jnp.maximum(x, 0.0)
    h = jnp.zeros((m, w3_ref.shape[-1]), jnp.float32)
    for t, off in enumerate(taps):                 # static unroll over 3x3 taps
        a = xr[off:off + m, :].astype(jnp.bfloat16)
        h = h + jnp.dot(a, w3_ref[t], preferred_element_type=jnp.float32)
    hr = jnp.maximum(h, 0.0).astype(jnp.bfloat16)
    res = x[center:center + m, :]                  # skip connection (pre-ReLU input)
    o_ref[...] = res + jnp.dot(hr, w1_ref[...], preferred_element_type=jnp.float32)


# ----------------------------------------------------------------------------
# Wrapper-side layout plumbing (pure reshapes/transposes, no data inflation)
# ----------------------------------------------------------------------------
def _space_to_depth2(x):
    n, h, w, c = x.shape
    x = x.reshape(n, h // 2, 2, w // 2, 2, c)
    x = jnp.transpose(x, (0, 1, 3, 2, 4, 5))
    return x.reshape(n, h // 2, w // 2, 4 * c)


def _fold_conv_s2_weight(w_hwio):
    """(4,4,Cin,Cout) HWIO -> (4 taps, 4*Cin, Cout) matching space-to-depth channel order."""
    _, _, ci, co = w_hwio.shape
    w = w_hwio.reshape(2, 2, 2, 2, ci, co)          # [di, a, dj, b, ci, co]
    w = jnp.transpose(w, (0, 2, 1, 3, 4, 5))        # [di, dj, a, b, ci, co]
    return w.reshape(4, 4 * ci, co)


def relu_conv_bn(x, w_hwio, gamma, beta):
    """y = BatchNorm2d(Conv2d(ReLU(x), k=4, s=2, p=1, bias=False)).  x: NHWC."""
    n, _, _, _ = x.shape
    cout = w_hwio.shape[-1]
    xp = jnp.pad(x, ((0, 0), (1, 1), (1, 1), (0, 0)))   # relu(pad(x)) == pad(relu(x))
    xs = _space_to_depth2(xp)                           # (n, hs, ws, 4*cin)
    _, hs, ws, cs = xs.shape
    ho, wo = hs - 1, ws - 1
    xg = xs.reshape(n * hs * ws, cs)
    m = n * hs * ws - (ws + 1)
    taps = tuple(di * ws + dj for di in range(2) for dj in range(2))
    wfold = _fold_conv_s2_weight(w_hwio).astype(jnp.bfloat16)

    # Row-validity mask (excludes the last superpixel row/col of each image).
    p = jnp.arange(m, dtype=jnp.int32) % (hs * ws)
    valid = ((p % ws) != (ws - 1)) & ((p // ws) != (hs - 1))
    mask = valid.astype(jnp.float32)[:, None]

    kernel = functools.partial(_relu_conv_bn_kernel, taps=taps,
                               inv_count=1.0 / float(n * ho * wo))
    out = pl.pallas_call(
        kernel,
        out_shape=jax.ShapeDtypeStruct((m, cout), jnp.float32),
        grid=(1,),
        in_specs=[
            pl.BlockSpec((n * hs * ws, cs), lambda i: (0, 0)),
            pl.BlockSpec((4, cs, cout), lambda i: (0, 0, 0)),
            pl.BlockSpec((1, cout), lambda i: (0, 0)),
            pl.BlockSpec((1, cout), lambda i: (0, 0)),
            pl.BlockSpec((m, 1), lambda i: (0, 0)),
        ],
        out_specs=pl.BlockSpec((m, cout), lambda i: (0, 0)),
        compiler_params=pltpu.CompilerParams(dimension_semantics=("arbitrary",)),
    )(xg, wfold, gamma.reshape(1, cout), beta.reshape(1, cout), mask)

    out = jnp.pad(out, ((0, ws + 1), (0, 0)))
    return out.reshape(n, hs, ws, cout)[:, :ho, :wo, :]


def residual_layer(x, w3_hwio, w1_hwio):
    """y = x + Conv1x1(ReLU(Conv3x3(ReLU(x), p=1)), bias=False).  x: NHWC."""
    n, h, w, c = x.shape
    xp = jnp.pad(x, ((0, 0), (1, 1), (1, 1), (0, 0)))
    hp, wp = h + 2, w + 2
    xg = xp.reshape(n * hp * wp, c)
    m = n * hp * wp - 2 * (wp + 1)
    taps = tuple(di * wp + dj for di in range(3) for dj in range(3))
    ch = w3_hwio.shape[-1]
    co = w1_hwio.shape[-1]
    w3 = w3_hwio.reshape(9, c, ch).astype(jnp.bfloat16)
    w1 = w1_hwio.reshape(ch, co).astype(jnp.bfloat16)

    kernel = functools.partial(_residual_kernel, taps=taps, center=wp + 1)
    out = pl.pallas_call(
        kernel,
        out_shape=jax.ShapeDtypeStruct((m, co), jnp.float32),
        grid=(1,),
        in_specs=[
            pl.BlockSpec((n * hp * wp, c), lambda i: (0, 0)),
            pl.BlockSpec((9, c, ch), lambda i: (0, 0, 0)),
            pl.BlockSpec((ch, co), lambda i: (0, 0)),
        ],
        out_specs=pl.BlockSpec((m, co), lambda i: (0, 0)),
        compiler_params=pltpu.CompilerParams(dimension_semantics=("arbitrary",)),
    )(xg, w3, w1)

    out = jnp.pad(out, ((wp + 1, wp + 1), (0, 0)))
    return out.reshape(n, hp, wp, co)[:, 1:-1, 1:-1, :]


# ----------------------------------------------------------------------------
# Encoder forward
# ----------------------------------------------------------------------------
def encoder_forward(x_nchw, params):
    x = jnp.transpose(x_nchw, (0, 2, 3, 1))  # NCHW -> NHWC (channels on the lane axis)
    x = relu_conv_bn(x, params["w1"], params["g1"], params["b1"])
    x = relu_conv_bn(x, params["w2"], params["g2"], params["b2"])
    x = residual_layer(x, params["w3a"], params["w3b"])
    x = residual_layer(x, params["w4a"], params["w4b"])
    return jnp.transpose(x, (0, 3, 1, 2))    # NHWC -> NCHW


def init_params(key, dim):
    # Conv weights stored HWIO; equivalent to PyTorch OIHW via permute(2, 3, 1, 0).
    keys = jax.random.split(key, 10)
    half = dim // 2
    return {
        "w1": 0.1 * jax.random.normal(keys[0], (4, 4, 3, half), jnp.float32),
        "g1": 1.0 + 0.1 * jax.random.normal(keys[1], (half,), jnp.float32),
        "b1": 0.1 * jax.random.normal(keys[2], (half,), jnp.float32),
        "w2": 0.1 * jax.random.normal(keys[3], (4, 4, half, dim), jnp.float32),
        "g2": 1.0 + 0.1 * jax.random.normal(keys[4], (dim,), jnp.float32),
        "b2": 0.1 * jax.random.normal(keys[5], (dim,), jnp.float32),
        "w3a": 0.1 * jax.random.normal(keys[6], (3, 3, dim, dim), jnp.float32),
        "w3b": 0.1 * jax.random.normal(keys[7], (1, 1, dim, dim), jnp.float32),
        "w4a": 0.1 * jax.random.normal(keys[8], (3, 3, dim, dim), jnp.float32),
        "w4b": 0.1 * jax.random.normal(keys[9], (1, 1, dim, dim), jnp.float32),
    }


if __name__ == "__main__":
    dim = 128                     # module default; residual layers are 128-lane dense
    key = jax.random.PRNGKey(0)
    k_x, k_p = jax.random.split(key)
    x = jax.random.normal(k_x, (2, 3, 16, 16), jnp.float32)  # NCHW, like PyTorch
    params = init_params(k_p, dim)

    fwd = jax.jit(encoder_forward)
    z = fwd(x, params)
    jax.block_until_ready(z)

    assert z.shape == (2, dim, 4, 4), z.shape
    assert jnp.all(jnp.isfinite(z))
    print("KERNEL_OK")
</pallas_src>

<mosaic_0001>
module attributes {stable_mosaic.version = 11 : i64} {
  func.func @_relu_conv_bn_kernel(%arg0: i32, %arg1: memref<162x12xf32, #tpu.memory_space<vmem>>, %arg2: memref<4x12x64xbf16, #tpu.memory_space<vmem>>, %arg3: memref<1x64xf32, #tpu.memory_space<vmem>>, %arg4: memref<1x64xf32, #tpu.memory_space<vmem>>, %arg5: memref<152x1xf32, #tpu.memory_space<vmem>>, %arg6: memref<152x64xf32, #tpu.memory_space<vmem>>) attributes {dimension_semantics = [#tpu.dimension_semantics<arbitrary>], iteration_bounds = array<i64: 1>, scalar_prefetch = 0 : i64, scratch_operands = 0 : i64, tpu.core_type = #tpu.core_type<tc>, window_params = [{pipeline_mode = #tpu.pipeline_mode<synchronous>, transform_indices = @transform_0, window_bounds = array<i64: 162, 12>}, {pipeline_mode = #tpu.pipeline_mode<synchronous>, transform_indices = @transform_1, window_bounds = array<i64: 4, 12, 64>}, {pipeline_mode = #tpu.pipeline_mode<synchronous>, transform_indices = @transform_2, window_bounds = array<i64: 1, 64>}, {pipeline_mode = #tpu.pipeline_mode<synchronous>, transform_indices = @transform_3, window_bounds = array<i64: 1, 64>}, {pipeline_mode = #tpu.pipeline_mode<synchronous>, transform_indices = @transform_4, window_bounds = array<i64: 152, 1>}, {pipeline_mode = #tpu.pipeline_mode<synchronous>, transform_indices = @transform_5, window_bounds = array<i64: 152, 64>}]} {
    %c0 = arith.constant 0 : index
    %c0_0 = arith.constant 0 : index
    %0 = vector.load %arg1[%c0, %c0_0] : memref<162x12xf32, #tpu.memory_space<vmem>>, vector<162x12xf32>
    %cst = arith.constant 0.000000e+00 : f32
    %1 = vector.broadcast %cst : f32 to vector<162x12xf32>
    %2 = arith.maximumf %0, %1 : vector<162x12xf32>
    %cst_1 = arith.constant 0.000000e+00 : f32
    %3 = vector.broadcast %cst_1 : f32 to vector<152x64xf32>
    %4 = vector.extract_strided_slice %2 {offsets = [0, 0], sizes = [152, 12], strides = [1, 1]} : vector<162x12xf32> to vector<152x12xf32>
    %5 = arith.truncf %4 : vector<152x12xf32> to vector<152x12xbf16>
    %c0_2 = arith.constant 0 : index
    %c0_3 = arith.constant 0 : index
    %c0_4 = arith.constant 0 : index
    %6 = vector.load %arg2[%c0_2, %c0_3, %c0_4] : memref<4x12x64xbf16, #tpu.memory_space<vmem>>, vector<1x12x64xbf16>
    %7 = vector.shape_cast %6 : vector<1x12x64xbf16> to vector<12x64xbf16>
    %cst_5 = arith.constant dense<0.000000e+00> : vector<152x64xf32>
    %8 = tpu.matmul %5, %7, %cst_5 {dimension_numbers = #tpu.dot_dimension_numbers<[1], [0], [0], [1], [0, 0, 1, 1], [], []>} : vector<152x12xbf16>, vector<12x64xbf16>, vector<152x64xf32> -> vector<152x64xf32>
    %9 = arith.addf %3, %8 : vector<152x64xf32>
    %10 = vector.extract_strided_slice %2 {offsets = [1, 0], sizes = [152, 12], strides = [1, 1]} : vector<162x12xf32> to vector<152x12xf32>
    %11 = arith.truncf %10 : vector<152x12xf32> to vector<152x12xbf16>
    %c1 = arith.constant 1 : index
    %c0_6 = arith.constant 0 : index
    %c0_7 = arith.constant 0 : index
    %12 = vector.load %arg2[%c1, %c0_6, %c0_7] : memref<4x12x64xbf16, #tpu.memory_space<vmem>>, vector<1x12x64xbf16>
    %13 = vector.shape_cast %12 : vector<1x12x64xbf16> to vector<12x64xbf16>
    %cst_8 = arith.constant dense<0.000000e+00> : vector<152x64xf32>
    %14 = tpu.matmul %11, %13, %cst_8 {dimension_numbers = #tpu.dot_dimension_numbers<[1], [0], [0], [1], [0, 0, 1, 1], [], []>} : vector<152x12xbf16>, vector<12x64xbf16>, vector<152x64xf32> -> vector<152x64xf32>
    %15 = arith.addf %9, %14 : vector<152x64xf32>
    %16 = vector.extract_strided_slice %2 {offsets = [9, 0], sizes = [152, 12], strides = [1, 1]} : vector<162x12xf32> to vector<152x12xf32>
    %17 = arith.truncf %16 : vector<152x12xf32> to vector<152x12xbf16>
    %c2 = arith.constant 2 : index
    %c0_9 = arith.constant 0 : index
    %c0_10 = arith.constant 0 : index
    %18 = vector.load %arg2[%c2, %c0_9, %c0_10] : memref<4x12x64xbf16, #tpu.memory_space<vmem>>, vector<1x12x64xbf16>
    %19 = vector.shape_cast %18 : vector<1x12x64xbf16> to vector<12x64xbf16>
    %cst_11 = arith.constant dense<0.000000e+00> : vector<152x64xf32>
    %20 = tpu.matmul %17, %19, %cst_11 {dimension_numbers = #tpu.dot_dimension_numbers<[1], [0], [0], [1], [0, 0, 1, 1], [], []>} : vector<152x12xbf16>, vector<12x64xbf16>, vector<152x64xf32> -> vector<152x64xf32>
    %21 = arith.addf %15, %20 : vector<152x64xf32>
    %22 = vector.extract_strided_slice %2 {offsets = [10, 0], sizes = [152, 12], strides = [1, 1]} : vector<162x12xf32> to vector<152x12xf32>
    %23 = arith.truncf %22 : vector<152x12xf32> to vector<152x12xbf16>
    %c3 = arith.constant 3 : index
    %c0_12 = arith.constant 0 : index
    %c0_13 = arith.constant 0 : index
    %24 = vector.load %arg2[%c3, %c0_12, %c0_13] : memref<4x12x64xbf16, #tpu.memory_space<vmem>>, vector<1x12x64xbf16>
    %25 = vector.shape_cast %24 : vector<1x12x64xbf16> to vector<12x64xbf16>
    %cst_14 = arith.constant dense<0.000000e+00> : vector<152x64xf32>
    %26 = tpu.matmul %23, %25, %cst_14 {dimension_numbers = #tpu.dot_dimension_numbers<[1], [0], [0], [1], [0, 0, 1, 1], [], []>} : vector<152x12xbf16>, vector<12x64xbf16>, vector<152x64xf32> -> vector<152x64xf32>
    %27 = arith.addf %21, %26 : vector<152x64xf32>
    %c0_15 = arith.constant 0 : index
    %c0_16 = arith.constant 0 : index
    %28 = vector.load %arg5[%c0_15, %c0_16] : memref<152x1xf32, #tpu.memory_space<vmem>>, vector<152x1xf32>
    %29 = vector.broadcast %28 : vector<152x1xf32> to vector<152x64xf32>
    %30 = arith.mulf %27, %29 : vector<152x64xf32>
    %cst_17 = arith.constant dense<0.000000e+00> : vector<64xf32>
    %31 = vector.multi_reduction <add>, %30, %cst_17 [0] : vector<152x64xf32> to vector<64xf32>
    %32 = vector.shape_cast %31 : vector<64xf32> to vector<1x64xf32>
    %cst_18 = arith.constant 7.812500e-03 : f32
    %33 = vector.broadcast %cst_18 : f32 to vector<1x64xf32>
    %34 = arith.mulf %32, %33 : vector<1x64xf32>
    %35 = vector.broadcast %34 : vector<1x64xf32> to vector<152x64xf32>
    %36 = arith.subf %27, %35 : vector<152x64xf32>
    %37 = vector.broadcast %28 : vector<152x1xf32> to vector<152x64xf32>
    %38 = arith.mulf %36, %37 : vector<152x64xf32>
    %39 = arith.mulf %38, %38 : vector<152x64xf32>
    %cst_19 = arith.constant dense<0.000000e+00> : vector<64xf32>
    %40 = vector.multi_reduction <add>, %39, %cst_19 [0] : vector<152x64xf32> to vector<64xf32>
    %41 = vector.shape_cast %40 : vector<64xf32> to vector<1x64xf32>
    %cst_20 = arith.constant 7.812500e-03 : f32
    %42 = vector.broadcast %cst_20 : f32 to vector<1x64xf32>
    %43 = arith.mulf %41, %42 : vector<1x64xf32>
    %44 = vector.broadcast %34 : vector<1x64xf32> to vector<152x64xf32>
    %45 = arith.subf %27, %44 : vector<152x64xf32>
    %cst_21 = arith.constant 9.99999974E-6 : f32
    %46 = vector.broadcast %cst_21 : f32 to vector<1x64xf32>
    %47 = arith.addf %43, %46 : vector<1x64xf32>
    %48 = math.rsqrt %47 : vector<1x64xf32>
    %49 = vector.broadcast %48 : vector<1x64xf32> to vector<152x64xf32>
    %50 = arith.mulf %45, %49 : vector<152x64xf32>
    %c0_22 = arith.constant 0 : index
    %c0_23 = arith.constant 0 : index
    %51 = vector.load %arg3[%c0_22, %c0_23] : memref<1x64xf32, #tpu.memory_space<vmem>>, vector<1x64xf32>
    %52 = vector.broadcast %51 : vector<1x64xf32> to vector<152x64xf32>
    %53 = arith.mulf %50, %52 : vector<152x64xf32>
    %c0_24 = arith.constant 0 : index
    %c0_25 = arith.constant 0 : index
    %54 = vector.load %arg4[%c0_24, %c0_25] : memref<1x64xf32, #tpu.memory_space<vmem>>, vector<1x64xf32>
    %55 = vector.broadcast %54 : vector<1x64xf32> to vector<152x64xf32>
    %56 = arith.addf %53, %55 : vector<152x64xf32>
    %c0_26 = arith.constant 0 : index
    %c0_27 = arith.constant 0 : index
    %57 = vector.load %arg6[%c0_26, %c0_27] : memref<152x64xf32, #tpu.memory_space<vmem>>, vector<152x64xf32>
    tpu.vector_store %arg6[%c0_26, %c0_27], %56 {strides = array<i32>} : memref<152x64xf32, #tpu.memory_space<vmem>>, vector<152x64xf32>,
    return
  }
  func.func @transform_0(%arg0: i32) -> (i32, i32) {
    %c0_i32 = arith.constant 0 : i32
    %c0_i32_0 = arith.constant 0 : i32
    %c0_i32_1 = arith.constant 0 : i32
    return %c0_i32, %c0_i32_0 : i32, i32
  }
  func.func @transform_1(%arg0: i32) -> (i32, i32, i32) {
    %c0_i32 = arith.constant 0 : i32
    %c0_i32_0 = arith.constant 0 : i32
    %c0_i32_1 = arith.constant 0 : i32
    %c0_i32_2 = arith.constant 0 : i32
    return %c0_i32, %c0_i32_0, %c0_i32_1 : i32, i32, i32
  }
  func.func @transform_2(%arg0: i32) -> (i32, i32) {
    %c0_i32 = arith.constant 0 : i32
    %c0_i32_0 = arith.constant 0 : i32
    %c0_i32_1 = arith.constant 0 : i32
    return %c0_i32, %c0_i32_0 : i32, i32
  }
  func.func @transform_3(%arg0: i32) -> (i32, i32) {
    %c0_i32 = arith.constant 0 : i32
    %c0_i32_0 = arith.constant 0 : i32
    %c0_i32_1 = arith.constant 0 : i32
    return %c0_i32, %c0_i32_0 : i32, i32
  }
  func.func @transform_4(%arg0: i32) -> (i32, i32) {
    %c0_i32 = arith.constant 0 : i32
    %c0_i32_0 = arith.constant 0 : i32
    %c0_i32_1 = arith.constant 0 : i32
    return %c0_i32, %c0_i32_0 : i32, i32
  }
  func.func @transform_5(%arg0: i32) -> (i32, i32) {
    %c0_i32 = arith.constant 0 : i32
    %c0_i32_0 = arith.constant 0 : i32
    %c0_i32_1 = arith.constant 0 : i32
    return %c0_i32, %c0_i32_0 : i32, i32
  }
}

module attributes {stable_mosaic.version = 11 : i64} {
  func.func @_relu_conv_bn_kernel(%arg0: i32, %arg1: memref<50x256xf32, #tpu.memory_space<vmem>>, %arg2: memref<4x256x128xbf16, #tpu.memory_space<vmem>>, %arg3: memref<1x128xf32, #tpu.memory_space<vmem>>, %arg4: memref<1x128xf32, #tpu.memory_space<vmem>>, %arg5: memref<44x1xf32, #tpu.memory_space<vmem>>, %arg6: memref<44x128xf32, #tpu.memory_space<vmem>>) attributes {dimension_semantics = [#tpu.dimension_semantics<arbitrary>], iteration_bounds = array<i64: 1>, scalar_prefetch = 0 : i64, scratch_operands = 0 : i64, tpu.core_type = #tpu.core_type<tc>, window_params = [{pipeline_mode = #tpu.pipeline_mode<synchronous>, transform_indices = @transform_0, window_bounds = array<i64: 50, 256>}, {pipeline_mode = #tpu.pipeline_mode<synchronous>, transform_indices = @transform_1, window_bounds = array<i64: 4, 256, 128>}, {pipeline_mode = #tpu.pipeline_mode<synchronous>, transform_indices = @transform_2, window_bounds = array<i64: 1, 128>}, {pipeline_mode = #tpu.pipeline_mode<synchronous>, transform_indices = @transform_3, window_bounds = array<i64: 1, 128>}, {pipeline_mode = #tpu.pipeline_mode<synchronous>, transform_indices = @transform_4, window_bounds = array<i64: 44, 1>}, {pipeline_mode = #tpu.pipeline_mode<synchronous>, transform_indices = @transform_5, window_bounds = array<i64: 44, 128>}]} {
    %c0 = arith.constant 0 : index
    %c0_0 = arith.constant 0 : index
    %0 = vector.load %arg1[%c0, %c0_0] : memref<50x256xf32, #tpu.memory_space<vmem>>, vector<50x256xf32>
    %cst = arith.constant 0.000000e+00 : f32
    %1 = vector.broadcast %cst : f32 to vector<50x256xf32>
    %2 = arith.maximumf %0, %1 : vector<50x256xf32>
    %cst_1 = arith.constant 0.000000e+00 : f32
    %3 = vector.broadcast %cst_1 : f32 to vector<44x128xf32>
    %4 = vector.extract_strided_slice %2 {offsets = [0, 0], sizes = [44, 256], strides = [1, 1]} : vector<50x256xf32> to vector<44x256xf32>
    %5 = arith.truncf %4 : vector<44x256xf32> to vector<44x256xbf16>
    %c0_2 = arith.constant 0 : index
    %c0_3 = arith.constant 0 : index
    %c0_4 = arith.constant 0 : index
    %6 = vector.load %arg2[%c0_2, %c0_3, %c0_4] : memref<4x256x128xbf16, #tpu.memory_space<vmem>>, vector<1x256x128xbf16>
    %7 = vector.shape_cast %6 : vector<1x256x128xbf16> to vector<256x128xbf16>
    %cst_5 = arith.constant dense<0.000000e+00> : vector<44x128xf32>
    %8 = tpu.matmul %5, %7, %cst_5 {dimension_numbers = #tpu.dot_dimension_numbers<[1], [0], [0], [1], [0, 0, 1, 1], [], []>} : vector<44x256xbf16>, vector<256x128xbf16>, vector<44x128xf32> -> vector<44x128xf32>
    %9 = arith.addf %3, %8 : vector<44x128xf32>
    %10 = vector.extract_strided_slice %2 {offsets = [1, 0], sizes = [44, 256], strides = [1, 1]} : vector<50x256xf32> to vector<44x256xf32>
    %11 = arith.truncf %10 : vector<44x256xf32> to vector<44x256xbf16>
    %c1 = arith.constant 1 : index
    %c0_6 = arith.constant 0 : index
    %c0_7 = arith.constant 0 : index
    %12 = vector.load %arg2[%c1, %c0_6, %c0_7] : memref<4x256x128xbf16, #tpu.memory_space<vmem>>, vector<1x256x128xbf16>
    %13 = vector.shape_cast %12 : vector<1x256x128xbf16> to vector<256x128xbf16>
    %cst_8 = arith.constant dense<0.000000e+00> : vector<44x128xf32>
    %14 = tpu.matmul %11, %13, %cst_8 {dimension_numbers = #tpu.dot_dimension_numbers<[1], [0], [0], [1], [0, 0, 1, 1], [], []>} : vector<44x256xbf16>, vector<256x128xbf16>, vector<44x128xf32> -> vector<44x128xf32>
    %15 = arith.addf %9, %14 : vector<44x128xf32>
    %16 = vector.extract_strided_slice %2 {offsets = [5, 0], sizes = [44, 256], strides = [1, 1]} : vector<50x256xf32> to vector<44x256xf32>
    %17 = arith.truncf %16 : vector<44x256xf32> to vector<44x256xbf16>
    %c2 = arith.constant 2 : index
    %c0_9 = arith.constant 0 : index
    %c0_10 = arith.constant 0 : index
    %18 = vector.load %arg2[%c2, %c0_9, %c0_10] : memref<4x256x128xbf16, #tpu.memory_space<vmem>>, vector<1x256x128xbf16>
    %19 = vector.shape_cast %18 : vector<1x256x128xbf16> to vector<256x128xbf16>
    %cst_11 = arith.constant dense<0.000000e+00> : vector<44x128xf32>
    %20 = tpu.matmul %17, %19, %cst_11 {dimension_numbers = #tpu.dot_dimension_numbers<[1], [0], [0], [1], [0, 0, 1, 1], [], []>} : vector<44x256xbf16>, vector<256x128xbf16>, vector<44x128xf32> -> vector<44x128xf32>
    %21 = arith.addf %15, %20 : vector<44x128xf32>
    %22 = vector.extract_strided_slice %2 {offsets = [6, 0], sizes = [44, 256], strides = [1, 1]} : vector<50x256xf32> to vector<44x256xf32>
    %23 = arith.truncf %22 : vector<44x256xf32> to vector<44x256xbf16>
    %c3 = arith.constant 3 : index
    %c0_12 = arith.constant 0 : index
    %c0_13 = arith.constant 0 : index
    %24 = vector.load %arg2[%c3, %c0_12, %c0_13] : memref<4x256x128xbf16, #tpu.memory_space<vmem>>, vector<1x256x128xbf16>
    %25 = vector.shape_cast %24 : vector<1x256x128xbf16> to vector<256x128xbf16>
    %cst_14 = arith.constant dense<0.000000e+00> : vector<44x128xf32>
    %26 = tpu.matmul %23, %25, %cst_14 {dimension_numbers = #tpu.dot_dimension_numbers<[1], [0], [0], [1], [0, 0, 1, 1], [], []>} : vector<44x256xbf16>, vector<256x128xbf16>, vector<44x128xf32> -> vector<44x128xf32>
    %27 = arith.addf %21, %26 : vector<44x128xf32>
    %c0_15 = arith.constant 0 : index
    %c0_16 = arith.constant 0 : index
    %28 = vector.load %arg5[%c0_15, %c0_16] : memref<44x1xf32, #tpu.memory_space<vmem>>, vector<44x1xf32>
    %29 = vector.broadcast %28 : vector<44x1xf32> to vector<44x128xf32>
    %30 = arith.mulf %27, %29 : vector<44x128xf32>
    %cst_17 = arith.constant dense<0.000000e+00> : vector<128xf32>
    %31 = vector.multi_reduction <add>, %30, %cst_17 [0] : vector<44x128xf32> to vector<128xf32>
    %32 = vector.shape_cast %31 : vector<128xf32> to vector<1x128xf32>
    %cst_18 = arith.constant 3.125000e-02 : f32
    %33 = vector.broadcast %cst_18 : f32 to vector<1x128xf32>
    %34 = arith.mulf %32, %33 : vector<1x128xf32>
    %35 = vector.broadcast %34 : vector<1x128xf32> to vector<44x128xf32>
    %36 = arith.subf %27, %35 : vector<44x128xf32>
    %37 = vector.broadcast %28 : vector<44x1xf32> to vector<44x128xf32>
    %38 = arith.mulf %36, %37 : vector<44x128xf32>
    %39 = arith.mulf %38, %38 : vector<44x128xf32>
    %cst_19 = arith.constant dense<0.000000e+00> : vector<128xf32>
    %40 = vector.multi_reduction <add>, %39, %cst_19 [0] : vector<44x128xf32> to vector<128xf32>
    %41 = vector.shape_cast %40 : vector<128xf32> to vector<1x128xf32>
    %cst_20 = arith.constant 3.125000e-02 : f32
    %42 = vector.broadcast %cst_20 : f32 to vector<1x128xf32>
    %43 = arith.mulf %41, %42 : vector<1x128xf32>
    %44 = vector.broadcast %34 : vector<1x128xf32> to vector<44x128xf32>
    %45 = arith.subf %27, %44 : vector<44x128xf32>
    %cst_21 = arith.constant 9.99999974E-6 : f32
    %46 = vector.broadcast %cst_21 : f32 to vector<1x128xf32>
    %47 = arith.addf %43, %46 : vector<1x128xf32>
    %48 = math.rsqrt %47 : vector<1x128xf32>
    %49 = vector.broadcast %48 : vector<1x128xf32> to vector<44x128xf32>
    %50 = arith.mulf %45, %49 : vector<44x128xf32>
    %c0_22 = arith.constant 0 : index
    %c0_23 = arith.constant 0 : index
    %51 = vector.load %arg3[%c0_22, %c0_23] : memref<1x128xf32, #tpu.memory_space<vmem>>, vector<1x128xf32>
    %52 = vector.broadcast %51 : vector<1x128xf32> to vector<44x128xf32>
    %53 = arith.mulf %50, %52 : vector<44x128xf32>
    %c0_24 = arith.constant 0 : index
    %c0_25 = arith.constant 0 : index
    %54 = vector.load %arg4[%c0_24, %c0_25] : memref<1x128xf32, #tpu.memory_space<vmem>>, vector<1x128xf32>
    %55 = vector.broadcast %54 : vector<1x128xf32> to vector<44x128xf32>
    %56 = arith.addf %53, %55 : vector<44x128xf32>
    %c0_26 = arith.constant 0 : index
    %c0_27 = arith.constant 0 : index
    %57 = vector.load %arg6[%c0_26, %c0_27] : memref<44x128xf32, #tpu.memory_space<vmem>>, vector<44x128xf32>
    tpu.vector_store %arg6[%c0_26, %c0_27], %56 {strides = array<i32>} : memref<44x128xf32, #tpu.memory_space<vmem>>, vector<44x128xf32>,
    return
  }
  func.func @transform_0(%arg0: i32) -> (i32, i32) {
    %c0_i32 = arith.constant 0 : i32
    %c0_i32_0 = arith.constant 0 : i32
    %c0_i32_1 = arith.constant 0 : i32
    return %c0_i32, %c0_i32_0 : i32, i32
  }
  func.func @transform_1(%arg0: i32) -> (i32, i32, i32) {
    %c0_i32 = arith.constant 0 : i32
    %c0_i32_0 = arith.constant 0 : i32
    %c0_i32_1 = arith.constant 0 : i32
    %c0_i32_2 = arith.constant 0 : i32
    return %c0_i32, %c0_i32_0, %c0_i32_1 : i32, i32, i32
  }
  func.func @transform_2(%arg0: i32) -> (i32, i32) {
    %c0_i32 = arith.constant 0 : i32
    %c0_i32_0 = arith.constant 0 : i32
    %c0_i32_1 = arith.constant 0 : i32
    return %c0_i32, %c0_i32_0 : i32, i32
  }
  func.func @transform_3(%arg0: i32) -> (i32, i32) {
    %c0_i32 = arith.constant 0 : i32
    %c0_i32_0 = arith.constant 0 : i32
    %c0_i32_1 = arith.constant 0 : i32
    return %c0_i32, %c0_i32_0 : i32, i32
  }
  func.func @transform_4(%arg0: i32) -> (i32, i32) {
    %c0_i32 = arith.constant 0 : i32
    %c0_i32_0 = arith.constant 0 : i32
    %c0_i32_1 = arith.constant 0 : i32
    return %c0_i32, %c0_i32_0 : i32, i32
  }
  func.func @transform_5(%arg0: i32) -> (i32, i32) {
    %c0_i32 = arith.constant 0 : i32
    %c0_i32_0 = arith.constant 0 : i32
    %c0_i32_1 = arith.constant 0 : i32
    return %c0_i32, %c0_i32_0 : i32, i32
  }
}

module attributes {stable_mosaic.version = 11 : i64} {
  func.func @_residual_kernel(%arg0: i32, %arg1: memref<72x128xf32, #tpu.memory_space<vmem>>, %arg2: memref<9x128x128xbf16, #tpu.memory_space<vmem>>, %arg3: memref<128x128xbf16, #tpu.memory_space<vmem>>, %arg4: memref<58x128xf32, #tpu.memory_space<vmem>>) attributes {dimension_semantics = [#tpu.dimension_semantics<arbitrary>], iteration_bounds = array<i64: 1>, scalar_prefetch = 0 : i64, scratch_operands = 0 : i64, tpu.core_type = #tpu.core_type<tc>, window_params = [{pipeline_mode = #tpu.pipeline_mode<synchronous>, transform_indices = @transform_0, window_bounds = array<i64: 72, 128>}, {pipeline_mode = #tpu.pipeline_mode<synchronous>, transform_indices = @transform_1, window_bounds = array<i64: 9, 128, 128>}, {pipeline_mode = #tpu.pipeline_mode<synchronous>, transform_indices = @transform_2, window_bounds = array<i64: 128, 128>}, {pipeline_mode = #tpu.pipeline_mode<synchronous>, transform_indices = @transform_3, window_bounds = array<i64: 58, 128>}]} {
    %c0 = arith.constant 0 : index
    %c0_0 = arith.constant 0 : index
    %0 = vector.load %arg1[%c0, %c0_0] : memref<72x128xf32, #tpu.memory_space<vmem>>, vector<72x128xf32>
    %cst = arith.constant 0.000000e+00 : f32
    %1 = vector.broadcast %cst : f32 to vector<72x128xf32>
    %2 = arith.maximumf %0, %1 : vector<72x128xf32>
    %cst_1 = arith.constant 0.000000e+00 : f32
    %3 = vector.broadcast %cst_1 : f32 to vector<58x128xf32>
    %4 = vector.extract_strided_slice %2 {offsets = [0, 0], sizes = [58, 128], strides = [1, 1]} : vector<72x128xf32> to vector<58x128xf32>
    %5 = arith.truncf %4 : vector<58x128xf32> to vector<58x128xbf16>
    %c0_2 = arith.constant 0 : index
    %c0_3 = arith.constant 0 : index
    %c0_4 = arith.constant 0 : index
    %6 = vector.load %arg2[%c0_2, %c0_3, %c0_4] : memref<9x128x128xbf16, #tpu.memory_space<vmem>>, vector<1x128x128xbf16>
    %7 = vector.shape_cast %6 : vector<1x128x128xbf16> to vector<128x128xbf16>
    %cst_5 = arith.constant dense<0.000000e+00> : vector<58x128xf32>
    %8 = tpu.matmul %5, %7, %cst_5 {dimension_numbers = #tpu.dot_dimension_numbers<[1], [0], [0], [1], [0, 0, 1, 1], [], []>} : vector<58x128xbf16>, vector<128x128xbf16>, vector<58x128xf32> -> vector<58x128xf32>
    %9 = arith.addf %3, %8 : vector<58x128xf32>
    %10 = vector.extract_strided_slice %2 {offsets = [1, 0], sizes = [58, 128], strides = [1, 1]} : vector<72x128xf32> to vector<58x128xf32>
    %11 = arith.truncf %10 : vector<58x128xf32> to vector<58x128xbf16>
    %c1 = arith.constant 1 : index
    %c0_6 = arith.constant 0 : index
    %c0_7 = arith.constant 0 : index
    %12 = vector.load %arg2[%c1, %c0_6, %c0_7] : memref<9x128x128xbf16, #tpu.memory_space<vmem>>, vector<1x128x128xbf16>
    %13 = vector.shape_cast %12 : vector<1x128x128xbf16> to vector<128x128xbf16>
    %cst_8 = arith.constant dense<0.000000e+00> : vector<58x128xf32>
    %14 = tpu.matmul %11, %13, %cst_8 {dimension_numbers = #tpu.dot_dimension_numbers<[1], [0], [0], [1], [0, 0, 1, 1], [], []>} : vector<58x128xbf16>, vector<128x128xbf16>, vector<58x128xf32> -> vector<58x128xf32>
    %15 = arith.addf %9, %14 : vector<58x128xf32>
    %16 = vector.extract_strided_slice %2 {offsets = [2, 0], sizes = [58, 128], strides = [1, 1]} : vector<72x128xf32> to vector<58x128xf32>
    %17 = arith.truncf %16 : vector<58x128xf32> to vector<58x128xbf16>
    %c2 = arith.constant 2 : index
    %c0_9 = arith.constant 0 : index
    %c0_10 = arith.constant 0 : index
    %18 = vector.load %arg2[%c2, %c0_9, %c0_10] : memref<9x128x128xbf16, #tpu.memory_space<vmem>>, vector<1x128x128xbf16>
    %19 = vector.shape_cast %18 : vector<1x128x128xbf16> to vector<128x128xbf16>
    %cst_11 = arith.constant dense<0.000000e+00> : vector<58x128xf32>
    %20 = tpu.matmul %17, %19, %cst_11 {dimension_numbers = #tpu.dot_dimension_numbers<[1], [0], [0], [1], [0, 0, 1, 1], [], []>} : vector<58x128xbf16>, vector<128x128xbf16>, vector<58x128xf32> -> vector<58x128xf32>
    %21 = arith.addf %15, %20 : vector<58x128xf32>
    %22 = vector.extract_strided_slice %2 {offsets = [6, 0], sizes = [58, 128], strides = [1, 1]} : vector<72x128xf32> to vector<58x128xf32>
    %23 = arith.truncf %22 : vector<58x128xf32> to vector<58x128xbf16>
    %c3 = arith.constant 3 : index
    %c0_12 = arith.constant 0 : index
    %c0_13 = arith.constant 0 : index
    %24 = vector.load %arg2[%c3, %c0_12, %c0_13] : memref<9x128x128xbf16, #tpu.memory_space<vmem>>, vector<1x128x128xbf16>
    %25 = vector.shape_cast %24 : vector<1x128x128xbf16> to vector<128x128xbf16>
    %cst_14 = arith.constant dense<0.000000e+00> : vector<58x128xf32>
    %26 = tpu.matmul %23, %25, %cst_14 {dimension_numbers = #tpu.dot_dimension_numbers<[1], [0], [0], [1], [0, 0, 1, 1], [], []>} : vector<58x128xbf16>, vector<128x128xbf16>, vector<58x128xf32> -> vector<58x128xf32>
    %27 = arith.addf %21, %26 : vector<58x128xf32>
    %28 = vector.extract_strided_slice %2 {offsets = [7, 0], sizes = [58, 128], strides = [1, 1]} : vector<72x128xf32> to vector<58x128xf32>
    %29 = arith.truncf %28 : vector<58x128xf32> to vector<58x128xbf16>
    %c4 = arith.constant 4 : index
    %c0_15 = arith.constant 0 : index
    %c0_16 = arith.constant 0 : index
    %30 = vector.load %arg2[%c4, %c0_15, %c0_16] : memref<9x128x128xbf16, #tpu.memory_space<vmem>>, vector<1x128x128xbf16>
    %31 = vector.shape_cast %30 : vector<1x128x128xbf16> to vector<128x128xbf16>
    %cst_17 = arith.constant dense<0.000000e+00> : vector<58x128xf32>
    %32 = tpu.matmul %29, %31, %cst_17 {dimension_numbers = #tpu.dot_dimension_numbers<[1], [0], [0], [1], [0, 0, 1, 1], [], []>} : vector<58x128xbf16>, vector<128x128xbf16>, vector<58x128xf32> -> vector<58x128xf32>
    %33 = arith.addf %27, %32 : vector<58x128xf32>
    %34 = vector.extract_strided_slice %2 {offsets = [8, 0], sizes = [58, 128], strides = [1, 1]} : vector<72x128xf32> to vector<58x128xf32>
    %35 = arith.truncf %34 : vector<58x128xf32> to vector<58x128xbf16>
    %c5 = arith.constant 5 : index
    %c0_18 = arith.constant 0 : index
    %c0_19 = arith.constant 0 : index
    %36 = vector.load %arg2[%c5, %c0_18, %c0_19] : memref<9x128x128xbf16, #tpu.memory_space<vmem>>, vector<1x128x128xbf16>
    %37 = vector.shape_cast %36 : vector<1x128x128xbf16> to vector<128x128xbf16>
    %cst_20 = arith.constant dense<0.000000e+00> : vector<58x128xf32>
    %38 = tpu.matmul %35, %37, %cst_20 {dimension_numbers = #tpu.dot_dimension_numbers<[1], [0], [0], [1], [0, 0, 1, 1], [], []>} : vector<58x128xbf16>, vector<128x128xbf16>, vector<58x128xf32> -> vector<58x128xf32>
    %39 = arith.addf %33, %38 : vector<58x128xf32>
    %40 = vector.extract_strided_slice %2 {offsets = [12, 0], sizes = [58, 128], strides = [1, 1]} : vector<72x128xf32> to vector<58x128xf32>
    %41 = arith.truncf %40 : vector<58x128xf32> to vector<58x128xbf16>
    %c6 = arith.constant 6 : index
    %c0_21 = arith.constant 0 : index
    %c0_22 = arith.constant 0 : index
    %42 = vector.load %arg2[%c6, %c0_21, %c0_22] : memref<9x128x128xbf16, #tpu.memory_space<vmem>>, vector<1x128x128xbf16>
    %43 = vector.shape_cast %42 : vector<1x128x128xbf16> to vector<128x128xbf16>
    %cst_23 = arith.constant dense<0.000000e+00> : vector<58x128xf32>
    %44 = tpu.matmul %41, %43, %cst_23 {dimension_numbers = #tpu.dot_dimension_numbers<[1], [0], [0], [1], [0, 0, 1, 1], [], []>} : vector<58x128xbf16>, vector<128x128xbf16>, vector<58x128xf32> -> vector<58x128xf32>
    %45 = arith.addf %39, %44 : vector<58x128xf32>
    %46 = vector.extract_strided_slice %2 {offsets = [13, 0], sizes = [58, 128], strides = [1, 1]} : vector<72x128xf32> to vector<58x128xf32>
    %47 = arith.truncf %46 : vector<58x128xf32> to vector<58x128xbf16>
    %c7 = arith.constant 7 : index
    %c0_24 = arith.constant 0 : index
    %c0_25 = arith.constant 0 : index
    %48 = vector.load %arg2[%c7, %c0_24, %c0_25] : memref<9x128x128xbf16, #tpu.memory_space<vmem>>, vector<1x128x128xbf16>
    %49 = vector.shape_cast %48 : vector<1x128x128xbf16> to vector<128x128xbf16>
    %cst_26 = arith.constant dense<0.000000e+00> : vector<58x128xf32>
    %50 = tpu.matmul %47, %49, %cst_26 {dimension_numbers = #tpu.dot_dimension_numbers<[1], [0], [0], [1], [0, 0, 1, 1], [], []>} : vector<58x128xbf16>, vector<128x128xbf16>, vector<58x128xf32> -> vector<58x128xf32>
    %51 = arith.addf %45, %50 : vector<58x128xf32>
    %52 = vector.extract_strided_slice %2 {offsets = [14, 0], sizes = [58, 128], strides = [1, 1]} : vector<72x128xf32> to vector<58x128xf32>
    %53 = arith.truncf %52 : vector<58x128xf32> to vector<58x128xbf16>
    %c8 = arith.constant 8 : index
    %c0_27 = arith.constant 0 : index
    %c0_28 = arith.constant 0 : index
    %54 = vector.load %arg2[%c8, %c0_27, %c0_28] : memref<9x128x128xbf16, #tpu.memory_space<vmem>>, vector<1x128x128xbf16>
    %55 = vector.shape_cast %54 : vector<1x128x128xbf16> to vector<128x128xbf16>
    %cst_29 = arith.constant dense<0.000000e+00> : vector<58x128xf32>
    %56 = tpu.matmul %53, %55, %cst_29 {dimension_numbers = #tpu.dot_dimension_numbers<[1], [0], [0], [1], [0, 0, 1, 1], [], []>} : vector<58x128xbf16>, vector<128x128xbf16>, vector<58x128xf32> -> vector<58x128xf32>
    %57 = arith.addf %51, %56 : vector<58x128xf32>
    %cst_30 = arith.constant 0.000000e+00 : f32
    %58 = vector.broadcast %cst_30 : f32 to vector<58x128xf32>
    %59 = arith.maximumf %57, %58 : vector<58x128xf32>
    %60 = arith.truncf %59 : vector<58x128xf32> to vector<58x128xbf16>
    %61 = vector.extract_strided_slice %0 {offsets = [7, 0], sizes = [58, 128], strides = [1, 1]} : vector<72x128xf32> to vector<58x128xf32>
    %c0_31 = arith.constant 0 : index
    %c0_32 = arith.constant 0 : index
    %62 = vector.load %arg3[%c0_31, %c0_32] : memref<128x128xbf16, #tpu.memory_space<vmem>>, vector<128x128xbf16>
    %cst_33 = arith.constant dense<0.000000e+00> : vector<58x128xf32>
    %63 = tpu.matmul %60, %62, %cst_33 {dimension_numbers = #tpu.dot_dimension_numbers<[1], [0], [0], [1], [0, 0, 1, 1], [], []>} : vector<58x128xbf16>, vector<128x128xbf16>, vector<58x128xf32> -> vector<58x128xf32>
    %64 = arith.addf %61, %63 : vector<58x128xf32>
    %c0_34 = arith.constant 0 : index
    %c0_35 = arith.constant 0 : index
    %65 = vector.load %arg4[%c0_34, %c0_35] : memref<58x128xf32, #tpu.memory_space<vmem>>, vector<58x128xf32>
    tpu.vector_store %arg4[%c0_34, %c0_35], %64 {strides = array<i32>} : memref<58x128xf32, #tpu.memory_space<vmem>>, vector<58x128xf32>,
    return
  }
  func.func @transform_0(%arg0: i32) -> (i32, i32) {
    %c0_i32 = arith.constant 0 : i32
    %c0_i32_0 = arith.constant 0 : i32
    %c0_i32_1 = arith.constant 0 : i32
    return %c0_i32, %c0_i32_0 : i32, i32
  }
  func.func @transform_1(%arg0: i32) -> (i32, i32, i32) {
    %c0_i32 = arith.constant 0 : i32
    %c0_i32_0 = arith.constant 0 : i32
    %c0_i32_1 = arith.constant 0 : i32
    %c0_i32_2 = arith.constant 0 : i32
    return %c0_i32, %c0_i32_0, %c0_i32_1 : i32, i32, i32
  }
  func.func @transform_2(%arg0: i32) -> (i32, i32) {
    %c0_i32 = arith.constant 0 : i32
    %c0_i32_0 = arith.constant 0 : i32
    %c0_i32_1 = arith.constant 0 : i32
    return %c0_i32, %c0_i32_0 : i32, i32
  }
  func.func @transform_3(%arg0: i32) -> (i32, i32) {
    %c0_i32 = arith.constant 0 : i32
    %c0_i32_0 = arith.constant 0 : i32
    %c0_i32_1 = arith.constant 0 : i32
    return %c0_i32, %c0_i32_0 : i32, i32
  }
}

</mosaic_0001>

<llo_original>
// kernel: encoder_forward.4
$region0: #{encoder_forward.4}
  #allocation0 [shape = 'u32[]', space=smem, size = 0x4, offset = 0x4, fixed_abs, tag = 'smem constant byte address 0x4 - core index']
  #allocation1 [shape = 'u32[144,128]{1,0:T(1,128)}', space=vmem, size = 0x12000, scoped, tag = 'internal scratch']
  %s0 = inlined_call_operand.vmem [shape: f32[162,12], index: 0, kind: input, shape index: {}]
  %s1 = inlined_call_operand.vmem [shape: bf16[4,12,64], index: 1, kind: input, shape index: {}]
  %s2 = inlined_call_operand.vmem [shape: f32[1,64], index: 2, kind: input, shape index: {}]
  %s3 = inlined_call_operand.vmem [shape: f32[1,64], index: 3, kind: input, shape index: {}]
  %s4 = inlined_call_operand.vmem [shape: f32[152,1], index: 4, kind: input, shape index: {}]
  %s5 = inlined_call_operand.vmem [shape: f32[152,64], index: 5, kind: output, shape index: {}]
  %s6 = sld [smem:[#allocation0]]
  $region30: #{encoder_forward.4} parent=0
    _
  %s8 = ssub.s32 1, %s6
  %s9 = scalar_select 0, %s8, %s6
  // Predicated region
  $region2: #{encoder_forward.4} parent=0 // pred_check
    _
  $region3: #{encoder_forward.4} parent=0 // pred_check_branch
    %11 = sbr.rel (0) target = $region5
  $region4: #{encoder_forward.4} parent=0 // pred_region
    _
  $region5: #{encoder_forward.4} parent=0 // pred_fallthru
    _
  // Predicated region
  $region6: #{encoder_forward.4} parent=0 // pred_check
    _
  $region7: #{encoder_forward.4} parent=0 // pred_check_branch
    %13 = sbr.rel (0) target = $region9
  $region8: #{encoder_forward.4} parent=0 // pred_region
    _
  $region9: #{encoder_forward.4} parent=0 // pred_fallthru
    _
  // Predicated region
  $region10: #{encoder_forward.4} parent=0 // pred_check
    _
  $region11: #{encoder_forward.4} parent=0 // pred_check_branch
    %15 = sbr.rel (0) target = $region13
  $region12: #{encoder_forward.4} parent=0 // pred_region
    _
  $region13: #{encoder_forward.4} parent=0 // pred_fallthru
    _
  // Predicated region
  $region14: #{encoder_forward.4} parent=0 // pred_check
    _
  $region15: #{encoder_forward.4} parent=0 // pred_check_branch
    %17 = sbr.rel (0) target = $region17
  $region16: #{encoder_forward.4} parent=0 // pred_region
    _
  $region17: #{encoder_forward.4} parent=0 // pred_fallthru
    _
  // Predicated region
  $region18: #{encoder_forward.4} parent=0 // pred_check
    _
  $region19: #{encoder_forward.4} parent=0 // pred_check_branch
    %19 = sbr.rel (0) target = $region21
  $region20: #{encoder_forward.4} parent=0 // pred_region
    _
  $region21: #{encoder_forward.4} parent=0 // pred_fallthru
    _
  %v21 = vld [vmem:[%s0] sm:$0xff]
  %v22 = vld [vmem:[%s0 + $0x8] sm:$0xff]
  %v23 = vld [vmem:[%s0 + $0x10] sm:$0xff]
  %v24 = vld [vmem:[%s0 + $0x18] sm:$0xff]
  %v25 = vld [vmem:[%s0 + $0x20] sm:$0xff]
  %v26 = vld [vmem:[%s0 + $0x28] sm:$0xff]
  %v27 = vld [vmem:[%s0 + $0x30] sm:$0xff]
  %v28 = vld [vmem:[%s0 + $0x38] sm:$0xff]
  %v29 = vld [vmem:[%s0 + $0x40] sm:$0xff]
  %v30 = vld [vmem:[%s0 + $0x48] sm:$0xff]
  %v31 = vld [vmem:[%s0 + $0x50] sm:$0xff]
  %v32 = vld [vmem:[%s0 + $0x58] sm:$0xff]
  %v33 = vld [vmem:[%s0 + $0x60] sm:$0xff]
  %v34 = vld [vmem:[%s0 + $0x68] sm:$0xff]
  %v35 = vld [vmem:[%s0 + $0x70] sm:$0xff]
  %v36 = vld [vmem:[%s0 + $0x78] sm:$0xff]
  %v37 = vld [vmem:[%s0 + $0x80] sm:$0xff]
  %v38 = vld [vmem:[%s0 + $0x88] sm:$0xff]
  %v39 = vld [vmem:[%s0 + $0x90] sm:$0xff]
  %v40 = vld [vmem:[%s0 + $0x98] sm:$0xff]
  %v41 = vld [vmem:[%s0 + $0xa0] sm:$0x3]
  %v42 = vmax.f32 %v21, 0.0
  %v43 = vmax.f32 %v22, 0.0
  %v44 = vmax.f32 %v23, 0.0
  %v45 = vmax.f32 %v24, 0.0
  %v46 = vmax.f32 %v25, 0.0
  %v47 = vmax.f32 %v26, 0.0
  %v48 = vmax.f32 %v27, 0.0
  %v49 = vmax.f32 %v28, 0.0
  %v50 = vmax.f32 %v29, 0.0
  %v51 = vmax.f32 %v30, 0.0
  %v52 = vmax.f32 %v31, 0.0
  %v53 = vmax.f32 %v32, 0.0
  %v54 = vmax.f32 %v33, 0.0
  %v55 = vmax.f32 %v34, 0.0
  %v56 = vmax.f32 %v35, 0.0
  %v57 = vmax.f32 %v36, 0.0
  %v58 = vmax.f32 %v37, 0.0
  %v59 = vmax.f32 %v38, 0.0
  %v60 = vmax.f32 %v39, 0.0
  %v61 = vmax.f32 %v40, 0.0
  %v62 = vmax.f32 %v41, 0.0
  %v63 = vpack.c.bf16 %v43, %v42
  %v64 = vpack.c.bf16 %v45, %v44
  %v65 = vpack.c.bf16 %v47, %v46
  %v66 = vpack.c.bf16 %v49, %v48
  %v67 = vpack.c.bf16 %v51, %v50
  %v68 = vpack.c.bf16 %v53, %v52
  %v69 = vpack.c.bf16 %v55, %v54
  %v70 = vpack.c.bf16 %v57, %v56
  %v71 = vpack.c.bf16 %v59, %v58
  %v72 = vpack.c.bf16 %v60, %v60
  %v73 = vld [vmem:[%s1] sm:$0xf]
  %v74 = vld [vmem:[%s1 + $0x4] sm:$0x3]
  %v75 = vpack.c.bf16 %v61, %v60
  %s76 = scalar_lea.vmem %s1, 8
  %v77 = vld [vmem:[%s76] sm:$0xf]
  %v78 = vld [vmem:[%s76 + $0x4] sm:$0x3]
  %vm79 = vsmask.f32 7424
  %v81 = vshrl.u32 %v63, 16
  %v83 = vshll.u32 %v63, 16
  %v85 = vrot.slane %v83, 1
  %v86 = vor.u32 %v81, %v85
  %v88 = vshll.u32 %v64, 16
  %v90 = vrot.slane %v88, 1
  %v91 = vsel %vm79, %v86, %v90
  %v92 = vshrl.u32 %v64, 16
  %v94 = vor.u32 %v92, %v90
  %v96 = vshll.u32 %v65, 16
  %v98 = vrot.slane %v96, 1
  %v99 = vsel %vm79, %v94, %v98
  %v100 = vshrl.u32 %v65, 16
  %v102 = vor.u32 %v100, %v98
  %v104 = vshll.u32 %v66, 16
  %v106 = vrot.slane %v104, 1
  %v107 = vsel %vm79, %v102, %v106
  %v108 = vshrl.u32 %v66, 16
  %v110 = vor.u32 %v108, %v106
  %v112 = vshll.u32 %v67, 16
  %v114 = vrot.slane %v112, 1
  %v115 = vsel %vm79, %v110, %v114
  %v116 = vshrl.u32 %v67, 16
  %v118 = vor.u32 %v116, %v114
  %v120 = vshll.u32 %v68, 16
  %v122 = vrot.slane %v120, 1
  %v123 = vsel %vm79, %v118, %v122
  %v124 = vshrl.u32 %v68, 16
  %v126 = vor.u32 %v124, %v122
  %v128 = vshll.u32 %v69, 16
  %v130 = vrot.slane %v128, 1
  %v131 = vsel %vm79, %v126, %v130
  %v132 = vshrl.u32 %v69, 16
  %v134 = vor.u32 %v132, %v130
  %v136 = vshll.u32 %v70, 16
  %v138 = vrot.slane %v136, 1
  %v139 = vsel %vm79, %v134, %v138
  %v140 = vshrl.u32 %v70, 16
  %v142 = vor.u32 %v140, %v138
  %v144 = vshll.u32 %v71, 16
  %v146 = vrot.slane %v144, 1
  %v147 = vsel %vm79, %v142, %v146
  %v148 = vshrl.u32 %v71, 16
  %v150 = vor.u32 %v148, %v146
  %v152 = vshll.u32 %v75, 16
  %v154 = vrot.slane %v152, 1
  %v155 = vsel %vm79, %v150, %v154
  %v156 = vshrl.u32 %v75, 16
  %v158 = vor.u32 %v156, %v154
  %v161 = vunpack.c.l.b16 %v77
  %v162 = vunpack.c.l.b16 %v78
  %v163 = vpack.c.b16 %v162, %v161
  %vm164 = vcmask 97280
  %v166 = vsel %vm164, %v91, 0
  %v169 = vsel %vm164, %v99, 0
  %v172 = vsel %vm164, %v107, 0
  %v175 = vsel %vm164, %v115, 0
  %v178 = vsel %vm164, %v123, 0
  %v181 = vsel %vm164, %v131, 0
  %v184 = vsel %vm164, %v139, 0
  %v187 = vsel %vm164, %v147, 0
  %v190 = vsel %vm164, %v155, 0
  %v193 = vsel %vm164, %v158, 0
  %vm195 = vcmask 1045504
  %v197 = vsel %vm195, %v163, 0
  %199 = vmatprep.subr.bf16.mxu0 0
  %200 = vmatpush1.bf16.msra.mxu0 %v197
  %201 = vmatprep.subr.bf16.mxu0 0
  %202 = vmatpush1.bf16.msra.mxu0 0
  %203 = vmatprep.subr.bf16.mxu0 0
  %204 = vmatpush1.bf16.msra.mxu0 0
  %205 = vmatprep.subr.bf16.mxu0 0
  %206 = vmatpush1.bf16.msra.mxu0 0
  %207 = vmatprep.subr.bf16.mxu0 0
  %208 = vmatpush1.bf16.msra.mxu0 0
  %209 = vmatprep.subr.bf16.mxu0 0
  %210 = vmatpush1.bf16.msra.mxu0 0
  %211 = vmatprep.subr.bf16.mxu0 0
  %212 = vmatpush1.bf16.msra.mxu0 0
  %213 = vmatprep.subr.bf16.mxu0 0
  %214 = vmatpush1.bf16.msra.mxu0 0
  %215 = vmatprep.subr.bf16.mxu0 0
  %216 = vmatpush1.bf16.msra.mxu0 0
  %217 = vmatprep.subr.bf16.mxu0 0
  %218 = vmatpush1.bf16.msra.mxu0 0
  %219 = vmatprep.subr.bf16.mxu0 0
  %220 = vmatpush1.bf16.msra.mxu0 0
  %221 = vmatprep.subr.bf16.mxu0 0
  %222 = vmatpush1.bf16.msra.mxu0 0
  %223 = vmatprep.subr.bf16.mxu0 0
  %224 = vmatpush1.bf16.msra.mxu0 0
  %225 = vmatprep.subr.bf16.mxu0 0
  %226 = vmatpush1.bf16.msra.mxu0 0
  %227 = vmatprep.subr.bf16.mxu0 0
  %228 = vmatpush1.bf16.msra.mxu0 0
  %229 = vmatprep.subr.bf16.mxu0 0
  %230 = vmatpush1.bf16.msra.mxu0 0
  %231 = vmatprep.mubr.bf16.mxu0 0
  %232 = vmatmul.mubr.bf16.gmra.mrb[0].mxu0 %v166
  %v233 = vpop.f32.mrb[0].mxu0
  %v234 = vadd.f32 0.0, %v233
  %v235 = vpop.f32.mrb[0].mxu0
  %v236 = vpop.f32.mrb[0].mxu0
  %v237 = vadd.f32 0.0, %v236
  %v238 = vpop.f32.mrb[0].mxu0
  %239 = vmatprep.mubr.bf16.mxu0 0
  %240 = vmatmul.mubr.bf16.gmra.mrb[0].mxu0 %v169
  %v241 = vpop.f32.mrb[0].mxu0
  %v242 = vadd.f32 0.0, %v241
  %v243 = vpop.f32.mrb[0].mxu0
  %v244 = vpop.f32.mrb[0].mxu0
  %v245 = vadd.f32 0.0, %v244
  %v246 = vpop.f32.mrb[0].mxu0
  %247 = vmatprep.mubr.bf16.mxu0 0
  %248 = vmatmul.mubr.bf16.gmra.mrb[0].mxu0 %v172
  %v249 = vpop.f32.mrb[0].mxu0
  %v250 = vadd.f32 0.0, %v249
  %v251 = vpop.f32.mrb[0].mxu0
  %v252 = vpop.f32.mrb[0].mxu0
  %v253 = vadd.f32 0.0, %v252
  %v254 = vpop.f32.mrb[0].mxu0
  %255 = vmatprep.mubr.bf16.mxu0 0
  %256 = vmatmul.mubr.bf16.gmra.mrb[0].mxu0 %v175
  %v257 = vpop.f32.mrb[0].mxu0
  %v258 = vadd.f32 0.0, %v257
  %v259 = vpop.f32.mrb[0].mxu0
  %v260 = vpop.f32.mrb[0].mxu0
  %v261 = vadd.f32 0.0, %v260
  %v262 = vpop.f32.mrb[0].mxu0
  %263 = vmatprep.mubr.bf16.mxu0 0
  %264 = vmatmul.mubr.bf16.gmra.mrb[0].mxu0 %v178
  %v265 = vpop.f32.mrb[0].mxu0
  %v266 = vadd.f32 0.0, %v265
  %v267 = vpop.f32.mrb[0].mxu0
  %v268 = vpop.f32.mrb[0].mxu0
  %v269 = vadd.f32 0.0, %v268
  %v270 = vpop.f32.mrb[0].mxu0
  %271 = vmatprep.mubr.bf16.mxu0 0
  %272 = vmatmul.mubr.bf16.gmra.mrb[0].mxu0 %v181
  %v273 = vpop.f32.mrb[0].mxu0
  %v274 = vadd.f32 0.0, %v273
  %v275 = vpop.f32.mrb[0].mxu0
  %v276 = vpop.f32.mrb[0].mxu0
  %v277 = vadd.f32 0.0, %v276
  %v278 = vpop.f32.mrb[0].mxu0
  %279 = vmatprep.mubr.bf16.mxu0 0
  %280 = vmatmul.mubr.bf16.gmra.mrb[0].mxu0 %v184
  %v281 = vpop.f32.mrb[0].mxu0
  %v282 = vadd.f32 0.0, %v281
  %v283 = vpop.f32.mrb[0].mxu0
  %v284 = vpop.f32.mrb[0].mxu0
  %v285 = vadd.f32 0.0, %v284
  %v286 = vpop.f32.mrb[0].mxu0
  %287 = vmatprep.mubr.bf16.mxu0 0
  %288 = vmatmul.mubr.bf16.gmra.mrb[0].mxu0 %v187
  %v289 = vpop.f32.mrb[0].mxu0
  %v290 = vadd.f32 0.0, %v289
  %v291 = vpop.f32.mrb[0].mxu0
  %v292 = vpop.f32.mrb[0].mxu0
  %v293 = vadd.f32 0.0, %v292
  %v294 = vpop.f32.mrb[0].mxu0
  %295 = vmatprep.mubr.bf16.mxu0 0
  %296 = vmatmul.mubr.bf16.gmra.mrb[0].mxu0 %v190
  %v297 = vpop.f32.mrb[0].mxu0
  %v298 = vadd.f32 0.0, %v297
  %v299 = vpop.f32.mrb[0].mxu0
  %v300 = vpop.f32.mrb[0].mxu0
  %v301 = vadd.f32 0.0, %v300
  %v302 = vpop.f32.mrb[0].mxu0
  %303 = vmatprep.mubr.bf16.mxu0 0
  %304 = vmatmul.mubr.bf16.gmra.mrb[0].mxu0 %v193
  %v305 = vpop.f32.mrb[0].mxu0
  %v306 = vadd.f32 0.0, %v305
  %v307 = vpop.f32.mrb[0].mxu0
  %v308 = vpop.f32.mrb[0].mxu0
  %v309 = vpop.f32.mrb[0].mxu0
  %310 = vdwg.mxu0
  %v313 = vunpack.c.l.b16 %v73
  %v314 = vunpack.c.l.b16 %v74
  %v315 = vpack.c.b16 %v314, %v313
  %v316 = vsel %vm164, %v63, 0
  %v318 = vsel %vm164, %v64, 0
  %v320 = vsel %vm164, %v65, 0
  %v322 = vsel %vm164, %v66, 0
  %v324 = vsel %vm164, %v67, 0
  %v326 = vsel %vm164, %v68, 0
  %v328 = vsel %vm164, %v69, 0
  %v330 = vsel %vm164, %v70, 0
  %v332 = vsel %vm164, %v71, 0
  %v335 = vsel %vm164, %v72, 0
  %v338 = vsel %vm195, %v315, 0
  %340 = vmatprep.subr.bf16.mxu0 0
  %341 = vmatpush1.bf16.msra.mxu0 %v338
  %342 = vmatprep.subr.bf16.mxu0 0
  %343 = vmatpush1.bf16.msra.mxu0 0
  %344 = vmatprep.subr.bf16.mxu0 0
  %345 = vmatpush1.bf16.msra.mxu0 0
  %346 = vmatprep.subr.bf16.mxu0 0
  %347 = vmatpush1.bf16.msra.mxu0 0
  %348 = vmatprep.subr.bf16.mxu0 0
  %349 = vmatpush1.bf16.msra.mxu0 0
  %350 = vmatprep.subr.bf16.mxu0 0
  %351 = vmatpush1.bf16.msra.mxu0 0
  %352 = vmatprep.subr.bf16.mxu0 0
  %353 = vmatpush1.bf16.msra.mxu0 0
  %354 = vmatprep.subr.bf16.mxu0 0
  %355 = vmatpush1.bf16.msra.mxu0 0
  %356 = vmatprep.subr.bf16.mxu0 0
  %357 = vmatpush1.bf16.msra.mxu0 0
  %358 = vmatprep.subr.bf16.mxu0 0
  %359 = vmatpush1.bf16.msra.mxu0 0
  %360 = vmatprep.subr.bf16.mxu0 0
  %361 = vmatpush1.bf16.msra.mxu0 0
  %362 = vmatprep.subr.bf16.mxu0 0
  %363 = vmatpush1.bf16.msra.mxu0 0
  %364 = vmatprep.subr.bf16.mxu0 0
  %365 = vmatpush1.bf16.msra.mxu0 0
  %366 = vmatprep.subr.bf16.mxu0 0
  %367 = vmatpush1.bf16.msra.mxu0 0
  %368 = vmatprep.subr.bf16.mxu0 0
  %369 = vmatpush1.bf16.msra.mxu0 0
  %370 = vmatprep.subr.bf16.mxu0 0
  %371 = vmatpush1.bf16.msra.mxu0 0
  %372 = vmatprep.mubr.bf16.mxu0 0
  %373 = vmatmul.mubr.bf16.gmra.mrb[0].mxu0 %v316
  %v374 = vpop.f32.mrb[0].mxu0
  %v375 = vadd.f32 %v234, %v374
  %v376 = vpop.f32.mrb[0].mxu0
  %v377 = vpop.f32.mrb[0].mxu0
  %v378 = vadd.f32 %v237, %v377
  %v379 = vpop.f32.mrb[0].mxu0
  %380 = vmatprep.mubr.bf16.mxu0 0
  %381 = vmatmul.mubr.bf16.gmra.mrb[0].mxu0 %v318
  %v382 = vpop.f32.mrb[0].mxu0
  %v383 = vadd.f32 %v242, %v382
  %v384 = vpop.f32.mrb[0].mxu0
  %v385 = vpop.f32.mrb[0].mxu0
  %v386 = vadd.f32 %v245, %v385
  %v387 = vpop.f32.mrb[0].mxu0
  %388 = vmatprep.mubr.bf16.mxu0 0
  %389 = vmatmul.mubr.bf16.gmra.mrb[0].mxu0 %v320
  %v390 = vpop.f32.mrb[0].mxu0
  %v391 = vadd.f32 %v250, %v390
  %v392 = vpop.f32.mrb[0].mxu0
  %v393 = vpop.f32.mrb[0].mxu0
  %v394 = vadd.f32 %v253, %v393
  %v395 = vpop.f32.mrb[0].mxu0
  %396 = vmatprep.mubr.bf16.mxu0 0
  %397 = vmatmul.mubr.bf16.gmra.mrb[0].mxu0 %v322
  %v398 = vpop.f32.mrb[0].mxu0
  %v399 = vadd.f32 %v258, %v398
  %v400 = vpop.f32.mrb[0].mxu0
  %v401 = vpop.f32.mrb[0].mxu0
  %v402 = vadd.f32 %v261, %v401
  %v403 = vpop.f32.mrb[0].mxu0
  %404 = vmatprep.mubr.bf16.mxu0 0
  %405 = vmatmul.mubr.bf16.gmra.mrb[0].mxu0 %v324
  %v406 = vpop.f32.mrb[0].mxu0
  %v407 = vadd.f32 %v266, %v406
  %v408 = vpop.f32.mrb[0].mxu0
  %v409 = vpop.f32.mrb[0].mxu0
  %v410 = vadd.f32 %v269, %v409
  %v411 = vpop.f32.mrb[0].mxu0
  %412 = vmatprep.mubr.bf16.mxu0 0
  %413 = vmatmul.mubr.bf16.gmra.mrb[0].mxu0 %v326
  %v414 = vpop.f32.mrb[0].mxu0
  %v415 = vadd.f32 %v274, %v414
  %v416 = vpop.f32.mrb[0].mxu0
  %v417 = vpop.f32.mrb[0].mxu0
  %v418 = vadd.f32 %v277, %v417
  %v419 = vpop.f32.mrb[0].mxu0
  %420 = vmatprep.mubr.bf16.mxu0 0
  %421 = vmatmul.mubr.bf16.gmra.mrb[0].mxu0 %v328
  %v422 = vpop.f32.mrb[0].mxu0
  %v423 = vadd.f32 %v282, %v422
  %v424 = vpop.f32.mrb[0].mxu0
  %v425 = vpop.f32.mrb[0].mxu0
  %v426 = vadd.f32 %v285, %v425
  %v427 = vpop.f32.mrb[0].mxu0
  %428 = vmatprep.mubr.bf16.mxu0 0
  %429 = vmatmul.mubr.bf16.gmra.mrb[0].mxu0 %v330
  %v430 = vpop.f32.mrb[0].mxu0
  %v431 = vadd.f32 %v290, %v430
  %v432 = vpop.f32.mrb[0].mxu0
  %v433 = vpop.f32.mrb[0].mxu0
  %v434 = vadd.f32 %v293, %v433
  %v435 = vpop.f32.mrb[0].mxu0
  %436 = vmatprep.mubr.bf16.mxu0 0
  %437 = vmatmul.mubr.bf16.gmra.mrb[0].mxu0 %v332
  %v438 = vpop.f32.mrb[0].mxu0
  %v439 = vadd.f32 %v298, %v438
  %v440 = vpop.f32.mrb[0].mxu0
  %v441 = vpop.f32.mrb[0].mxu0
  %v442 = vadd.f32 %v301, %v441
  %v443 = vpop.f32.mrb[0].mxu0
  %444 = vmatprep.mubr.bf16.mxu0 0
  %445 = vmatmul.mubr.bf16.gmra.mrb[0].mxu0 %v335
  %v446 = vpop.f32.mrb[0].mxu0
  %v447 = vadd.f32 %v306, %v446
  %v448 = vpop.f32.mrb[0].mxu0
  %v449 = vpop.f32.mrb[0].mxu0
  %v450 = vpop.f32.mrb[0].mxu0
  %451 = vdwg.mxu0
  %v452 = vpack.c.bf16 %v44, %v43
  %v453 = vpack.c.bf16 %v46, %v45
  %v454 = vpack.c.bf16 %v48, %v47
  %v455 = vpack.c.bf16 %v50, %v49
  %v456 = vpack.c.bf16 %v52, %v51
  %v457 = vpack.c.bf16 %v54, %v53
  %v458 = vpack.c.bf16 %v56, %v55
  %v459 = vpack.c.bf16 %v58, %v57
  %v460 = vpack.c.bf16 %v60, %v59
  %v461 = vpack.c.bf16 %v62, %v61
  %s462 = scalar_lea.vmem %s1, 16
  %v463 = vld [vmem:[%s462] sm:$0xf]
  %v464 = vld [vmem:[%s462 + $0x4] sm:$0x3]
  %v466 = vshrl.u32 %v452, 16
  %v468 = vshll.u32 %v452, 16
  %v470 = vrot.slane %v468, 1
  %v471 = vor.u32 %v466, %v470
  %v473 = vshll.u32 %v453, 16
  %v475 = vrot.slane %v473, 1
  %v476 = vsel %vm79, %v471, %v475
  %v477 = vshrl.u32 %v453, 16
  %v479 = vor.u32 %v477, %v475
  %v481 = vshll.u32 %v454, 16
  %v483 = vrot.slane %v481, 1
  %v484 = vsel %vm79, %v479, %v483
  %v485 = vshrl.u32 %v454, 16
  %v487 = vor.u32 %v485, %v483
  %v489 = vshll.u32 %v455, 16
  %v491 = vrot.slane %v489, 1
  %v492 = vsel %vm79, %v487, %v491
  %v493 = vshrl.u32 %v455, 16
  %v495 = vor.u32 %v493, %v491
  %v497 = vshll.u32 %v456, 16
  %v499 = vrot.slane %v497, 1
  %v500 = vsel %vm79, %v495, %v499
  %v501 = vshrl.u32 %v456, 16
  %v503 = vor.u32 %v501, %v499
  %v505 = vshll.u32 %v457, 16
  %v507 = vrot.slane %v505, 1
  %v508 = vsel %vm79, %v503, %v507
  %v509 = vshrl.u32 %v457, 16
  %v511 = vor.u32 %v509, %v507
  %v513 = vshll.u32 %v458, 16
  %v515 = vrot.slane %v513, 1
  %v516 = vsel %vm79, %v511, %v515
  %v517 = vshrl.u32 %v458, 16
  %v519 = vor.u32 %v517, %v515
  %v521 = vshll.u32 %v459, 16
  %v523 = vrot.slane %v521, 1
  %v524 = vsel %vm79, %v519, %v523
  %v525 = vshrl.u32 %v459, 16
  %v527 = vor.u32 %v525, %v523
  %v529 = vshll.u32 %v460, 16
  %v531 = vrot.slane %v529, 1
  %v532 = vsel %vm79, %v527, %v531
  %v533 = vshrl.u32 %v460, 16
  %v535 = vor.u32 %v533, %v531
  %v537 = vshll.u32 %v461, 16
  %v539 = vrot.slane %v537, 1
  %v540 = vsel %vm79, %v535, %v539
  %v541 = vshrl.u32 %v461, 16
  %v543 = vor.u32 %v541, %v539
  %v546 = vunpack.c.l.b16 %v463
  %v547 = vunpack.c.l.b16 %v464
  %v548 = vpack.c.b16 %v547, %v546
  %v550 = vsel %vm164, %v476, 0
  %v553 = vsel %vm164, %v484, 0
  %v556 = vsel %vm164, %v492, 0
  %v559 = vsel %vm164, %v500, 0
  %v562 = vsel %vm164, %v508, 0
  %v565 = vsel %vm164, %v516, 0
  %v568 = vsel %vm164, %v524, 0
  %v571 = vsel %vm164, %v532, 0
  %v574 = vsel %vm164, %v540, 0
  %v577 = vsel %vm164, %v543, 0
  %v580 = vsel %vm195, %v548, 0
  %582 = vmatprep.subr.bf16.mxu0 0
  %583 = vmatpush1.bf16.msra.mxu0 %v580
  %584 = vmatprep.subr.bf16.mxu0 0
  %585 = vmatpush1.bf16.msra.mxu0 0
  %586 = vmatprep.subr.bf16.mxu0 0
  %587 = vmatpush1.bf16.msra.mxu0 0
  %588 = vmatprep.subr.bf16.mxu0 0
  %589 = vmatpush1.bf16.msra.mxu0 0
  %590 = vmatprep.subr.bf16.mxu0 0
  %591 = vmatpush1.bf16.msra.mxu0 0
  %592 = vmatprep.subr.bf16.mxu0 0
  %593 = vmatpush1.bf16.msra.mxu0 0
  %594 = vmatprep.subr.bf16.mxu0 0
  %595 = vmatpush1.bf16.msra.mxu0 0
  %596 = vmatprep.subr.bf16.mxu0 0
  %597 = vmatpush1.bf16.msra.mxu0 0
  %598 = vmatprep.subr.bf16.mxu0 0
  %599 = vmatpush1.bf16.msra.mxu0 0
  %600 = vmatprep.subr.bf16.mxu0 0
  %601 = vmatpush1.bf16.msra.mxu0 0
  %602 = vmatprep.subr.bf16.mxu0 0
  %603 = vmatpush1.bf16.msra.mxu0 0
  %604 = vmatprep.subr.bf16.mxu0 0
  %605 = vmatpush1.bf16.msra.mxu0 0
  %606 = vmatprep.subr.bf16.mxu0 0
  %607 = vmatpush1.bf16.msra.mxu0 0
  %608 = vmatprep.subr.bf16.mxu0 0
  %609 = vmatpush1.bf16.msra.mxu0 0
  %610 = vmatprep.subr.bf16.mxu0 0
  %611 = vmatpush1.bf16.msra.mxu0 0
  %612 = vmatprep.subr.bf16.mxu0 0
  %613 = vmatpush1.bf16.msra.mxu0 0
  %614 = vmatprep.mubr.bf16.mxu0 0
  %615 = vmatmul.mubr.bf16.gmra.mrb[0].mxu0 %v550
  %v616 = vpop.f32.mrb[0].mxu0
  %v617 = vadd.f32 0.0, %v616
  %v618 = vpop.f32.mrb[0].mxu0
  %v619 = vpop.f32.mrb[0].mxu0
  %v620 = vadd.f32 0.0, %v619
  %v621 = vpop.f32.mrb[0].mxu0
  %622 = vmatprep.mubr.bf16.mxu0 0
  %623 = vmatmul.mubr.bf16.gmra.mrb[0].mxu0 %v553
  %v624 = vpop.f32.mrb[0].mxu0
  %v625 = vadd.f32 0.0, %v624
  %v626 = vpop.f32.mrb[0].mxu0
  %v627 = vpop.f32.mrb[0].mxu0
  %v628 = vadd.f32 0.0, %v627
  %v629 = vpop.f32.mrb[0].mxu0
  %630 = vmatprep.mubr.bf16.mxu0 0
  %631 = vmatmul.mubr.bf16.gmra.mrb[0].mxu0 %v556
  %v632 = vpop.f32.mrb[0].mxu0
  %v633 = vadd.f32 0.0, %v632
  %v634 = vpop.f32.mrb[0].mxu0
  %v635 = vpop.f32.mrb[0].mxu0
  %v636 = vadd.f32 0.0, %v635
  %v637 = vpop.f32.mrb[0].mxu0
  %638 = vmatprep.mubr.bf16.mxu0 0
  %639 = vmatmul.mubr.bf16.gmra.mrb[0].mxu0 %v559
  %v640 = vpop.f32.mrb[0].mxu0
  %v641 = vadd.f32 0.0, %v640
  %v642 = vpop.f32.mrb[0].mxu0
  %v643 = vpop.f32.mrb[0].mxu0
  %v644 = vadd.f32 0.0, %v643
  %v645 = vpop.f32.mrb[0].mxu0
  %646 = vmatprep.mubr.bf16.mxu0 0
  %647 = vmatmul.mubr.bf16.gmra.mrb[0].mxu0 %v562
  %v648 = vpop.f32.mrb[0].mxu0
  %v649 = vadd.f32 0.0, %v648
  %v650 = vpop.f32.mrb[0].mxu0
  %v651 = vpop.f32.mrb[0].mxu0
  %v652 = vadd.f32 0.0, %v651
  %v653 = vpop.f32.mrb[0].mxu0
  %654 = vmatprep.mubr.bf16.mxu0 0
  %655 = vmatmul.mubr.bf16.gmra.mrb[0].mxu0 %v565
  %v656 = vpop.f32.mrb[0].mxu0
  %v657 = vadd.f32 0.0, %v656
  %v658 = vpop.f32.mrb[0].mxu0
  %v659 = vpop.f32.mrb[0].mxu0
  %v660 = vadd.f32 0.0, %v659
  %v661 = vpop.f32.mrb[0].mxu0
  %662 = vmatprep.mubr.bf16.mxu0 0
  %663 = vmatmul.mubr.bf16.gmra.mrb[0].mxu0 %v568
  %v664 = vpop.f32.mrb[0].mxu0
  %v665 = vadd.f32 0.0, %v664
  %v666 = vpop.f32.mrb[0].mxu0
  %v667 = vpop.f32.mrb[0].mxu0
  %v668 = vadd.f32 0.0, %v667
  %v669 = vpop.f32.mrb[0].mxu0
  %670 = vmatprep.mubr.bf16.mxu0 0
  %671 = vmatmul.mubr.bf16.gmra.mrb[0].mxu0 %v571
  %v672 = vpop.f32.mrb[0].mxu0
  %v673 = vadd.f32 0.0, %v672
  %v674 = vpop.f32.mrb[0].mxu0
  %v675 = vpop.f32.mrb[0].mxu0
  %v676 = vadd.f32 0.0, %v675
  %v677 = vpop.f32.mrb[0].mxu0
  %678 = vmatprep.mubr.bf16.mxu0 0
  %679 = vmatmul.mubr.bf16.gmra.mrb[0].mxu0 %v574
  %v680 = vpop.f32.mrb[0].mxu0
  %v681 = vadd.f32 0.0, %v680
  %v682 = vpop.f32.mrb[0].mxu0
  %v683 = vpop.f32.mrb[0].mxu0
  %v684 = vadd.f32 0.0, %v683
  %v685 = vpop.f32.mrb[0].mxu0
  %686 = vmatprep.mubr.bf16.mxu0 0
  %687 = vmatmul.mubr.bf16.gmra.mrb[0].mxu0 %v577
  %v688 = vpop.f32.mrb[0].mxu0
  %v689 = vadd.f32 0.0, %v688
  %v690 = vpop.f32.mrb[0].mxu0
  %v691 = vpop.f32.mrb[0].mxu0
  %v692 = vpop.f32.mrb[0].mxu0
  %693 = vdwg.mxu0
  %v694 = vadd.f32 %v375, %v617
  %v695 = vadd.f32 %v378, %v620
  %v696 = vadd.f32 %v383, %v625
  %v697 = vadd.f32 %v386, %v628
  %v698 = vadd.f32 %v391, %v633
  %v699 = vadd.f32 %v394, %v636
  %v700 = vadd.f32 %v399, %v641
  %v701 = vadd.f32 %v402, %v644
  %v702 = vadd.f32 %v407, %v649
  %v703 = vadd.f32 %v410, %v652
  %v704 = vadd.f32 %v415, %v657
  %v705 = vadd.f32 %v418, %v660
  %v706 = vadd.f32 %v423, %v665
  %v707 = vadd.f32 %v426, %v668
  %v708 = vadd.f32 %v431, %v673
  %v709 = vadd.f32 %v434, %v676
  %v710 = vadd.f32 %v439, %v681
  %v711 = vadd.f32 %v442, %v684
  %v712 = vadd.f32 %v447, %v689
  %s713 = scalar_lea.vmem %s1, 24
  %v714 = vld [vmem:[%s713] sm:$0xf]
  %v715 = vld [vmem:[%s713 + $0x4] sm:$0x3]
  %vm726 = vcmask 1046528
  %v727 = vrot.slane %v452, 1
  %v728 = vrot.slane %v453, 1
  %v729 = vsel %vm726, %v727, %v728
  %v730 = vrot.slane %v454, 1
  %v731 = vsel %vm726, %v728, %v730
  %v732 = vrot.slane %v455, 1
  %v733 = vsel %vm726, %v730, %v732
  %v734 = vrot.slane %v456, 1
  %v735 = vsel %vm726, %v732, %v734
  %v736 = vrot.slane %v457, 1
  %v737 = vsel %vm726, %v734, %v736
  %v738 = vrot.slane %v458, 1
  %v739 = vsel %vm726, %v736, %v738
  %v740 = vrot.slane %v459, 1
  %v741 = vsel %vm726, %v738, %v740
  %v742 = vrot.slane %v460, 1
  %v743 = vsel %vm726, %v740, %v742
  %v744 = vrot.slane %v461, 1
  %v745 = vsel %vm726, %v742, %v744
  %v748 = vunpack.c.l.b16 %v714
  %v749 = vunpack.c.l.b16 %v715
  %v750 = vpack.c.b16 %v749, %v748
  %v752 = vsel %vm164, %v729, 0
  %v755 = vsel %vm164, %v731, 0
  %v758 = vsel %vm164, %v733, 0
  %v761 = vsel %vm164, %v735, 0
  %v764 = vsel %vm164, %v737, 0
  %v767 = vsel %vm164, %v739, 0
  %v770 = vsel %vm164, %v741, 0
  %v773 = vsel %vm164, %v743, 0
  %v776 = vsel %vm164, %v745, 0
  %v779 = vsel %vm164, %v744, 0
  %v782 = vsel %vm195, %v750, 0
  %784 = vmatprep.subr.bf16.mxu0 0
  %785 = vmatpush1.bf16.msra.mxu0 %v782
  %786 = vmatprep.subr.bf16.mxu0 0
  %787 = vmatpush1.bf16.msra.mxu0 0
  %788 = vmatprep.subr.bf16.mxu0 0
  %789 = vmatpush1.bf16.msra.mxu0 0
  %790 = vmatprep.subr.bf16.mxu0 0
  %791 = vmatpush1.bf16.msra.mxu0 0
  %792 = vmatprep.subr.bf16.mxu0 0
  %793 = vmatpush1.bf16.msra.mxu0 0
  %794 = vmatprep.subr.bf16.mxu0 0
  %795 = vmatpush1.bf16.msra.mxu0 0
  %796 = vmatprep.subr.bf16.mxu0 0
  %797 = vmatpush1.bf16.msra.mxu0 0
  %798 = vmatprep.subr.bf16.mxu0 0
  %799 = vmatpush1.bf16.msra.mxu0 0
  %800 = vmatprep.subr.bf16.mxu0 0
  %801 = vmatpush1.bf16.msra.mxu0 0
  %802 = vmatprep.subr.bf16.mxu0 0
  %803 = vmatpush1.bf16.msra.mxu0 0
  %804 = vmatprep.subr.bf16.mxu0 0
  %805 = vmatpush1.bf16.msra.mxu0 0
  %806 = vmatprep.subr.bf16.mxu0 0
  %807 = vmatpush1.bf16.msra.mxu0 0
  %808 = vmatprep.subr.bf16.mxu0 0
  %809 = vmatpush1.bf16.msra.mxu0 0
  %810 = vmatprep.subr.bf16.mxu0 0
  %811 = vmatpush1.bf16.msra.mxu0 0
  %812 = vmatprep.subr.bf16.mxu0 0
  %813 = vmatpush1.bf16.msra.mxu0 0
  %814 = vmatprep.subr.bf16.mxu0 0
  %815 = vmatpush1.bf16.msra.mxu0 0
  %816 = vmatprep.mubr.bf16.mxu0 0
  %817 = vmatmul.mubr.bf16.gmra.mrb[0].mxu0 %v752
  %v818 = vpop.f32.mrb[0].mxu0
  %v819 = vadd.f32 0.0, %v818
  %v820 = vpop.f32.mrb[0].mxu0
  %v821 = vpop.f32.mrb[0].mxu0
  %v822 = vadd.f32 0.0, %v821
  %v823 = vpop.f32.mrb[0].mxu0
  %824 = vmatprep.mubr.bf16.mxu0 0
  %825 = vmatmul.mubr.bf16.gmra.mrb[0].mxu0 %v755
  %v826 = vpop.f32.mrb[0].mxu0
  %v827 = vadd.f32 0.0, %v826
  %v828 = vpop.f32.mrb[0].mxu0
  %v829 = vpop.f32.mrb[0].mxu0
  %v830 = vadd.f32 0.0, %v829
  %v831 = vpop.f32.mrb[0].mxu0
  %832 = vmatprep.mubr.bf16.mxu0 0
  %833 = vmatmul.mubr.bf16.gmra.mrb[0].mxu0 %v758
  %v834 = vpop.f32.mrb[0].mxu0
  %v835 = vadd.f32 0.0, %v834
  %v836 = vpop.f32.mrb[0].mxu0
  %v837 = vpop.f32.mrb[0].mxu0
  %v838 = vadd.f32 0.0, %v837
  %v839 = vpop.f32.mrb[0].mxu0
  %840 = vmatprep.mubr.bf16.mxu0 0
  %841 = vmatmul.mubr.bf16.gmra.mrb[0].mxu0 %v761
  %v842 = vpop.f32.mrb[0].mxu0
  %v843 = vadd.f32 0.0, %v842
  %v844 = vpop.f32.mrb[0].mxu0
  %v845 = vpop.f32.mrb[0].mxu0
  %v846 = vadd.f32 0.0, %v845
  %v847 = vpop.f32.mrb[0].mxu0
  %848 = vmatprep.mubr.bf16.mxu0 0
  %849 = vmatmul.mubr.bf16.gmra.mrb[0].mxu0 %v764
  %v850 = vpop.f32.mrb[0].mxu0
  %v851 = vadd.f32 0.0, %v850
  %v852 = vpop.f32.mrb[0].mxu0
  %v853 = vpop.f32.mrb[0].mxu0
  %v854 = vadd.f32 0.0, %v853
  %v855 = vpop.f32.mrb[0].mxu0
  %856 = vmatprep.mubr.bf16.mxu0 0
  %857 = vmatmul.mubr.bf16.gmra.mrb[0].mxu0 %v767
  %v858 = vpop.f32.mrb[0].mxu0
  %v859 = vadd.f32 0.0, %v858
  %v860 = vpop.f32.mrb[0].mxu0
  %v861 = vpop.f32.mrb[0].mxu0
  %v862 = vadd.f32 0.0, %v861
  %v863 = vpop.f32.mrb[0].mxu0
  %864 = vmatprep.mubr.bf16.mxu0 0
  %865 = vmatmul.mubr.bf16.gmra.mrb[0].mxu0 %v770
  %v866 = vpop.f32.mrb[0].mxu0
  %v867 = vadd.f32 0.0, %v866
  %v868 = vpop.f32.mrb[0].mxu0
  %v869 = vpop.f32.mrb[0].mxu0
  %v870 = vadd.f32 0.0, %v869
  %v871 = vpop.f32.mrb[0].mxu0
  %872 = vmatprep.mubr.bf16.mxu0 0
  %873 = vmatmul.mubr.bf16.gmra.mrb[0].mxu0 %v773
  %v874 = vpop.f32.mrb[0].mxu0
  %v875 = vadd.f32 0.0, %v874
  %v876 = vpop.f32.mrb[0].mxu0
  %v877 = vpop.f32.mrb[0].mxu0
  %v878 = vadd.f32 0.0, %v877
  %v879 = vpop.f32.mrb[0].mxu0
  %880 = vmatprep.mubr.bf16.mxu0 0
  %881 = vmatmul.mubr.bf16.gmra.mrb[0].mxu0 %v776
  %v882 = vpop.f32.mrb[0].mxu0
  %v883 = vadd.f32 0.0, %v882
  %v884 = vpop.f32.mrb[0].mxu0
  %v885 = vpop.f32.mrb[0].mxu0
  %v886 = vadd.f32 0.0, %v885
  %v887 = vpop.f32.mrb[0].mxu0
  %888 = vmatprep.mubr.bf16.mxu0 0
  %889 = vmatmul.mubr.bf16.gmra.mrb[0].mxu0 %v779
  %v890 = vpop.f32.mrb[0].mxu0
  %v891 = vadd.f32 0.0, %v890
  %v892 = vpop.f32.mrb[0].mxu0
  %v893 = vpop.f32.mrb[0].mxu0
  %v894 = vpop.f32.mrb[0].mxu0
  %895 = vdwg.mxu0
  %v896 = vadd.f32 %v694, %v819
  %v897 = vadd.f32 %v695, %v822
  %v898 = vadd.f32 %v696, %v827
  %v899 = vadd.f32 %v697, %v830
  %v900 = vadd.f32 %v698, %v835
  %v901 = vadd.f32 %v699, %v838
  %v902 = vadd.f32 %v700, %v843
  %v903 = vadd.f32 %v701, %v846
  %v904 = vadd.f32 %v702, %v851
  %v905 = vadd.f32 %v703, %v854
  %v906 = vadd.f32 %v704, %v859
  %v907 = vadd.f32 %v705, %v862
  %v908 = vadd.f32 %v706, %v867
  %v909 = vadd.f32 %v707, %v870
  %v910 = vadd.f32 %v708, %v875
  %v911 = vadd.f32 %v709, %v878
  %v912 = vadd.f32 %v710, %v883
  %v913 = vadd.f32 %v711, %v886
  %v914 = vadd.f32 %v712, %v891
  %v915 = vld [vmem:[%s4] sm:$0xff]
  %v916 = vld [vmem:[%s4 + $0x8] sm:$0xff]
  %v917 = vld [vmem:[%s4 + $0x10] sm:$0xff]
  %v918 = vld [vmem:[%s4 + $0x18] sm:$0xff]
  %v919 = vld [vmem:[%s4 + $0x20] sm:$0xff]
  %v920 = vld [vmem:[%s4 + $0x28] sm:$0xff]
  %v921 = vld [vmem:[%s4 + $0x30] sm:$0xff]
  %v922 = vld [vmem:[%s4 + $0x38] sm:$0xff]
  %v923 = vld [vmem:[%s4 + $0x40] sm:$0xff]
  %v924 = vld [vmem:[%s4 + $0x48] sm:$0xff]
  %v925 = vld [vmem:[%s4 + $0x50] sm:$0xff]
  %v926 = vld [vmem:[%s4 + $0x58] sm:$0xff]
  %v927 = vld [vmem:[%s4 + $0x60] sm:$0xff]
  %v928 = vld [vmem:[%s4 + $0x68] sm:$0xff]
  %v929 = vld [vmem:[%s4 + $0x70] sm:$0xff]
  %v930 = vld [vmem:[%s4 + $0x78] sm:$0xff]
  %v931 = vld [vmem:[%s4 + $0x80] sm:$0xff]
  %v932 = vld [vmem:[%s4 + $0x88] sm:$0xff]
  %v933 = vld [vmem:[%s4 + $0x90] sm:$0xff]
  %935 = vset.pattern.permute.xlu0 0
  %936 = vperm.xlu0 %935, %v915
  %v937 = vpop.permute.xlu0 %936
  %940 = vset.pattern.permute.xlu0 0
  %941 = vperm.xlu0 %940, %v916
  %v942 = vpop.permute.xlu0 %941
  %945 = vset.pattern.permute.xlu0 0
  %946 = vperm.xlu0 %945, %v917
  %v947 = vpop.permute.xlu0 %946
  %950 = vset.pattern.permute.xlu0 0
  %951 = vperm.xlu0 %950, %v918
  %v952 = vpop.permute.xlu0 %951
  %955 = vset.pattern.permute.xlu0 0
  %956 = vperm.xlu0 %955, %v919
  %v957 = vpop.permute.xlu0 %956
  %960 = vset.pattern.permute.xlu0 0
  %961 = vperm.xlu0 %960, %v920
  %v962 = vpop.permute.xlu0 %961
  %965 = vset.pattern.permute.xlu0 0
  %966 = vperm.xlu0 %965, %v921
  %v967 = vpop.permute.xlu0 %966
  %970 = vset.pattern.permute.xlu0 0
  %971 = vperm.xlu0 %970, %v922
  %v972 = vpop.permute.xlu0 %971
  %975 = vset.pattern.permute.xlu0 0
  %976 = vperm.xlu0 %975, %v923
  %v977 = vpop.permute.xlu0 %976
  %980 = vset.pattern.permute.xlu0 0
  %981 = vperm.xlu0 %980, %v924
  %v982 = vpop.permute.xlu0 %981
  %985 = vset.pattern.permute.xlu0 0
  %986 = vperm.xlu0 %985, %v925
  %v987 = vpop.permute.xlu0 %986
  %990 = vset.pattern.permute.xlu0 0
  %991 = vperm.xlu0 %990, %v926
  %v992 = vpop.permute.xlu0 %991
  %995 = vset.pattern.permute.xlu0 0
  %996 = vperm.xlu0 %995, %v927
  %v997 = vpop.permute.xlu0 %996
  %1000 = vset.pattern.permute.xlu0 0
  %1001 = vperm.xlu0 %1000, %v928
  %v1002 = vpop.permute.xlu0 %1001
  %1005 = vset.pattern.permute.xlu0 0
  %1006 = vperm.xlu0 %1005, %v929
  %v1007 = vpop.permute.xlu0 %1006
  %1010 = vset.pattern.permute.xlu0 0
  %1011 = vperm.xlu0 %1010, %v930
  %v1012 = vpop.permute.xlu0 %1011
  %1015 = vset.pattern.permute.xlu0 0
  %1016 = vperm.xlu0 %1015, %v931
  %v1017 = vpop.permute.xlu0 %1016
  %1020 = vset.pattern.permute.xlu0 0
  %1021 = vperm.xlu0 %1020, %v932
  %v1022 = vpop.permute.xlu0 %1021
  %1025 = vset.pattern.permute.xlu0 0
  %1026 = vperm.xlu0 %1025, %v933
  %v1027 = vpop.permute.xlu0 %1026
  %v1029 = vmul.f32 %v896, %v937
  %v1030 = vmul.f32 %v897, %v942
  %v1031 = vmul.f32 %v898, %v947
  %v1032 = vmul.f32 %v899, %v952
  %v1033 = vmul.f32 %v900, %v957
  %v1034 = vmul.f32 %v901, %v962
  %v1035 = vmul.f32 %v902, %v967
  %v1036 = vmul.f32 %v903, %v972
  %v1037 = vmul.f32 %v904, %v977
  %v1038 = vmul.f32 %v905, %v982
  %v1039 = vmul.f32 %v906, %v987
  %v1040 = vmul.f32 %v907, %v992
  %v1041 = vmul.f32 %v908, %v997
  %v1042 = vmul.f32 %v909, %v1002
  %v1043 = vmul.f32 %v910, %v1007
  %v1044 = vmul.f32 %v911, %v1012
  %v1045 = vmul.f32 %v912, %v1017
  %v1046 = vmul.f32 %v913, %v1022
  %v1047 = vmul.f32 %v914, %v1027
  %vm1048 = vcmask 523264
  %v1049 = vsel %vm1048, %v1029, 0.0
  %v1050 = vsel %vm1048, %v1030, 0.0
  %v1051 = vadd.f32 %v1049, %v1050
  %v1052 = vsel %vm1048, %v1031, 0.0
  %v1053 = vadd.f32 %v1051, %v1052
  %v1054 = vsel %vm1048, %v1032, 0.0
  %v1055 = vadd.f32 %v1053, %v1054
  %v1056 = vsel %vm1048, %v1033, 0.0
  %v1057 = vadd.f32 %v1055, %v1056
  %v1058 = vsel %vm1048, %v1034, 0.0
  %v1059 = vadd.f32 %v1057, %v1058
  %v1060 = vsel %vm1048, %v1035, 0.0
  %v1061 = vadd.f32 %v1059, %v1060
  %v1062 = vsel %vm1048, %v1036, 0.0
  %v1063 = vadd.f32 %v1061, %v1062
  %v1064 = vsel %vm1048, %v1037, 0.0
  %v1065 = vadd.f32 %v1063, %v1064
  %v1066 = vsel %vm1048, %v1038, 0.0
  %v1067 = vadd.f32 %v1065, %v1066
  %v1068 = vsel %vm1048, %v1039, 0.0
  %v1069 = vadd.f32 %v1067, %v1068
  %v1070 = vsel %vm1048, %v1040, 0.0
  %v1071 = vadd.f32 %v1069, %v1070
  %v1072 = vsel %vm1048, %v1041, 0.0
  %v1073 = vadd.f32 %v1071, %v1072
  %v1074 = vsel %vm1048, %v1042, 0.0
  %v1075 = vadd.f32 %v1073, %v1074
  %v1076 = vsel %vm1048, %v1043, 0.0
  %v1077 = vadd.f32 %v1075, %v1076
  %v1078 = vsel %vm1048, %v1044, 0.0
  %v1079 = vadd.f32 %v1077, %v1078
  %v1080 = vsel %vm1048, %v1045, 0.0
  %v1081 = vadd.f32 %v1079, %v1080
  %v1082 = vsel %vm1048, %v1046, 0.0
  %v1083 = vadd.f32 %v1081, %v1082
  %v1084 = vsel %vm1048, %v1047, 0.0
  %v1085 = vadd.f32 %v1083, %v1084
  %v1086 = vrot.slane %v1085, 4
  %v1087 = vadd.f32 %v1085, %v1086
  %v1088 = vrot.slane %v1087, 2
  %v1089 = vadd.f32 %v1087, %v1088
  %v1090 = vrot.slane %v1089, 1
  %v1091 = vadd.f32 %v1089, %v1090
  %v1092 = vmul.f32 %v1091, 0.0078125
  %v1093 = vsub.f32 %v896, %v1092
  %v1094 = vsub.f32 %v897, %v1092
  %v1095 = vsub.f32 %v898, %v1092
  %v1096 = vsub.f32 %v899, %v1092
  %v1097 = vsub.f32 %v900, %v1092
  %v1098 = vsub.f32 %v901, %v1092
  %v1099 = vsub.f32 %v902, %v1092
  %v1100 = vsub.f32 %v903, %v1092
  %v1101 = vsub.f32 %v904, %v1092
  %v1102 = vsub.f32 %v905, %v1092
  %v1103 = vsub.f32 %v906, %v1092
  %v1104 = vsub.f32 %v907, %v1092
  %v1105 = vsub.f32 %v908, %v1092
  %v1106 = vsub.f32 %v909, %v1092
  %v1107 = vsub.f32 %v910, %v1092
  %v1108 = vsub.f32 %v911, %v1092
  %v1109 = vsub.f32 %v912, %v1092
  %v1110 = vsub.f32 %v913, %v1092
  %v1111 = vsub.f32 %v914, %v1092
  %v1112 = vmul.f32 %v1093, %v937
  %v1113 = vmul.f32 %v1094, %v942
  %v1114 = vmul.f32 %v1095, %v947
  %v1115 = vmul.f32 %v1096, %v952
  %v1116 = vmul.f32 %v1097, %v957
  %v1117 = vmul.f32 %v1098, %v962
  %v1118 = vmul.f32 %v1099, %v967
  %v1119 = vmul.f32 %v1100, %v972
  %v1120 = vmul.f32 %v1101, %v977
  %v1121 = vmul.f32 %v1102, %v982
  %v1122 = vmul.f32 %v1103, %v987
  %v1123 = vmul.f32 %v1104, %v992
  %v1124 = vmul.f32 %v1105, %v997
  %v1125 = vmul.f32 %v1106, %v1002
  %v1126 = vmul.f32 %v1107, %v1007
  %v1127 = vmul.f32 %v1108, %v1012
  %v1128 = vmul.f32 %v1109, %v1017
  %v1129 = vmul.f32 %v1110, %v1022
  %v1130 = vmul.f32 %v1111, %v1027
  %v1131 = vmul.f32 %v1112, %v1112
  %v1132 = vmul.f32 %v1113, %v1113
  %v1133 = vmul.f32 %v1114, %v1114
  %v1134 = vmul.f32 %v1115, %v1115
  %v1135 = vmul.f32 %v1116, %v1116
  %v1136 = vmul.f32 %v1117, %v1117
  %v1137 = vmul.f32 %v1118, %v1118
  %v1138 = vmul.f32 %v1119, %v1119
  %v1139 = vmul.f32 %v1120, %v1120
  %v1140 = vmul.f32 %v1121, %v1121
  %v1141 = vmul.f32 %v1122, %v1122
  %v1142 = vmul.f32 %v1123, %v1123
  %v1143 = vmul.f32 %v1124, %v1124
  %v1144 = vmul.f32 %v1125, %v1125
  %v1145 = vmul.f32 %v1126, %v1126
  %v1146 = vmul.f32 %v1127, %v1127
  %v1147 = vmul.f32 %v1128, %v1128
  %v1148 = vmul.f32 %v1129, %v1129
  %v1149 = vmul.f32 %v1130, %v1130
  %v1150 = vsel %vm1048, %v1131, 0.0
  %v1151 = vsel %vm1048, %v1132, 0.0
  %v1152 = vadd.f32 %v1150, %v1151
  %v1153 = vsel %vm1048, %v1133, 0.0
  %v1154 = vadd.f32 %v1152, %v1153
  %v1155 = vsel %vm1048, %v1134, 0.0
  %v1156 = vadd.f32 %v1154, %v1155
  %v1157 = vsel %vm1048, %v1135, 0.0
  %v1158 = vadd.f32 %v1156, %v1157
  %v1159 = vsel %vm1048, %v1136, 0.0
  %v1160 = vadd.f32 %v1158, %v1159
  %v1161 = vsel %vm1048, %v1137, 0.0
  %v1162 = vadd.f32 %v1160, %v1161
  %v1163 = vsel %vm1048, %v1138, 0.0
  %v1164 = vadd.f32 %v1162, %v1163
  %v1165 = vsel %vm1048, %v1139, 0.0
  %v1166 = vadd.f32 %v1164, %v1165
  %v1167 = vsel %vm1048, %v1140, 0.0
  %v1168 = vadd.f32 %v1166, %v1167
  %v1169 = vsel %vm1048, %v1141, 0.0
  %v1170 = vadd.f32 %v1168, %v1169
  %v1171 = vsel %vm1048, %v1142, 0.0
  %v1172 = vadd.f32 %v1170, %v1171
  %v1173 = vsel %vm1048, %v1143, 0.0
  %v1174 = vadd.f32 %v1172, %v1173
  %v1175 = vsel %vm1048, %v1144, 0.0
  %v1176 = vadd.f32 %v1174, %v1175
  %v1177 = vsel %vm1048, %v1145, 0.0
  %v1178 = vadd.f32 %v1176, %v1177
  %v1179 = vsel %vm1048, %v1146, 0.0
  %v1180 = vadd.f32 %v1178, %v1179
  %v1181 = vsel %vm1048, %v1147, 0.0
  %v1182 = vadd.f32 %v1180, %v1181
  %v1183 = vsel %vm1048, %v1148, 0.0
  %v1184 = vadd.f32 %v1182, %v1183
  %v1185 = vsel %vm1048, %v1149, 0.0
  %v1186 = vadd.f32 %v1184, %v1185
  %v1187 = vrot.slane %v1186, 4
  %v1188 = vadd.f32 %v1186, %v1187
  %v1189 = vrot.slane %v1188, 2
  %v1190 = vadd.f32 %v1188, %v1189
  %v1191 = vrot.slane %v1190, 1
  %v1192 = vadd.f32 %v1190, %v1191
  %v1193 = vmul.f32 %v1192, 0.0078125
  %v1194 = vadd.f32 %v1193, 1e-05
  %v1195 = vrsqrt.pop %v1194
  %v1196 = vmul.f32 %v1093, %v1195
  %v1197 = vmul.f32 %v1094, %v1195
  %v1198 = vmul.f32 %v1095, %v1195
  %v1199 = vmul.f32 %v1096, %v1195
  %v1200 = vmul.f32 %v1097, %v1195
  %v1201 = vmul.f32 %v1098, %v1195
  %v1202 = vmul.f32 %v1099, %v1195
  %v1203 = vmul.f32 %v1100, %v1195
  %v1204 = vmul.f32 %v1101, %v1195
  %v1205 = vmul.f32 %v1102, %v1195
  %v1206 = vmul.f32 %v1103, %v1195
  %v1207 = vmul.f32 %v1104, %v1195
  %v1208 = vmul.f32 %v1105, %v1195
  %v1209 = vmul.f32 %v1106, %v1195
  %v1210 = vmul.f32 %v1107, %v1195
  %v1211 = vmul.f32 %v1108, %v1195
  %v1212 = vmul.f32 %v1109, %v1195
  %v1213 = vmul.f32 %v1110, %v1195
  %v1214 = vmul.f32 %v1111, %v1195
  %v1215 = vld [vmem:[%s2] sm:$0x1]
  %v1217 = vlaneseq
  %v1218 = vshrl.u32 %v1217, 7
  %v1219 = vsub.s32 0, %v1218
  %v1220 = vrot.slane %v1215, %v1219
  %v1222 = vmul.f32 %v1196, %v1220
  %v1223 = vmul.f32 %v1197, %v1220
  %v1224 = vmul.f32 %v1198, %v1220
  %v1225 = vmul.f32 %v1199, %v1220
  %v1226 = vmul.f32 %v1200, %v1220
  %v1227 = vmul.f32 %v1201, %v1220
  %v1228 = vmul.f32 %v1202, %v1220
  %v1229 = vmul.f32 %v1203, %v1220
  %v1230 = vmul.f32 %v1204, %v1220
  %v1231 = vmul.f32 %v1205, %v1220
  %v1232 = vmul.f32 %v1206, %v1220
  %v1233 = vmul.f32 %v1207, %v1220
  %v1234 = vmul.f32 %v1208, %v1220
  %v1235 = vmul.f32 %v1209, %v1220
  %v1236 = vmul.f32 %v1210, %v1220
  %v1237 = vmul.f32 %v1211, %v1220
  %v1238 = vmul.f32 %v1212, %v1220
  %v1239 = vmul.f32 %v1213, %v1220
  %v1240 = vmul.f32 %v1214, %v1220
  %v1241 = vld [vmem:[%s3] sm:$0x1]
  %v1243 = vlaneseq
  %v1244 = vshrl.u32 %v1243, 7
  %v1245 = vsub.s32 0, %v1244
  %v1246 = vrot.slane %v1241, %v1245
  %v1248 = vadd.f32 %v1222, %v1246
  %v1249 = vadd.f32 %v1223, %v1246
  %v1250 = vadd.f32 %v1224, %v1246
  %v1251 = vadd.f32 %v1225, %v1246
  %v1252 = vadd.f32 %v1226, %v1246
  %v1253 = vadd.f32 %v1227, %v1246
  %v1254 = vadd.f32 %v1228, %v1246
  %v1255 = vadd.f32 %v1229, %v1246
  %v1256 = vadd.f32 %v1230, %v1246
  %v1257 = vadd.f32 %v1231, %v1246
  %v1258 = vadd.f32 %v1232, %v1246
  %v1259 = vadd.f32 %v1233, %v1246
  %v1260 = vadd.f32 %v1234, %v1246
  %v1261 = vadd.f32 %v1235, %v1246
  %v1262 = vadd.f32 %v1236, %v1246
  %v1263 = vadd.f32 %v1237, %v1246
  %v1264 = vadd.f32 %v1238, %v1246
  %v1265 = vadd.f32 %v1239, %v1246
  %v1266 = vadd.f32 %v1240, %v1246
  %1267 = vst.msk [vmem:[%s5] sm:$0xff] %vm1048, %v1248
  %1268 = vst.msk [vmem:[%s5 + $0x8] sm:$0xff] %vm1048, %v1249
  %1269 = vst.msk [vmem:[%s5 + $0x10] sm:$0xff] %vm1048, %v1250
  %1270 = vst.msk [vmem:[%s5 + $0x18] sm:$0xff] %vm1048, %v1251
  %1271 = vst.msk [vmem:[%s5 + $0x20] sm:$0xff] %vm1048, %v1252
  %1272 = vst.msk [vmem:[%s5 + $0x28] sm:$0xff] %vm1048, %v1253
  %1273 = vst.msk [vmem:[%s5 + $0x30] sm:$0xff] %vm1048, %v1254
  %1274 = vst.msk [vmem:[%s5 + $0x38] sm:$0xff] %vm1048, %v1255
  %1275 = vst.msk [vmem:[%s5 + $0x40] sm:$0xff] %vm1048, %v1256
  %1276 = vst.msk [vmem:[%s5 + $0x48] sm:$0xff] %vm1048, %v1257
  %1277 = vst.msk [vmem:[%s5 + $0x50] sm:$0xff] %vm1048, %v1258
  %1278 = vst.msk [vmem:[%s5 + $0x58] sm:$0xff] %vm1048, %v1259
  %1279 = vst.msk [vmem:[%s5 + $0x60] sm:$0xff] %vm1048, %v1260
  %1280 = vst.msk [vmem:[%s5 + $0x68] sm:$0xff] %vm1048, %v1261
  %1281 = vst.msk [vmem:[%s5 + $0x70] sm:$0xff] %vm1048, %v1262
  %1282 = vst.msk [vmem:[%s5 + $0x78] sm:$0xff] %vm1048, %v1263
  %1283 = vst.msk [vmem:[%s5 + $0x80] sm:$0xff] %vm1048, %v1264
  %1284 = vst.msk [vmem:[%s5 + $0x88] sm:$0xff] %vm1048, %v1265
  %1285 = vst.msk [vmem:[%s5 + $0x90] sm:$0xff] %vm1048, %v1266
  // Predicated region
  $region22: #{encoder_forward.4} parent=0 // pred_check
    _
  $region23: #{encoder_forward.4} parent=0 // pred_check_branch
    %1287 = sbr.rel (0) target = $region25
  $region24: #{encoder_forward.4} parent=0 // pred_region
    _
  $region25: #{encoder_forward.4} parent=0 // pred_fallthru
    _
  // Predicated region
  $region26: #{encoder_forward.4} parent=0 // pred_check
    _
  $region27: #{encoder_forward.4} parent=0 // pred_check_branch
    %1289 = sbr.rel (0) target = $region29
  $region28: #{encoder_forward.4} parent=0 // pred_region
    _
  $region29: #{encoder_forward.4} parent=0 // pred_fallthru
    _

// kernel: encoder_forward.5
$region0: #{encoder_forward.5}
  #allocation0 [shape = 'u32[]', space=smem, size = 0x4, offset = 0x4, fixed_abs, tag = 'smem constant byte address 0x4 - core index']
  #allocation1 [shape = 'u32[144,128]{1,0:T(1,128)}', space=vmem, size = 0x12000, scoped, tag = 'internal scratch']
  %s0 = inlined_call_operand.vmem [shape: f32[50,256], index: 0, kind: input, shape index: {}]
  %s1 = inlined_call_operand.vmem [shape: bf16[4,256,128], index: 1, kind: input, shape index: {}]
  %s2 = inlined_call_operand.vmem [shape: f32[1,128], index: 2, kind: input, shape index: {}]
  %s3 = inlined_call_operand.vmem [shape: f32[1,128], index: 3, kind: input, shape index: {}]
  %s4 = inlined_call_operand.vmem [shape: f32[44,1], index: 4, kind: input, shape index: {}]
  %s5 = inlined_call_operand.vmem [shape: f32[44,128], index: 5, kind: output, shape index: {}]
  %s6 = sld [smem:[#allocation0]]
  $region30: #{encoder_forward.5} parent=0
    _
  %s8 = ssub.s32 1, %s6
  %s9 = scalar_select 0, %s8, %s6
  // Predicated region
  $region2: #{encoder_forward.5} parent=0 // pred_check
    _
  $region3: #{encoder_forward.5} parent=0 // pred_check_branch
    %11 = sbr.rel (0) target = $region5
  $region4: #{encoder_forward.5} parent=0 // pred_region
    _
  $region5: #{encoder_forward.5} parent=0 // pred_fallthru
    _
  // Predicated region
  $region6: #{encoder_forward.5} parent=0 // pred_check
    _
  $region7: #{encoder_forward.5} parent=0 // pred_check_branch
    %13 = sbr.rel (0) target = $region9
  $region8: #{encoder_forward.5} parent=0 // pred_region
    _
  $region9: #{encoder_forward.5} parent=0 // pred_fallthru
    _
  // Predicated region
  $region10: #{encoder_forward.5} parent=0 // pred_check
    _
  $region11: #{encoder_forward.5} parent=0 // pred_check_branch
    %15 = sbr.rel (0) target = $region13
  $region12: #{encoder_forward.5} parent=0 // pred_region
    _
  $region13: #{encoder_forward.5} parent=0 // pred_fallthru
    _
  // Predicated region
  $region14: #{encoder_forward.5} parent=0 // pred_check
    _
  $region15: #{encoder_forward.5} parent=0 // pred_check_branch
    %17 = sbr.rel (0) target = $region17
  $region16: #{encoder_forward.5} parent=0 // pred_region
    _
  $region17: #{encoder_forward.5} parent=0 // pred_fallthru
    _
  // Predicated region
  $region18: #{encoder_forward.5} parent=0 // pred_check
    _
  $region19: #{encoder_forward.5} parent=0 // pred_check_branch
    %19 = sbr.rel (0) target = $region21
  $region20: #{encoder_forward.5} parent=0 // pred_region
    _
  $region21: #{encoder_forward.5} parent=0 // pred_fallthru
    _
  %v21 = vld [vmem:[%s0] sm:$0xff]
  %v22 = vld [vmem:[%s0 + $0x8] sm:$0xff]
  %v23 = vld [vmem:[%s0 + $0x10] sm:$0xff]
  %v24 = vld [vmem:[%s0 + $0x18] sm:$0xff]
  %v25 = vld [vmem:[%s0 + $0x20] sm:$0xff]
  %v26 = vld [vmem:[%s0 + $0x28] sm:$0xff]
  %v27 = vld [vmem:[%s0 + $0x30] sm:$0xff]
  %v28 = vld [vmem:[%s0 + $0x38] sm:$0xff]
  %v29 = vld [vmem:[%s0 + $0x40] sm:$0xff]
  %v30 = vld [vmem:[%s0 + $0x48] sm:$0xff]
  %v31 = vld [vmem:[%s0 + $0x50] sm:$0xff]
  %v32 = vld [vmem:[%s0 + $0x58] sm:$0xff]
  %v33 = vld [vmem:[%s0 + $0x60] sm:$0x3]
  %v34 = vld [vmem:[%s0 + $0x68] sm:$0x3]
  %v35 = vmax.f32 %v21, 0.0
  %v36 = vmax.f32 %v22, 0.0
  %v37 = vmax.f32 %v23, 0.0
  %v38 = vmax.f32 %v24, 0.0
  %v39 = vmax.f32 %v25, 0.0
  %v40 = vmax.f32 %v26, 0.0
  %v41 = vmax.f32 %v27, 0.0
  %v42 = vmax.f32 %v28, 0.0
  %v43 = vmax.f32 %v29, 0.0
  %v44 = vmax.f32 %v30, 0.0
  %v45 = vmax.f32 %v31, 0.0
  %v46 = vmax.f32 %v32, 0.0
  %v47 = vmax.f32 %v33, 0.0
  %v48 = vmax.f32 %v34, 0.0
  %v49 = vpack.c.bf16 %v37, %v35
  %v50 = vpack.c.bf16 %v38, %v36
  %v51 = vpack.c.bf16 %v41, %v39
  %v52 = vpack.c.bf16 %v42, %v40
  %v53 = vpack.c.bf16 %v45, %v43
  %v54 = vpack.c.bf16 %v46, %v44
  %v55 = vld [vmem:[%s1] sm:$0xf]
  %v56 = vld [vmem:[%s1 + $0x4] sm:$0xf]
  %v57 = vld [vmem:[%s1 + $0x8] sm:$0xf]
  %v58 = vld [vmem:[%s1 + $0xc] sm:$0xf]
  %v59 = vld [vmem:[%s1 + $0x10] sm:$0xf]
  %v60 = vld [vmem:[%s1 + $0x14] sm:$0xf]
  %v61 = vld [vmem:[%s1 + $0x18] sm:$0xf]
  %v62 = vld [vmem:[%s1 + $0x1c] sm:$0xf]
  %v63 = vld [vmem:[%s1 + $0x20] sm:$0xf]
  %v64 = vld [vmem:[%s1 + $0x24] sm:$0xf]
  %v65 = vld [vmem:[%s1 + $0x28] sm:$0xf]
  %v66 = vld [vmem:[%s1 + $0x2c] sm:$0xf]
  %v67 = vld [vmem:[%s1 + $0x30] sm:$0xf]
  %v68 = vld [vmem:[%s1 + $0x34] sm:$0xf]
  %v69 = vld [vmem:[%s1 + $0x38] sm:$0xf]
  %v70 = vld [vmem:[%s1 + $0x3c] sm:$0xf]
  %v71 = vld [vmem:[%s1 + $0x40] sm:$0xf]
  %v72 = vld [vmem:[%s1 + $0x44] sm:$0xf]
  %v73 = vld [vmem:[%s1 + $0x48] sm:$0xf]
  %v74 = vld [vmem:[%s1 + $0x4c] sm:$0xf]
  %v75 = vld [vmem:[%s1 + $0x50] sm:$0xf]
  %v76 = vld [vmem:[%s1 + $0x54] sm:$0xf]
  %v77 = vld [vmem:[%s1 + $0x58] sm:$0xf]
  %v78 = vld [vmem:[%s1 + $0x5c] sm:$0xf]
  %v79 = vld [vmem:[%s1 + $0x60] sm:$0xf]
  %v80 = vld [vmem:[%s1 + $0x64] sm:$0xf]
  %v81 = vld [vmem:[%s1 + $0x68] sm:$0xf]
  %v82 = vld [vmem:[%s1 + $0x6c] sm:$0xf]
  %v83 = vld [vmem:[%s1 + $0x70] sm:$0xf]
  %v84 = vld [vmem:[%s1 + $0x74] sm:$0xf]
  %v85 = vld [vmem:[%s1 + $0x78] sm:$0xf]
  %v86 = vld [vmem:[%s1 + $0x7c] sm:$0xf]
  %s87 = scalar_lea.vmem %s1, 128
  %v88 = vld [vmem:[%s87] sm:$0xf]
  %v89 = vld [vmem:[%s87 + $0x4] sm:$0xf]
  %v90 = vld [vmem:[%s87 + $0x8] sm:$0xf]
  %v91 = vld [vmem:[%s87 + $0xc] sm:$0xf]
  %v92 = vld [vmem:[%s87 + $0x10] sm:$0xf]
  %v93 = vld [vmem:[%s87 + $0x14] sm:$0xf]
  %v94 = vld [vmem:[%s87 + $0x18] sm:$0xf]
  %v95 = vld [vmem:[%s87 + $0x1c] sm:$0xf]
  %v96 = vld [vmem:[%s87 + $0x20] sm:$0xf]
  %v97 = vld [vmem:[%s87 + $0x24] sm:$0xf]
  %v98 = vld [vmem:[%s87 + $0x28] sm:$0xf]
  %v99 = vld [vmem:[%s87 + $0x2c] sm:$0xf]
  %v100 = vld [vmem:[%s87 + $0x30] sm:$0xf]
  %v101 = vld [vmem:[%s87 + $0x34] sm:$0xf]
  %v102 = vld [vmem:[%s87 + $0x38] sm:$0xf]
  %v103 = vld [vmem:[%s87 + $0x3c] sm:$0xf]
  %v104 = vld [vmem:[%s87 + $0x40] sm:$0xf]
  %v105 = vld [vmem:[%s87 + $0x44] sm:$0xf]
  %v106 = vld [vmem:[%s87 + $0x48] sm:$0xf]
  %v107 = vld [vmem:[%s87 + $0x4c] sm:$0xf]
  %v108 = vld [vmem:[%s87 + $0x50] sm:$0xf]
  %v109 = vld [vmem:[%s87 + $0x54] sm:$0xf]
  %v110 = vld [vmem:[%s87 + $0x58] sm:$0xf]
  %v111 = vld [vmem:[%s87 + $0x5c] sm:$0xf]
  %v112 = vld [vmem:[%s87 + $0x60] sm:$0xf]
  %v113 = vld [vmem:[%s87 + $0x64] sm:$0xf]
  %v114 = vld [vmem:[%s87 + $0x68] sm:$0xf]
  %v115 = vld [vmem:[%s87 + $0x6c] sm:$0xf]
  %v116 = vld [vmem:[%s87 + $0x70] sm:$0xf]
  %v117 = vld [vmem:[%s87 + $0x74] sm:$0xf]
  %v118 = vld [vmem:[%s87 + $0x78] sm:$0xf]
  %v119 = vld [vmem:[%s87 + $0x7c] sm:$0xf]
  %vm120 = vsmask.f32 7424
  %v122 = vshrl.u32 %v49, 16
  %v124 = vshll.u32 %v49, 16
  %v126 = vrot.slane %v124, 1
  %v127 = vor.u32 %v122, %v126
  %v129 = vshll.u32 %v51, 16
  %v131 = vrot.slane %v129, 1
  %v132 = vsel %vm120, %v127, %v131
  %v134 = vshrl.u32 %v50, 16
  %v136 = vshll.u32 %v50, 16
  %v138 = vrot.slane %v136, 1
  %v139 = vor.u32 %v134, %v138
  %v141 = vshll.u32 %v52, 16
  %v143 = vrot.slane %v141, 1
  %v144 = vsel %vm120, %v139, %v143
  %v145 = vshrl.u32 %v51, 16
  %v147 = vor.u32 %v145, %v131
  %v149 = vshll.u32 %v53, 16
  %v151 = vrot.slane %v149, 1
  %v152 = vsel %vm120, %v147, %v151
  %v153 = vshrl.u32 %v52, 16
  %v155 = vor.u32 %v153, %v143
  %v157 = vshll.u32 %v54, 16
  %v159 = vrot.slane %v157, 1
  %v160 = vsel %vm120, %v155, %v159
  %v161 = vshrl.u32 %v53, 16
  %v163 = vor.u32 %v161, %v151
  %v164 = vshrl.u32 %v54, 16
  %v166 = vor.u32 %v164, %v159
  %v205 = vunpack.c.l.b16 %v88
  %v206 = vunpack.c.l.b16 %v89
  %v207 = vunpack.c.l.b16 %v90
  %v208 = vunpack.c.l.b16 %v91
  %v209 = vunpack.c.l.b16 %v92
  %v210 = vunpack.c.l.b16 %v93
  %v211 = vunpack.c.l.b16 %v94
  %v212 = vunpack.c.l.b16 %v95
  %v213 = vunpack.c.l.b16 %v96
  %v214 = vunpack.c.l.b16 %v97
  %v215 = vunpack.c.l.b16 %v98
  %v216 = vunpack.c.l.b16 %v99
  %v217 = vunpack.c.l.b16 %v100
  %v218 = vunpack.c.l.b16 %v101
  %v219 = vunpack.c.l.b16 %v102
  %v220 = vunpack.c.l.b16 %v103
  %v221 = vunpack.c.l.b16 %v104
  %v222 = vunpack.c.l.b16 %v105
  %v223 = vunpack.c.l.b16 %v106
  %v224 = vunpack.c.l.b16 %v107
  %v225 = vunpack.c.l.b16 %v108
  %v226 = vunpack.c.l.b16 %v109
  %v227 = vunpack.c.l.b16 %v110
  %v228 = vunpack.c.l.b16 %v111
  %v229 = vunpack.c.l.b16 %v112
  %v230 = vunpack.c.l.b16 %v113
  %v231 = vunpack.c.l.b16 %v114
  %v232 = vunpack.c.l.b16 %v115
  %v233 = vunpack.c.l.b16 %v116
  %v234 = vunpack.c.l.b16 %v117
  %v235 = vunpack.c.l.b16 %v118
  %v236 = vunpack.c.l.b16 %v119
  %v237 = vpack.c.b16 %v206, %v205
  %v238 = vpack.c.b16 %v208, %v207
  %v239 = vpack.c.b16 %v210, %v209
  %v240 = vpack.c.b16 %v212, %v211
  %v241 = vpack.c.b16 %v214, %v213
  %v242 = vpack.c.b16 %v216, %v215
  %v243 = vpack.c.b16 %v218, %v217
  %v244 = vpack.c.b16 %v220, %v219
  %v245 = vpack.c.b16 %v222, %v221
  %v246 = vpack.c.b16 %v224, %v223
  %v247 = vpack.c.b16 %v226, %v225
  %v248 = vpack.c.b16 %v228, %v227
  %v249 = vpack.c.b16 %v230, %v229
  %v250 = vpack.c.b16 %v232, %v231
  %v251 = vpack.c.b16 %v234, %v233
  %v252 = vpack.c.b16 %v236, %v235
  %269 = vmatprep.subr.bf16.mxu0 0
  %270 = vmatpush1.bf16.msra.mxu0 %v237
  %271 = vmatprep.subr.bf16.mxu0 0
  %272 = vmatpush1.bf16.msra.mxu0 %v238
  %273 = vmatprep.subr.bf16.mxu0 0
  %274 = vmatpush1.bf16.msra.mxu0 %v239
  %275 = vmatprep.subr.bf16.mxu0 0
  %276 = vmatpush1.bf16.msra.mxu0 %v240
  %277 = vmatprep.subr.bf16.mxu0 0
  %278 = vmatpush1.bf16.msra.mxu0 %v241
  %279 = vmatprep.subr.bf16.mxu0 0
  %280 = vmatpush1.bf16.msra.mxu0 %v242
  %281 = vmatprep.subr.bf16.mxu0 0
  %282 = vmatpush1.bf16.msra.mxu0 %v243
  %283 = vmatprep.subr.bf16.mxu0 0
  %284 = vmatpush1.bf16.msra.mxu0 %v244
  %285 = vmatprep.subr.bf16.mxu0 0
  %286 = vmatpush1.bf16.msra.mxu0 %v245
  %287 = vmatprep.subr.bf16.mxu0 0
  %288 = vmatpush1.bf16.msra.mxu0 %v246
  %289 = vmatprep.subr.bf16.mxu0 0
  %290 = vmatpush1.bf16.msra.mxu0 %v247
  %291 = vmatprep.subr.bf16.mxu0 0
  %292 = vmatpush1.bf16.msra.mxu0 %v248
  %293 = vmatprep.subr.bf16.mxu0 0
  %294 = vmatpush1.bf16.msra.mxu0 %v249
  %295 = vmatprep.subr.bf16.mxu0 0
  %296 = vmatpush1.bf16.msra.mxu0 %v250
  %297 = vmatprep.subr.bf16.mxu0 0
  %298 = vmatpush1.bf16.msra.mxu0 %v251
  %299 = vmatprep.subr.bf16.mxu0 0
  %300 = vmatpush1.bf16.msra.mxu0 %v252
  %301 = vmatprep.mubr.bf16.mxu0 %v144
  %302 = vmatmul.mubr.bf16.gmra.mrb[0].mxu0 %v132
  %v303 = vpop.f32.mrb[0].mxu0
  %v304 = vadd.f32 0.0, %v303
  %v305 = vpop.f32.mrb[0].mxu0
  %v306 = vpop.f32.mrb[0].mxu0
  %v307 = vadd.f32 0.0, %v306
  %v308 = vpop.f32.mrb[0].mxu0
  %309 = vmatprep.mubr.bf16.mxu0 %v160
  %310 = vmatmul.mubr.bf16.gmra.mrb[0].mxu0 %v152
  %v311 = vpop.f32.mrb[0].mxu0
  %v312 = vadd.f32 0.0, %v311
  %v313 = vpop.f32.mrb[0].mxu0
  %v314 = vpop.f32.mrb[0].mxu0
  %v315 = vadd.f32 0.0, %v314
  %v316 = vpop.f32.mrb[0].mxu0
  %317 = vmatprep.mubr.bf16.mxu0 %v166
  %318 = vmatmul.mubr.bf16.gmra.mrb[0].mxu0 %v163
  %v319 = vpop.f32.mrb[0].mxu0
  %v320 = vadd.f32 0.0, %v319
  %v321 = vpop.f32.mrb[0].mxu0
  %v322 = vpop.f32.mrb[0].mxu0
  %v323 = vadd.f32 0.0, %v322
  %v324 = vpop.f32.mrb[0].mxu0
  %325 = vdwg.mxu0
  %v358 = vunpack.c.l.b16 %v55
  %v359 = vunpack.c.l.b16 %v56
  %v360 = vunpack.c.l.b16 %v57
  %v361 = vunpack.c.l.b16 %v58
  %v362 = vunpack.c.l.b16 %v59
  %v363 = vunpack.c.l.b16 %v60
  %v364 = vunpack.c.l.b16 %v61
  %v365 = vunpack.c.l.b16 %v62
  %v366 = vunpack.c.l.b16 %v63
  %v367 = vunpack.c.l.b16 %v64
  %v368 = vunpack.c.l.b16 %v65
  %v369 = vunpack.c.l.b16 %v66
  %v370 = vunpack.c.l.b16 %v67
  %v371 = vunpack.c.l.b16 %v68
  %v372 = vunpack.c.l.b16 %v69
  %v373 = vunpack.c.l.b16 %v70
  %v374 = vunpack.c.l.b16 %v71
  %v375 = vunpack.c.l.b16 %v72
  %v376 = vunpack.c.l.b16 %v73
  %v377 = vunpack.c.l.b16 %v74
  %v378 = vunpack.c.l.b16 %v75
  %v379 = vunpack.c.l.b16 %v76
  %v380 = vunpack.c.l.b16 %v77
  %v381 = vunpack.c.l.b16 %v78
  %v382 = vunpack.c.l.b16 %v79
  %v383 = vunpack.c.l.b16 %v80
  %v384 = vunpack.c.l.b16 %v81
  %v385 = vunpack.c.l.b16 %v82
  %v386 = vunpack.c.l.b16 %v83
  %v387 = vunpack.c.l.b16 %v84
  %v388 = vunpack.c.l.b16 %v85
  %v389 = vunpack.c.l.b16 %v86
  %v390 = vpack.c.b16 %v359, %v358
  %v391 = vpack.c.b16 %v361, %v360
  %v392 = vpack.c.b16 %v363, %v362
  %v393 = vpack.c.b16 %v365, %v364
  %v394 = vpack.c.b16 %v367, %v366
  %v395 = vpack.c.b16 %v369, %v368
  %v396 = vpack.c.b16 %v371, %v370
  %v397 = vpack.c.b16 %v373, %v372
  %v398 = vpack.c.b16 %v375, %v374
  %v399 = vpack.c.b16 %v377, %v376
  %v400 = vpack.c.b16 %v379, %v378
  %v401 = vpack.c.b16 %v381, %v380
  %v402 = vpack.c.b16 %v383, %v382
  %v403 = vpack.c.b16 %v385, %v384
  %v404 = vpack.c.b16 %v387, %v386
  %v405 = vpack.c.b16 %v389, %v388
  %422 = vmatprep.subr.bf16.mxu0 0
  %423 = vmatpush1.bf16.msra.mxu0 %v390
  %424 = vmatprep.subr.bf16.mxu0 0
  %425 = vmatpush1.bf16.msra.mxu0 %v391
  %426 = vmatprep.subr.bf16.mxu0 0
  %427 = vmatpush1.bf16.msra.mxu0 %v392
  %428 = vmatprep.subr.bf16.mxu0 0
  %429 = vmatpush1.bf16.msra.mxu0 %v393
  %430 = vmatprep.subr.bf16.mxu0 0
  %431 = vmatpush1.bf16.msra.mxu0 %v394
  %432 = vmatprep.subr.bf16.mxu0 0
  %433 = vmatpush1.bf16.msra.mxu0 %v395
  %434 = vmatprep.subr.bf16.mxu0 0
  %435 = vmatpush1.bf16.msra.mxu0 %v396
  %436 = vmatprep.subr.bf16.mxu0 0
  %437 = vmatpush1.bf16.msra.mxu0 %v397
  %438 = vmatprep.subr.bf16.mxu0 0
  %439 = vmatpush1.bf16.msra.mxu0 %v398
  %440 = vmatprep.subr.bf16.mxu0 0
  %441 = vmatpush1.bf16.msra.mxu0 %v399
  %442 = vmatprep.subr.bf16.mxu0 0
  %443 = vmatpush1.bf16.msra.mxu0 %v400
  %444 = vmatprep.subr.bf16.mxu0 0
  %445 = vmatpush1.bf16.msra.mxu0 %v401
  %446 = vmatprep.subr.bf16.mxu0 0
  %447 = vmatpush1.bf16.msra.mxu0 %v402
  %448 = vmatprep.subr.bf16.mxu0 0
  %449 = vmatpush1.bf16.msra.mxu0 %v403
  %450 = vmatprep.subr.bf16.mxu0 0
  %451 = vmatpush1.bf16.msra.mxu0 %v404
  %452 = vmatprep.subr.bf16.mxu0 0
  %453 = vmatpush1.bf16.msra.mxu0 %v405
  %454 = vmatprep.mubr.bf16.mxu0 %v50
  %455 = vmatmul.mubr.bf16.gmra.mrb[0].mxu0 %v49
  %v456 = vpop.f32.mrb[0].mxu0
  %v457 = vadd.f32 %v304, %v456
  %v458 = vpop.f32.mrb[0].mxu0
  %v459 = vpop.f32.mrb[0].mxu0
  %v460 = vadd.f32 %v307, %v459
  %v461 = vpop.f32.mrb[0].mxu0
  %462 = vmatprep.mubr.bf16.mxu0 %v52
  %463 = vmatmul.mubr.bf16.gmra.mrb[0].mxu0 %v51
  %v464 = vpop.f32.mrb[0].mxu0
  %v465 = vadd.f32 %v312, %v464
  %v466 = vpop.f32.mrb[0].mxu0
  %v467 = vpop.f32.mrb[0].mxu0
  %v468 = vadd.f32 %v315, %v467
  %v469 = vpop.f32.mrb[0].mxu0
  %470 = vmatprep.mubr.bf16.mxu0 %v54
  %471 = vmatmul.mubr.bf16.gmra.mrb[0].mxu0 %v53
  %v472 = vpop.f32.mrb[0].mxu0
  %v473 = vadd.f32 %v320, %v472
  %v474 = vpop.f32.mrb[0].mxu0
  %v475 = vpop.f32.mrb[0].mxu0
  %v476 = vadd.f32 %v323, %v475
  %v477 = vpop.f32.mrb[0].mxu0
  %478 = vdwg.mxu0
  %v479 = vpack.c.bf16 %v47, %v47
  %v480 = vpack.c.bf16 %v48, %v48
  %s481 = scalar_lea.vmem %s1, 256
  %v482 = vld [vmem:[%s481] sm:$0xf]
  %v483 = vld [vmem:[%s481 + $0x4] sm:$0xf]
  %v484 = vld [vmem:[%s481 + $0x8] sm:$0xf]
  %v485 = vld [vmem:[%s481 + $0xc] sm:$0xf]
  %v486 = vld [vmem:[%s481 + $0x10] sm:$0xf]
  %v487 = vld [vmem:[%s481 + $0x14] sm:$0xf]
  %v488 = vld [vmem:[%s481 + $0x18] sm:$0xf]
  %v489 = vld [vmem:[%s481 + $0x1c] sm:$0xf]
  %v490 = vld [vmem:[%s481 + $0x20] sm:$0xf]
  %v491 = vld [vmem:[%s481 + $0x24] sm:$0xf]
  %v492 = vld [vmem:[%s481 + $0x28] sm:$0xf]
  %v493 = vld [vmem:[%s481 + $0x2c] sm:$0xf]
  %v494 = vld [vmem:[%s481 + $0x30] sm:$0xf]
  %v495 = vld [vmem:[%s481 + $0x34] sm:$0xf]
  %v496 = vld [vmem:[%s481 + $0x38] sm:$0xf]
  %v497 = vld [vmem:[%s481 + $0x3c] sm:$0xf]
  %v498 = vld [vmem:[%s481 + $0x40] sm:$0xf]
  %v499 = vld [vmem:[%s481 + $0x44] sm:$0xf]
  %v500 = vld [vmem:[%s481 + $0x48] sm:$0xf]
  %v501 = vld [vmem:[%s481 + $0x4c] sm:$0xf]
  %v502 = vld [vmem:[%s481 + $0x50] sm:$0xf]
  %v503 = vld [vmem:[%s481 + $0x54] sm:$0xf]
  %v504 = vld [vmem:[%s481 + $0x58] sm:$0xf]
  %v505 = vld [vmem:[%s481 + $0x5c] sm:$0xf]
  %v506 = vld [vmem:[%s481 + $0x60] sm:$0xf]
  %v507 = vld [vmem:[%s481 + $0x64] sm:$0xf]
  %v508 = vld [vmem:[%s481 + $0x68] sm:$0xf]
  %v509 = vld [vmem:[%s481 + $0x6c] sm:$0xf]
  %v510 = vld [vmem:[%s481 + $0x70] sm:$0xf]
  %v511 = vld [vmem:[%s481 + $0x74] sm:$0xf]
  %v512 = vld [vmem:[%s481 + $0x78] sm:$0xf]
  %v513 = vld [vmem:[%s481 + $0x7c] sm:$0xf]
  %vm514 = vsmask.f32 5376
  %v515 = vrot.slane %v122, 2
  %v516 = vrot.slane %v124, 3
  %v517 = vor.u32 %v515, %v516
  %v518 = vrot.slane %v145, 2
  %v519 = vrot.slane %v129, 3
  %v520 = vor.u32 %v518, %v519
  %v521 = vsel %vm514, %v517, %v520
  %v522 = vrot.slane %v134, 2
  %v523 = vrot.slane %v136, 3
  %v524 = vor.u32 %v522, %v523
  %v525 = vrot.slane %v153, 2
  %v526 = vrot.slane %v141, 3
  %v527 = vor.u32 %v525, %v526
  %v528 = vsel %vm514, %v524, %v527
  %v529 = vrot.slane %v161, 2
  %v530 = vrot.slane %v149, 3
  %v531 = vor.u32 %v529, %v530
  %v532 = vsel %vm514, %v520, %v531
  %v533 = vrot.slane %v164, 2
  %v534 = vrot.slane %v157, 3
  %v535 = vor.u32 %v533, %v534
  %v536 = vsel %vm514, %v527, %v535
  %v538 = vshll.u32 %v479, 16
  %v540 = vrot.slane %v538, 3
  %v541 = vsel %vm514, %v531, %v540
  %v543 = vshll.u32 %v480, 16
  %v545 = vrot.slane %v543, 3
  %v546 = vsel %vm514, %v535, %v545
  %v585 = vunpack.c.l.b16 %v482
  %v586 = vunpack.c.l.b16 %v483
  %v587 = vunpack.c.l.b16 %v484
  %v588 = vunpack.c.l.b16 %v485
  %v589 = vunpack.c.l.b16 %v486
  %v590 = vunpack.c.l.b16 %v487
  %v591 = vunpack.c.l.b16 %v488
  %v592 = vunpack.c.l.b16 %v489
  %v593 = vunpack.c.l.b16 %v490
  %v594 = vunpack.c.l.b16 %v491
  %v595 = vunpack.c.l.b16 %v492
  %v596 = vunpack.c.l.b16 %v493
  %v597 = vunpack.c.l.b16 %v494
  %v598 = vunpack.c.l.b16 %v495
  %v599 = vunpack.c.l.b16 %v496
  %v600 = vunpack.c.l.b16 %v497
  %v601 = vunpack.c.l.b16 %v498
  %v602 = vunpack.c.l.b16 %v499
  %v603 = vunpack.c.l.b16 %v500
  %v604 = vunpack.c.l.b16 %v501
  %v605 = vunpack.c.l.b16 %v502
  %v606 = vunpack.c.l.b16 %v503
  %v607 = vunpack.c.l.b16 %v504
  %v608 = vunpack.c.l.b16 %v505
  %v609 = vunpack.c.l.b16 %v506
  %v610 = vunpack.c.l.b16 %v507
  %v611 = vunpack.c.l.b16 %v508
  %v612 = vunpack.c.l.b16 %v509
  %v613 = vunpack.c.l.b16 %v510
  %v614 = vunpack.c.l.b16 %v511
  %v615 = vunpack.c.l.b16 %v512
  %v616 = vunpack.c.l.b16 %v513
  %v617 = vpack.c.b16 %v586, %v585
  %v618 = vpack.c.b16 %v588, %v587
  %v619 = vpack.c.b16 %v590, %v589
  %v620 = vpack.c.b16 %v592, %v591
  %v621 = vpack.c.b16 %v594, %v593
  %v622 = vpack.c.b16 %v596, %v595
  %v623 = vpack.c.b16 %v598, %v597
  %v624 = vpack.c.b16 %v600, %v599
  %v625 = vpack.c.b16 %v602, %v601
  %v626 = vpack.c.b16 %v604, %v603
  %v627 = vpack.c.b16 %v606, %v605
  %v628 = vpack.c.b16 %v608, %v607
  %v629 = vpack.c.b16 %v610, %v609
  %v630 = vpack.c.b16 %v612, %v611
  %v631 = vpack.c.b16 %v614, %v613
  %v632 = vpack.c.b16 %v616, %v615
  %649 = vmatprep.subr.bf16.mxu0 0
  %650 = vmatpush1.bf16.msra.mxu0 %v617
  %651 = vmatprep.subr.bf16.mxu0 0
  %652 = vmatpush1.bf16.msra.mxu0 %v618
  %653 = vmatprep.subr.bf16.mxu0 0
  %654 = vmatpush1.bf16.msra.mxu0 %v619
  %655 = vmatprep.subr.bf16.mxu0 0
  %656 = vmatpush1.bf16.msra.mxu0 %v620
  %657 = vmatprep.subr.bf16.mxu0 0
  %658 = vmatpush1.bf16.msra.mxu0 %v621
  %659 = vmatprep.subr.bf16.mxu0 0
  %660 = vmatpush1.bf16.msra.mxu0 %v622
  %661 = vmatprep.subr.bf16.mxu0 0
  %662 = vmatpush1.bf16.msra.mxu0 %v623
  %663 = vmatprep.subr.bf16.mxu0 0
  %664 = vmatpush1.bf16.msra.mxu0 %v624
  %665 = vmatprep.subr.bf16.mxu0 0
  %666 = vmatpush1.bf16.msra.mxu0 %v625
  %667 = vmatprep.subr.bf16.mxu0 0
  %668 = vmatpush1.bf16.msra.mxu0 %v626
  %669 = vmatprep.subr.bf16.mxu0 0
  %670 = vmatpush1.bf16.msra.mxu0 %v627
  %671 = vmatprep.subr.bf16.mxu0 0
  %672 = vmatpush1.bf16.msra.mxu0 %v628
  %673 = vmatprep.subr.bf16.mxu0 0
  %674 = vmatpush1.bf16.msra.mxu0 %v629
  %675 = vmatprep.subr.bf16.mxu0 0
  %676 = vmatpush1.bf16.msra.mxu0 %v630
  %677 = vmatprep.subr.bf16.mxu0 0
  %678 = vmatpush1.bf16.msra.mxu0 %v631
  %679 = vmatprep.subr.bf16.mxu0 0
  %680 = vmatpush1.bf16.msra.mxu0 %v632
  %681 = vmatprep.mubr.bf16.mxu0 %v528
  %682 = vmatmul.mubr.bf16.gmra.mrb[0].mxu0 %v521
  %v683 = vpop.f32.mrb[0].mxu0
  %v684 = vadd.f32 0.0, %v683
  %v685 = vpop.f32.mrb[0].mxu0
  %v686 = vpop.f32.mrb[0].mxu0
  %v687 = vadd.f32 0.0, %v686
  %v688 = vpop.f32.mrb[0].mxu0
  %689 = vmatprep.mubr.bf16.mxu0 %v536
  %690 = vmatmul.mubr.bf16.gmra.mrb[0].mxu0 %v532
  %v691 = vpop.f32.mrb[0].mxu0
  %v692 = vadd.f32 0.0, %v691
  %v693 = vpop.f32.mrb[0].mxu0
  %v694 = vpop.f32.mrb[0].mxu0
  %v695 = vadd.f32 0.0, %v694
  %v696 = vpop.f32.mrb[0].mxu0
  %697 = vmatprep.mubr.bf16.mxu0 %v546
  %698 = vmatmul.mubr.bf16.gmra.mrb[0].mxu0 %v541
  %v699 = vpop.f32.mrb[0].mxu0
  %v700 = vadd.f32 0.0, %v699
  %v701 = vpop.f32.mrb[0].mxu0
  %v702 = vpop.f32.mrb[0].mxu0
  %v703 = vadd.f32 0.0, %v702
  %v704 = vpop.f32.mrb[0].mxu0
  %705 = vdwg.mxu0
  %v706 = vadd.f32 %v457, %v684
  %v707 = vadd.f32 %v460, %v687
  %v708 = vadd.f32 %v465, %v692
  %v709 = vadd.f32 %v468, %v695
  %v710 = vadd.f32 %v473, %v700
  %v711 = vadd.f32 %v476, %v703
  %s712 = scalar_lea.vmem %s1, 384
  %v713 = vld [vmem:[%s712] sm:$0xf]
  %v714 = vld [vmem:[%s712 + $0x4] sm:$0xf]
  %v715 = vld [vmem:[%s712 + $0x8] sm:$0xf]
  %v716 = vld [vmem:[%s712 + $0xc] sm:$0xf]
  %v717 = vld [vmem:[%s712 + $0x10] sm:$0xf]
  %v718 = vld [vmem:[%s712 + $0x14] sm:$0xf]
  %v719 = vld [vmem:[%s712 + $0x18] sm:$0xf]
  %v720 = vld [vmem:[%s712 + $0x1c] sm:$0xf]
  %v721 = vld [vmem:[%s712 + $0x20] sm:$0xf]
  %v722 = vld [vmem:[%s712 + $0x24] sm:$0xf]
  %v723 = vld [vmem:[%s712 + $0x28] sm:$0xf]
  %v724 = vld [vmem:[%s712 + $0x2c] sm:$0xf]
  %v725 = vld [vmem:[%s712 + $0x30] sm:$0xf]
  %v726 = vld [vmem:[%s712 + $0x34] sm:$0xf]
  %v727 = vld [vmem:[%s712 + $0x38] sm:$0xf]
  %v728 = vld [vmem:[%s712 + $0x3c] sm:$0xf]
  %v729 = vld [vmem:[%s712 + $0x40] sm:$0xf]
  %v730 = vld [vmem:[%s712 + $0x44] sm:$0xf]
  %v731 = vld [vmem:[%s712 + $0x48] sm:$0xf]
  %v732 = vld [vmem:[%s712 + $0x4c] sm:$0xf]
  %v733 = vld [vmem:[%s712 + $0x50] sm:$0xf]
  %v734 = vld [vmem:[%s712 + $0x54] sm:$0xf]
  %v735 = vld [vmem:[%s712 + $0x58] sm:$0xf]
  %v736 = vld [vmem:[%s712 + $0x5c] sm:$0xf]
  %v737 = vld [vmem:[%s712 + $0x60] sm:$0xf]
  %v738 = vld [vmem:[%s712 + $0x64] sm:$0xf]
  %v739 = vld [vmem:[%s712 + $0x68] sm:$0xf]
  %v740 = vld [vmem:[%s712 + $0x6c] sm:$0xf]
  %v741 = vld [vmem:[%s712 + $0x70] sm:$0xf]
  %v742 = vld [vmem:[%s712 + $0x74] sm:$0xf]
  %v743 = vld [vmem:[%s712 + $0x78] sm:$0xf]
  %v744 = vld [vmem:[%s712 + $0x7c] sm:$0xf]
  %vm753 = vcmask 1044480
  %v754 = vrot.slane %v49, 3
  %v755 = vrot.slane %v51, 3
  %v756 = vsel %vm753, %v754, %v755
  %v757 = vrot.slane %v50, 3
  %v758 = vrot.slane %v52, 3
  %v759 = vsel %vm753, %v757, %v758
  %v760 = vrot.slane %v53, 3
  %v761 = vsel %vm753, %v755, %v760
  %v762 = vrot.slane %v54, 3
  %v763 = vsel %vm753, %v758, %v762
  %v764 = vrot.slane %v479, 3
  %v765 = vsel %vm753, %v760, %v764
  %v766 = vrot.slane %v480, 3
  %v767 = vsel %vm753, %v762, %v766
  %v806 = vunpack.c.l.b16 %v713
  %v807 = vunpack.c.l.b16 %v714
  %v808 = vunpack.c.l.b16 %v715
  %v809 = vunpack.c.l.b16 %v716
  %v810 = vunpack.c.l.b16 %v717
  %v811 = vunpack.c.l.b16 %v718
  %v812 = vunpack.c.l.b16 %v719
  %v813 = vunpack.c.l.b16 %v720
  %v814 = vunpack.c.l.b16 %v721
  %v815 = vunpack.c.l.b16 %v722
  %v816 = vunpack.c.l.b16 %v723
  %v817 = vunpack.c.l.b16 %v724
  %v818 = vunpack.c.l.b16 %v725
  %v819 = vunpack.c.l.b16 %v726
  %v820 = vunpack.c.l.b16 %v727
  %v821 = vunpack.c.l.b16 %v728
  %v822 = vunpack.c.l.b16 %v729
  %v823 = vunpack.c.l.b16 %v730
  %v824 = vunpack.c.l.b16 %v731
  %v825 = vunpack.c.l.b16 %v732
  %v826 = vunpack.c.l.b16 %v733
  %v827 = vunpack.c.l.b16 %v734
  %v828 = vunpack.c.l.b16 %v735
  %v829 = vunpack.c.l.b16 %v736
  %v830 = vunpack.c.l.b16 %v737
  %v831 = vunpack.c.l.b16 %v738
  %v832 = vunpack.c.l.b16 %v739
  %v833 = vunpack.c.l.b16 %v740
  %v834 = vunpack.c.l.b16 %v741
  %v835 = vunpack.c.l.b16 %v742
  %v836 = vunpack.c.l.b16 %v743
  %v837 = vunpack.c.l.b16 %v744
  %v838 = vpack.c.b16 %v807, %v806
  %v839 = vpack.c.b16 %v809, %v808
  %v840 = vpack.c.b16 %v811, %v810
  %v841 = vpack.c.b16 %v813, %v812
  %v842 = vpack.c.b16 %v815, %v814
  %v843 = vpack.c.b16 %v817, %v816
  %v844 = vpack.c.b16 %v819, %v818
  %v845 = vpack.c.b16 %v821, %v820
  %v846 = vpack.c.b16 %v823, %v822
  %v847 = vpack.c.b16 %v825, %v824
  %v848 = vpack.c.b16 %v827, %v826
  %v849 = vpack.c.b16 %v829, %v828
  %v850 = vpack.c.b16 %v831, %v830
  %v851 = vpack.c.b16 %v833, %v832
  %v852 = vpack.c.b16 %v835, %v834
  %v853 = vpack.c.b16 %v837, %v836
  %870 = vmatprep.subr.bf16.mxu0 0
  %871 = vmatpush1.bf16.msra.mxu0 %v838
  %872 = vmatprep.subr.bf16.mxu0 0
  %873 = vmatpush1.bf16.msra.mxu0 %v839
  %874 = vmatprep.subr.bf16.mxu0 0
  %875 = vmatpush1.bf16.msra.mxu0 %v840
  %876 = vmatprep.subr.bf16.mxu0 0
  %877 = vmatpush1.bf16.msra.mxu0 %v841
  %878 = vmatprep.subr.bf16.mxu0 0
  %879 = vmatpush1.bf16.msra.mxu0 %v842
  %880 = vmatprep.subr.bf16.mxu0 0
  %881 = vmatpush1.bf16.msra.mxu0 %v843
  %882 = vmatprep.subr.bf16.mxu0 0
  %883 = vmatpush1.bf16.msra.mxu0 %v844
  %884 = vmatprep.subr.bf16.mxu0 0
  %885 = vmatpush1.bf16.msra.mxu0 %v845
  %886 = vmatprep.subr.bf16.mxu0 0
  %887 = vmatpush1.bf16.msra.mxu0 %v846
  %888 = vmatprep.subr.bf16.mxu0 0
  %889 = vmatpush1.bf16.msra.mxu0 %v847
  %890 = vmatprep.subr.bf16.mxu0 0
  %891 = vmatpush1.bf16.msra.mxu0 %v848
  %892 = vmatprep.subr.bf16.mxu0 0
  %893 = vmatpush1.bf16.msra.mxu0 %v849
  %894 = vmatprep.subr.bf16.mxu0 0
  %895 = vmatpush1.bf16.msra.mxu0 %v850
  %896 = vmatprep.subr.bf16.mxu0 0
  %897 = vmatpush1.bf16.msra.mxu0 %v851
  %898 = vmatprep.subr.bf16.mxu0 0
  %899 = vmatpush1.bf16.msra.mxu0 %v852
  %900 = vmatprep.subr.bf16.mxu0 0
  %901 = vmatpush1.bf16.msra.mxu0 %v853
  %902 = vmatprep.mubr.bf16.mxu0 %v759
  %903 = vmatmul.mubr.bf16.gmra.mrb[0].mxu0 %v756
  %v904 = vpop.f32.mrb[0].mxu0
  %v905 = vadd.f32 0.0, %v904
  %v906 = vpop.f32.mrb[0].mxu0
  %v907 = vpop.f32.mrb[0].mxu0
  %v908 = vadd.f32 0.0, %v907
  %v909 = vpop.f32.mrb[0].mxu0
  %910 = vmatprep.mubr.bf16.mxu0 %v763
  %911 = vmatmul.mubr.bf16.gmra.mrb[0].mxu0 %v761
  %v912 = vpop.f32.mrb[0].mxu0
  %v913 = vadd.f32 0.0, %v912
  %v914 = vpop.f32.mrb[0].mxu0
  %v915 = vpop.f32.mrb[0].mxu0
  %v916 = vadd.f32 0.0, %v915
  %v917 = vpop.f32.mrb[0].mxu0
  %918 = vmatprep.mubr.bf16.mxu0 %v767
  %919 = vmatmul.mubr.bf16.gmra.mrb[0].mxu0 %v765
  %v920 = vpop.f32.mrb[0].mxu0
  %v921 = vadd.f32 0.0, %v920
  %v922 = vpop.f32.mrb[0].mxu0
  %v923 = vpop.f32.mrb[0].mxu0
  %v924 = vadd.f32 0.0, %v923
  %v925 = vpop.f32.mrb[0].mxu0
  %926 = vdwg.mxu0
  %v927 = vadd.f32 %v706, %v905
  %v928 = vadd.f32 %v707, %v908
  %v929 = vadd.f32 %v708, %v913
  %v930 = vadd.f32 %v709, %v916
  %v931 = vadd.f32 %v710, %v921
  %v932 = vadd.f32 %v711, %v924
  %v933 = vld [vmem:[%s4] sm:$0xff]
  %v934 = vld [vmem:[%s4 + $0x8] sm:$0xff]
  %v935 = vld [vmem:[%s4 + $0x10] sm:$0xff]
  %v936 = vld [vmem:[%s4 + $0x18] sm:$0xff]
  %v937 = vld [vmem:[%s4 + $0x20] sm:$0xff]
  %v938 = vld [vmem:[%s4 + $0x28] sm:$0xf]
  %940 = vset.pattern.permute.xlu0 0
  %941 = vperm.xlu0 %940, %v933
  %v942 = vpop.permute.xlu0 %941
  %945 = vset.pattern.permute.xlu0 0
  %946 = vperm.xlu0 %945, %v934
  %v947 = vpop.permute.xlu0 %946
  %950 = vset.pattern.permute.xlu0 0
  %951 = vperm.xlu0 %950, %v935
  %v952 = vpop.permute.xlu0 %951
  %955 = vset.pattern.permute.xlu0 0
  %956 = vperm.xlu0 %955, %v936
  %v957 = vpop.permute.xlu0 %956
  %960 = vset.pattern.permute.xlu0 0
  %961 = vperm.xlu0 %960, %v937
  %v962 = vpop.permute.xlu0 %961
  %965 = vset.pattern.permute.xlu0 0
  %966 = vperm.xlu0 %965, %v938
  %v967 = vpop.permute.xlu0 %966
  %v969 = vmul.f32 %v927, %v942
  %v970 = vmul.f32 %v928, %v947
  %v971 = vmul.f32 %v929, %v952
  %v972 = vmul.f32 %v930, %v957
  %v973 = vmul.f32 %v931, %v962
  %v974 = vmul.f32 %v932, %v967
  %v975 = vadd.f32 %v969, %v970
  %v976 = vadd.f32 %v975, %v971
  %v977 = vadd.f32 %v976, %v972
  %v978 = vadd.f32 %v977, %v973
  %vm979 = vcmask 1043456
  %v980 = vsel %vm979, %v974, 0.0
  %v981 = vadd.f32 %v978, %v980
  %v982 = vrot.slane %v981, 4
  %v983 = vadd.f32 %v981, %v982
  %v984 = vrot.slane %v983, 2
  %v985 = vadd.f32 %v983, %v984
  %v986 = vrot.slane %v985, 1
  %v987 = vadd.f32 %v985, %v986
  %v988 = vmul.f32 %v987, 0.03125
  %v989 = vsub.f32 %v927, %v988
  %v990 = vsub.f32 %v928, %v988
  %v991 = vsub.f32 %v929, %v988
  %v992 = vsub.f32 %v930, %v988
  %v993 = vsub.f32 %v931, %v988
  %v994 = vsub.f32 %v932, %v988
  %v995 = vmul.f32 %v989, %v942
  %v996 = vmul.f32 %v990, %v947
  %v997 = vmul.f32 %v991, %v952
  %v998 = vmul.f32 %v992, %v957
  %v999 = vmul.f32 %v993, %v962
  %v1000 = vmul.f32 %v994, %v967
  %v1001 = vmul.f32 %v995, %v995
  %v1002 = vmul.f32 %v996, %v996
  %v1003 = vmul.f32 %v997, %v997
  %v1004 = vmul.f32 %v998, %v998
  %v1005 = vmul.f32 %v999, %v999
  %v1006 = vmul.f32 %v1000, %v1000
  %v1007 = vadd.f32 %v1001, %v1002
  %v1008 = vadd.f32 %v1007, %v1003
  %v1009 = vadd.f32 %v1008, %v1004
  %v1010 = vadd.f32 %v1009, %v1005
  %v1011 = vsel %vm979, %v1006, 0.0
  %v1012 = vadd.f32 %v1010, %v1011
  %v1013 = vrot.slane %v1012, 4
  %v1014 = vadd.f32 %v1012, %v1013
  %v1015 = vrot.slane %v1014, 2
  %v1016 = vadd.f32 %v1014, %v1015
  %v1017 = vrot.slane %v1016, 1
  %v1018 = vadd.f32 %v1016, %v1017
  %v1019 = vmul.f32 %v1018, 0.03125
  %v1020 = vadd.f32 %v1019, 1e-05
  %v1021 = vrsqrt.pop %v1020
  %v1022 = vmul.f32 %v989, %v1021
  %v1023 = vmul.f32 %v990, %v1021
  %v1024 = vmul.f32 %v991, %v1021
  %v1025 = vmul.f32 %v992, %v1021
  %v1026 = vmul.f32 %v993, %v1021
  %v1027 = vmul.f32 %v994, %v1021
  %v1028 = vld [vmem:[%s2] sm:$0x1]
  %v1030 = vlaneseq
  %v1031 = vshrl.u32 %v1030, 7
  %v1032 = vsub.s32 0, %v1031
  %v1033 = vrot.slane %v1028, %v1032
  %v1035 = vmul.f32 %v1022, %v1033
  %v1036 = vmul.f32 %v1023, %v1033
  %v1037 = vmul.f32 %v1024, %v1033
  %v1038 = vmul.f32 %v1025, %v1033
  %v1039 = vmul.f32 %v1026, %v1033
  %v1040 = vmul.f32 %v1027, %v1033
  %v1041 = vld [vmem:[%s3] sm:$0x1]
  %v1043 = vlaneseq
  %v1044 = vshrl.u32 %v1043, 7
  %v1045 = vsub.s32 0, %v1044
  %v1046 = vrot.slane %v1041, %v1045
  %v1048 = vadd.f32 %v1035, %v1046
  %v1049 = vadd.f32 %v1036, %v1046
  %v1050 = vadd.f32 %v1037, %v1046
  %v1051 = vadd.f32 %v1038, %v1046
  %v1052 = vadd.f32 %v1039, %v1046
  %v1053 = vadd.f32 %v1040, %v1046
  %1054 = vst [vmem:[%s5] sm:$0xff] %v1048
  %1055 = vst [vmem:[%s5 + $0x8] sm:$0xff] %v1049
  %1056 = vst [vmem:[%s5 + $0x10] sm:$0xff] %v1050
  %1057 = vst [vmem:[%s5 + $0x18] sm:$0xff] %v1051
  %1058 = vst [vmem:[%s5 + $0x20] sm:$0xff] %v1052
  %1059 = vst [vmem:[%s5 + $0x28] sm:$0xf] %v1053
  // Predicated region
  $region22: #{encoder_forward.5} parent=0 // pred_check
    _
  $region23: #{encoder_forward.5} parent=0 // pred_check_branch
    %1061 = sbr.rel (0) target = $region25
  $region24: #{encoder_forward.5} parent=0 // pred_region
    _
  $region25: #{encoder_forward.5} parent=0 // pred_fallthru
    _
  // Predicated region
  $region26: #{encoder_forward.5} parent=0 // pred_check
    _
  $region27: #{encoder_forward.5} parent=0 // pred_check_branch
    %1063 = sbr.rel (0) target = $region29
  $region28: #{encoder_forward.5} parent=0 // pred_region
    _
  $region29: #{encoder_forward.5} parent=0 // pred_fallthru
    _

// kernel: encoder_forward.6
$region0: #{encoder_forward.6}
  #allocation0 [shape = 'u32[]', space=smem, size = 0x4, offset = 0x4, fixed_abs, tag = 'smem constant byte address 0x4 - core index']
  #allocation1 [shape = 'u32[144,128]{1,0:T(1,128)}', space=vmem, size = 0x12000, scoped, tag = 'internal scratch']
  %s0 = inlined_call_operand.vmem [shape: f32[72,128], index: 0, kind: input, shape index: {}]
  %s1 = inlined_call_operand.vmem [shape: bf16[9,128,128], index: 1, kind: input, shape index: {}]
  %s2 = inlined_call_operand.vmem [shape: bf16[128,128], index: 2, kind: input, shape index: {}]
  %s3 = inlined_call_operand.vmem [shape: f32[58,128], index: 3, kind: output, shape index: {}]
  %s4 = sld [smem:[#allocation0]]
  $region22: #{encoder_forward.6} parent=0
    _
  %s6 = ssub.s32 1, %s4
  %s7 = scalar_select 0, %s6, %s4
  // Predicated region
  $region2: #{encoder_forward.6} parent=0 // pred_check
    _
  $region3: #{encoder_forward.6} parent=0 // pred_check_branch
    %9 = sbr.rel (0) target = $region5
  $region4: #{encoder_forward.6} parent=0 // pred_region
    _
  $region5: #{encoder_forward.6} parent=0 // pred_fallthru
    _
  // Predicated region
  $region6: #{encoder_forward.6} parent=0 // pred_check
    _
  $region7: #{encoder_forward.6} parent=0 // pred_check_branch
    %11 = sbr.rel (0) target = $region9
  $region8: #{encoder_forward.6} parent=0 // pred_region
    _
  $region9: #{encoder_forward.6} parent=0 // pred_fallthru
    _
  // Predicated region
  $region10: #{encoder_forward.6} parent=0 // pred_check
    _
  $region11: #{encoder_forward.6} parent=0 // pred_check_branch
    %13 = sbr.rel (0) target = $region13
  $region12: #{encoder_forward.6} parent=0 // pred_region
    _
  $region13: #{encoder_forward.6} parent=0 // pred_fallthru
    _
  %v15 = vld [vmem:[%s0] sm:$0xff]
  %v16 = vld [vmem:[%s0 + $0x8] sm:$0xff]
  %v17 = vld [vmem:[%s0 + $0x10] sm:$0xff]
  %v18 = vld [vmem:[%s0 + $0x18] sm:$0xff]
  %v19 = vld [vmem:[%s0 + $0x20] sm:$0xff]
  %v20 = vld [vmem:[%s0 + $0x28] sm:$0xff]
  %v21 = vld [vmem:[%s0 + $0x30] sm:$0xff]
  %v22 = vld [vmem:[%s0 + $0x38] sm:$0xff]
  %v23 = vld [vmem:[%s0 + $0x40] sm:$0xff]
  %v24 = vmax.f32 %v15, 0.0
  %v25 = vmax.f32 %v16, 0.0
  %v26 = vmax.f32 %v17, 0.0
  %v27 = vmax.f32 %v18, 0.0
  %v28 = vmax.f32 %v19, 0.0
  %v29 = vmax.f32 %v20, 0.0
  %v30 = vmax.f32 %v21, 0.0
  %v31 = vmax.f32 %v22, 0.0
  %v32 = vmax.f32 %v23, 0.0
  %v33 = vpack.c.bf16 %v25, %v24
  %v34 = vpack.c.bf16 %v27, %v26
  %v35 = vpack.c.bf16 %v29, %v28
  %v36 = vpack.c.bf16 %v31, %v30
  %v37 = vld [vmem:[%s1] sm:$0xf]
  %v38 = vld [vmem:[%s1 + $0x4] sm:$0xf]
  %v39 = vld [vmem:[%s1 + $0x8] sm:$0xf]
  %v40 = vld [vmem:[%s1 + $0xc] sm:$0xf]
  %v41 = vld [vmem:[%s1 + $0x10] sm:$0xf]
  %v42 = vld [vmem:[%s1 + $0x14] sm:$0xf]
  %v43 = vld [vmem:[%s1 + $0x18] sm:$0xf]
  %v44 = vld [vmem:[%s1 + $0x1c] sm:$0xf]
  %v45 = vld [vmem:[%s1 + $0x20] sm:$0xf]
  %v46 = vld [vmem:[%s1 + $0x24] sm:$0xf]
  %v47 = vld [vmem:[%s1 + $0x28] sm:$0xf]
  %v48 = vld [vmem:[%s1 + $0x2c] sm:$0xf]
  %v49 = vld [vmem:[%s1 + $0x30] sm:$0xf]
  %v50 = vld [vmem:[%s1 + $0x34] sm:$0xf]
  %v51 = vld [vmem:[%s1 + $0x38] sm:$0xf]
  %v52 = vld [vmem:[%s1 + $0x3c] sm:$0xf]
  %s53 = scalar_lea.vmem %s1, 64
  %v54 = vld [vmem:[%s53] sm:$0xf]
  %v55 = vld [vmem:[%s53 + $0x4] sm:$0xf]
  %v56 = vld [vmem:[%s53 + $0x8] sm:$0xf]
  %v57 = vld [vmem:[%s53 + $0xc] sm:$0xf]
  %v58 = vld [vmem:[%s53 + $0x10] sm:$0xf]
  %v59 = vld [vmem:[%s53 + $0x14] sm:$0xf]
  %v60 = vld [vmem:[%s53 + $0x18] sm:$0xf]
  %v61 = vld [vmem:[%s53 + $0x1c] sm:$0xf]
  %v62 = vld [vmem:[%s53 + $0x20] sm:$0xf]
  %v63 = vld [vmem:[%s53 + $0x24] sm:$0xf]
  %v64 = vld [vmem:[%s53 + $0x28] sm:$0xf]
  %v65 = vld [vmem:[%s53 + $0x2c] sm:$0xf]
  %v66 = vld [vmem:[%s53 + $0x30] sm:$0xf]
  %v67 = vld [vmem:[%s53 + $0x34] sm:$0xf]
  %v68 = vld [vmem:[%s53 + $0x38] sm:$0xf]
  %v69 = vld [vmem:[%s53 + $0x3c] sm:$0xf]
  %vm70 = vsmask.f32 7424
  %v72 = vshrl.u32 %v33, 16
  %v74 = vshll.u32 %v33, 16
  %v76 = vrot.slane %v74, 1
  %v77 = vor.u32 %v72, %v76
  %v79 = vshll.u32 %v34, 16
  %v81 = vrot.slane %v79, 1
  %v82 = vsel %vm70, %v77, %v81
  %v83 = vshrl.u32 %v34, 16
  %v85 = vor.u32 %v83, %v81
  %v87 = vshll.u32 %v35, 16
  %v89 = vrot.slane %v87, 1
  %v90 = vsel %vm70, %v85, %v89
  %v91 = vshrl.u32 %v35, 16
  %v93 = vor.u32 %v91, %v89
  %v95 = vshll.u32 %v36, 16
  %v97 = vrot.slane %v95, 1
  %v98 = vsel %vm70, %v93, %v97
  %v99 = vshrl.u32 %v36, 16
  %v101 = vor.u32 %v99, %v97
  %v122 = vunpack.c.l.b16 %v54
  %v123 = vunpack.c.l.b16 %v55
  %v124 = vunpack.c.l.b16 %v56
  %v125 = vunpack.c.l.b16 %v57
  %v126 = vunpack.c.l.b16 %v58
  %v127 = vunpack.c.l.b16 %v59
  %v128 = vunpack.c.l.b16 %v60
  %v129 = vunpack.c.l.b16 %v61
  %v130 = vunpack.c.l.b16 %v62
  %v131 = vunpack.c.l.b16 %v63
  %v132 = vunpack.c.l.b16 %v64
  %v133 = vunpack.c.l.b16 %v65
  %v134 = vunpack.c.l.b16 %v66
  %v135 = vunpack.c.l.b16 %v67
  %v136 = vunpack.c.l.b16 %v68
  %v137 = vunpack.c.l.b16 %v69
  %v138 = vpack.c.b16 %v123, %v122
  %v139 = vpack.c.b16 %v125, %v124
  %v140 = vpack.c.b16 %v127, %v126
  %v141 = vpack.c.b16 %v129, %v128
  %v142 = vpack.c.b16 %v131, %v130
  %v143 = vpack.c.b16 %v133, %v132
  %v144 = vpack.c.b16 %v135, %v134
  %v145 = vpack.c.b16 %v137, %v136
  %154 = vmatprep.subr.bf16.mxu0 0
  %155 = vmatpush1.bf16.msra.mxu0 %v138
  %156 = vmatprep.subr.bf16.mxu0 0
  %157 = vmatpush1.bf16.msra.mxu0 %v139
  %158 = vmatprep.subr.bf16.mxu0 0
  %159 = vmatpush1.bf16.msra.mxu0 %v140
  %160 = vmatprep.subr.bf16.mxu0 0
  %161 = vmatpush1.bf16.msra.mxu0 %v141
  %162 = vmatprep.subr.bf16.mxu0 0
  %163 = vmatpush1.bf16.msra.mxu0 %v142
  %164 = vmatprep.subr.bf16.mxu0 0
  %165 = vmatpush1.bf16.msra.mxu0 %v143
  %166 = vmatprep.subr.bf16.mxu0 0
  %167 = vmatpush1.bf16.msra.mxu0 %v144
  %168 = vmatprep.subr.bf16.mxu0 0
  %169 = vmatpush1.bf16.msra.mxu0 %v145
  %170 = vmatprep.subr.bf16.mxu0 0
  %171 = vmatpush1.bf16.msra.mxu0 0
  %172 = vmatprep.subr.bf16.mxu0 0
  %173 = vmatpush1.bf16.msra.mxu0 0
  %174 = vmatprep.subr.bf16.mxu0 0
  %175 = vmatpush1.bf16.msra.mxu0 0
  %176 = vmatprep.subr.bf16.mxu0 0
  %177 = vmatpush1.bf16.msra.mxu0 0
  %178 = vmatprep.subr.bf16.mxu0 0
  %179 = vmatpush1.bf16.msra.mxu0 0
  %180 = vmatprep.subr.bf16.mxu0 0
  %181 = vmatpush1.bf16.msra.mxu0 0
  %182 = vmatprep.subr.bf16.mxu0 0
  %183 = vmatpush1.bf16.msra.mxu0 0
  %184 = vmatprep.subr.bf16.mxu0 0
  %185 = vmatpush1.bf16.msra.mxu0 0
  %186 = vmatprep.mubr.bf16.mxu0 0
  %187 = vmatmul.mubr.bf16.gmra.mrb[0].mxu0 %v82
  %v188 = vpop.f32.mrb[0].mxu0
  %v189 = vadd.f32 0.0, %v188
  %v190 = vpop.f32.mrb[0].mxu0
  %v191 = vpop.f32.mrb[0].mxu0
  %v192 = vadd.f32 0.0, %v191
  %v193 = vpop.f32.mrb[0].mxu0
  %194 = vmatprep.mubr.bf16.mxu0 0
  %195 = vmatmul.mubr.bf16.gmra.mrb[0].mxu0 %v90
  %v196 = vpop.f32.mrb[0].mxu0
  %v197 = vadd.f32 0.0, %v196
  %v198 = vpop.f32.mrb[0].mxu0
  %v199 = vpop.f32.mrb[0].mxu0
  %v200 = vadd.f32 0.0, %v199
  %v201 = vpop.f32.mrb[0].mxu0
  %202 = vmatprep.mubr.bf16.mxu0 0
  %203 = vmatmul.mubr.bf16.gmra.mrb[0].mxu0 %v98
  %v204 = vpop.f32.mrb[0].mxu0
  %v205 = vadd.f32 0.0, %v204
  %v206 = vpop.f32.mrb[0].mxu0
  %v207 = vpop.f32.mrb[0].mxu0
  %v208 = vadd.f32 0.0, %v207
  %v209 = vpop.f32.mrb[0].mxu0
  %210 = vmatprep.mubr.bf16.mxu0 0
  %211 = vmatmul.mubr.bf16.gmra.mrb[0].mxu0 %v101
  %v212 = vpop.f32.mrb[0].mxu0
  %v213 = vadd.f32 0.0, %v212
  %v214 = vpop.f32.mrb[0].mxu0
  %v215 = vpop.f32.mrb[0].mxu0
  %v216 = vadd.f32 0.0, %v215
  %v217 = vpop.f32.mrb[0].mxu0
  %218 = vdwg.mxu0
  %v235 = vunpack.c.l.b16 %v37
  %v236 = vunpack.c.l.b16 %v38
  %v237 = vunpack.c.l.b16 %v39
  %v238 = vunpack.c.l.b16 %v40
  %v239 = vunpack.c.l.b16 %v41
  %v240 = vunpack.c.l.b16 %v42
  %v241 = vunpack.c.l.b16 %v43
  %v242 = vunpack.c.l.b16 %v44
  %v243 = vunpack.c.l.b16 %v45
  %v244 = vunpack.c.l.b16 %v46
  %v245 = vunpack.c.l.b16 %v47
  %v246 = vunpack.c.l.b16 %v48
  %v247 = vunpack.c.l.b16 %v49
  %v248 = vunpack.c.l.b16 %v50
  %v249 = vunpack.c.l.b16 %v51
  %v250 = vunpack.c.l.b16 %v52
  %v251 = vpack.c.b16 %v236, %v235
  %v252 = vpack.c.b16 %v238, %v237
  %v253 = vpack.c.b16 %v240, %v239
  %v254 = vpack.c.b16 %v242, %v241
  %v255 = vpack.c.b16 %v244, %v243
  %v256 = vpack.c.b16 %v246, %v245
  %v257 = vpack.c.b16 %v248, %v247
  %v258 = vpack.c.b16 %v250, %v249
  %267 = vmatprep.subr.bf16.mxu0 0
  %268 = vmatpush1.bf16.msra.mxu0 %v251
  %269 = vmatprep.subr.bf16.mxu0 0
  %270 = vmatpush1.bf16.msra.mxu0 %v252
  %271 = vmatprep.subr.bf16.mxu0 0
  %272 = vmatpush1.bf16.msra.mxu0 %v253
  %273 = vmatprep.subr.bf16.mxu0 0
  %274 = vmatpush1.bf16.msra.mxu0 %v254
  %275 = vmatprep.subr.bf16.mxu0 0
  %276 = vmatpush1.bf16.msra.mxu0 %v255
  %277 = vmatprep.subr.bf16.mxu0 0
  %278 = vmatpush1.bf16.msra.mxu0 %v256
  %279 = vmatprep.subr.bf16.mxu0 0
  %280 = vmatpush1.bf16.msra.mxu0 %v257
  %281 = vmatprep.subr.bf16.mxu0 0
  %282 = vmatpush1.bf16.msra.mxu0 %v258
  %283 = vmatprep.subr.bf16.mxu0 0
  %284 = vmatpush1.bf16.msra.mxu0 0
  %285 = vmatprep.subr.bf16.mxu0 0
  %286 = vmatpush1.bf16.msra.mxu0 0
  %287 = vmatprep.subr.bf16.mxu0 0
  %288 = vmatpush1.bf16.msra.mxu0 0
  %289 = vmatprep.subr.bf16.mxu0 0
  %290 = vmatpush1.bf16.msra.mxu0 0
  %291 = vmatprep.subr.bf16.mxu0 0
  %292 = vmatpush1.bf16.msra.mxu0 0
  %293 = vmatprep.subr.bf16.mxu0 0
  %294 = vmatpush1.bf16.msra.mxu0 0
  %295 = vmatprep.subr.bf16.mxu0 0
  %296 = vmatpush1.bf16.msra.mxu0 0
  %297 = vmatprep.subr.bf16.mxu0 0
  %298 = vmatpush1.bf16.msra.mxu0 0
  %299 = vmatprep.mubr.bf16.mxu0 0
  %300 = vmatmul.mubr.bf16.gmra.mrb[0].mxu0 %v33
  %v301 = vpop.f32.mrb[0].mxu0
  %v302 = vadd.f32 %v189, %v301
  %v303 = vpop.f32.mrb[0].mxu0
  %v304 = vpop.f32.mrb[0].mxu0
  %v305 = vadd.f32 %v192, %v304
  %v306 = vpop.f32.mrb[0].mxu0
  %307 = vmatprep.mubr.bf16.mxu0 0
  %308 = vmatmul.mubr.bf16.gmra.mrb[0].mxu0 %v34
  %v309 = vpop.f32.mrb[0].mxu0
  %v310 = vadd.f32 %v197, %v309
  %v311 = vpop.f32.mrb[0].mxu0
  %v312 = vpop.f32.mrb[0].mxu0
  %v313 = vadd.f32 %v200, %v312
  %v314 = vpop.f32.mrb[0].mxu0
  %315 = vmatprep.mubr.bf16.mxu0 0
  %316 = vmatmul.mubr.bf16.gmra.mrb[0].mxu0 %v35
  %v317 = vpop.f32.mrb[0].mxu0
  %v318 = vadd.f32 %v205, %v317
  %v319 = vpop.f32.mrb[0].mxu0
  %v320 = vpop.f32.mrb[0].mxu0
  %v321 = vadd.f32 %v208, %v320
  %v322 = vpop.f32.mrb[0].mxu0
  %323 = vmatprep.mubr.bf16.mxu0 0
  %324 = vmatmul.mubr.bf16.gmra.mrb[0].mxu0 %v36
  %v325 = vpop.f32.mrb[0].mxu0
  %v326 = vadd.f32 %v213, %v325
  %v327 = vpop.f32.mrb[0].mxu0
  %v328 = vpop.f32.mrb[0].mxu0
  %v329 = vadd.f32 %v216, %v328
  %v330 = vpop.f32.mrb[0].mxu0
  %331 = vdwg.mxu0
  %s332 = scalar_lea.vmem %s1, 128
  %v333 = vld [vmem:[%s332] sm:$0xf]
  %v334 = vld [vmem:[%s332 + $0x4] sm:$0xf]
  %v335 = vld [vmem:[%s332 + $0x8] sm:$0xf]
  %v336 = vld [vmem:[%s332 + $0xc] sm:$0xf]
  %v337 = vld [vmem:[%s332 + $0x10] sm:$0xf]
  %v338 = vld [vmem:[%s332 + $0x14] sm:$0xf]
  %v339 = vld [vmem:[%s332 + $0x18] sm:$0xf]
  %v340 = vld [vmem:[%s332 + $0x1c] sm:$0xf]
  %v341 = vld [vmem:[%s332 + $0x20] sm:$0xf]
  %v342 = vld [vmem:[%s332 + $0x24] sm:$0xf]
  %v343 = vld [vmem:[%s332 + $0x28] sm:$0xf]
  %v344 = vld [vmem:[%s332 + $0x2c] sm:$0xf]
  %v345 = vld [vmem:[%s332 + $0x30] sm:$0xf]
  %v346 = vld [vmem:[%s332 + $0x34] sm:$0xf]
  %v347 = vld [vmem:[%s332 + $0x38] sm:$0xf]
  %v348 = vld [vmem:[%s332 + $0x3c] sm:$0xf]
  %vm353 = vcmask 1046528
  %v354 = vrot.slane %v33, 1
  %v355 = vrot.slane %v34, 1
  %v356 = vsel %vm353, %v354, %v355
  %v357 = vrot.slane %v35, 1
  %v358 = vsel %vm353, %v355, %v357
  %v359 = vrot.slane %v36, 1
  %v360 = vsel %vm353, %v357, %v359
  %v381 = vunpack.c.l.b16 %v333
  %v382 = vunpack.c.l.b16 %v334
  %v383 = vunpack.c.l.b16 %v335
  %v384 = vunpack.c.l.b16 %v336
  %v385 = vunpack.c.l.b16 %v337
  %v386 = vunpack.c.l.b16 %v338
  %v387 = vunpack.c.l.b16 %v339
  %v388 = vunpack.c.l.b16 %v340
  %v389 = vunpack.c.l.b16 %v341
  %v390 = vunpack.c.l.b16 %v342
  %v391 = vunpack.c.l.b16 %v343
  %v392 = vunpack.c.l.b16 %v344
  %v393 = vunpack.c.l.b16 %v345
  %v394 = vunpack.c.l.b16 %v346
  %v395 = vunpack.c.l.b16 %v347
  %v396 = vunpack.c.l.b16 %v348
  %v397 = vpack.c.b16 %v382, %v381
  %v398 = vpack.c.b16 %v384, %v383
  %v399 = vpack.c.b16 %v386, %v385
  %v400 = vpack.c.b16 %v388, %v387
  %v401 = vpack.c.b16 %v390, %v389
  %v402 = vpack.c.b16 %v392, %v391
  %v403 = vpack.c.b16 %v394, %v393
  %v404 = vpack.c.b16 %v396, %v395
  %413 = vmatprep.subr.bf16.mxu0 0
  %414 = vmatpush1.bf16.msra.mxu0 %v397
  %415 = vmatprep.subr.bf16.mxu0 0
  %416 = vmatpush1.bf16.msra.mxu0 %v398
  %417 = vmatprep.subr.bf16.mxu0 0
  %418 = vmatpush1.bf16.msra.mxu0 %v399
  %419 = vmatprep.subr.bf16.mxu0 0
  %420 = vmatpush1.bf16.msra.mxu0 %v400
  %421 = vmatprep.subr.bf16.mxu0 0
  %422 = vmatpush1.bf16.msra.mxu0 %v401
  %423 = vmatprep.subr.bf16.mxu0 0
  %424 = vmatpush1.bf16.msra.mxu0 %v402
  %425 = vmatprep.subr.bf16.mxu0 0
  %426 = vmatpush1.bf16.msra.mxu0 %v403
  %427 = vmatprep.subr.bf16.mxu0 0
  %428 = vmatpush1.bf16.msra.mxu0 %v404
  %429 = vmatprep.subr.bf16.mxu0 0
  %430 = vmatpush1.bf16.msra.mxu0 0
  %431 = vmatprep.subr.bf16.mxu0 0
  %432 = vmatpush1.bf16.msra.mxu0 0
  %433 = vmatprep.subr.bf16.mxu0 0
  %434 = vmatpush1.bf16.msra.mxu0 0
  %435 = vmatprep.subr.bf16.mxu0 0
  %436 = vmatpush1.bf16.msra.mxu0 0
  %437 = vmatprep.subr.bf16.mxu0 0
  %438 = vmatpush1.bf16.msra.mxu0 0
  %439 = vmatprep.subr.bf16.mxu0 0
  %440 = vmatpush1.bf16.msra.mxu0 0
  %441 = vmatprep.subr.bf16.mxu0 0
  %442 = vmatpush1.bf16.msra.mxu0 0
  %443 = vmatprep.subr.bf16.mxu0 0
  %444 = vmatpush1.bf16.msra.mxu0 0
  %445 = vmatprep.mubr.bf16.mxu0 0
  %446 = vmatmul.mubr.bf16.gmra.mrb[0].mxu0 %v356
  %v447 = vpop.f32.mrb[0].mxu0
  %v448 = vadd.f32 0.0, %v447
  %v449 = vpop.f32.mrb[0].mxu0
  %v450 = vpop.f32.mrb[0].mxu0
  %v451 = vadd.f32 0.0, %v450
  %v452 = vpop.f32.mrb[0].mxu0
  %453 = vmatprep.mubr.bf16.mxu0 0
  %454 = vmatmul.mubr.bf16.gmra.mrb[0].mxu0 %v358
  %v455 = vpop.f32.mrb[0].mxu0
  %v456 = vadd.f32 0.0, %v455
  %v457 = vpop.f32.mrb[0].mxu0
  %v458 = vpop.f32.mrb[0].mxu0
  %v459 = vadd.f32 0.0, %v458
  %v460 = vpop.f32.mrb[0].mxu0
  %461 = vmatprep.mubr.bf16.mxu0 0
  %462 = vmatmul.mubr.bf16.gmra.mrb[0].mxu0 %v360
  %v463 = vpop.f32.mrb[0].mxu0
  %v464 = vadd.f32 0.0, %v463
  %v465 = vpop.f32.mrb[0].mxu0
  %v466 = vpop.f32.mrb[0].mxu0
  %v467 = vadd.f32 0.0, %v466
  %v468 = vpop.f32.mrb[0].mxu0
  %469 = vmatprep.mubr.bf16.mxu0 0
  %470 = vmatmul.mubr.bf16.gmra.mrb[0].mxu0 %v359
  %v471 = vpop.f32.mrb[0].mxu0
  %v472 = vadd.f32 0.0, %v471
  %v473 = vpop.f32.mrb[0].mxu0
  %v474 = vpop.f32.mrb[0].mxu0
  %v475 = vadd.f32 0.0, %v474
  %v476 = vpop.f32.mrb[0].mxu0
  %477 = vdwg.mxu0
  %v478 = vadd.f32 %v302, %v448
  %v479 = vadd.f32 %v305, %v451
  %v480 = vadd.f32 %v310, %v456
  %v481 = vadd.f32 %v313, %v459
  %v482 = vadd.f32 %v318, %v464
  %v483 = vadd.f32 %v321, %v467
  %v484 = vadd.f32 %v326, %v472
  %v485 = vadd.f32 %v329, %v475
  %s486 = scalar_lea.vmem %s1, 192
  %v487 = vld [vmem:[%s486] sm:$0xf]
  %v488 = vld [vmem:[%s486 + $0x4] sm:$0xf]
  %v489 = vld [vmem:[%s486 + $0x8] sm:$0xf]
  %v490 = vld [vmem:[%s486 + $0xc] sm:$0xf]
  %v491 = vld [vmem:[%s486 + $0x10] sm:$0xf]
  %v492 = vld [vmem:[%s486 + $0x14] sm:$0xf]
  %v493 = vld [vmem:[%s486 + $0x18] sm:$0xf]
  %v494 = vld [vmem:[%s486 + $0x1c] sm:$0xf]
  %v495 = vld [vmem:[%s486 + $0x20] sm:$0xf]
  %v496 = vld [vmem:[%s486 + $0x24] sm:$0xf]
  %v497 = vld [vmem:[%s486 + $0x28] sm:$0xf]
  %v498 = vld [vmem:[%s486 + $0x2c] sm:$0xf]
  %v499 = vld [vmem:[%s486 + $0x30] sm:$0xf]
  %v500 = vld [vmem:[%s486 + $0x34] sm:$0xf]
  %v501 = vld [vmem:[%s486 + $0x38] sm:$0xf]
  %v502 = vld [vmem:[%s486 + $0x3c] sm:$0xf]
  %vm503 = vcmask 1044480
  %v504 = vrot.slane %v33, 3
  %v505 = vrot.slane %v34, 3
  %v506 = vsel %vm503, %v504, %v505
  %v507 = vrot.slane %v35, 3
  %v508 = vsel %vm503, %v505, %v507
  %v509 = vrot.slane %v36, 3
  %v510 = vsel %vm503, %v507, %v509
  %v531 = vunpack.c.l.b16 %v487
  %v532 = vunpack.c.l.b16 %v488
  %v533 = vunpack.c.l.b16 %v489
  %v534 = vunpack.c.l.b16 %v490
  %v535 = vunpack.c.l.b16 %v491
  %v536 = vunpack.c.l.b16 %v492
  %v537 = vunpack.c.l.b16 %v493
  %v538 = vunpack.c.l.b16 %v494
  %v539 = vunpack.c.l.b16 %v495
  %v540 = vunpack.c.l.b16 %v496
  %v541 = vunpack.c.l.b16 %v497
  %v542 = vunpack.c.l.b16 %v498
  %v543 = vunpack.c.l.b16 %v499
  %v544 = vunpack.c.l.b16 %v500
  %v545 = vunpack.c.l.b16 %v501
  %v546 = vunpack.c.l.b16 %v502
  %v547 = vpack.c.b16 %v532, %v531
  %v548 = vpack.c.b16 %v534, %v533
  %v549 = vpack.c.b16 %v536, %v535
  %v550 = vpack.c.b16 %v538, %v537
  %v551 = vpack.c.b16 %v540, %v539
  %v552 = vpack.c.b16 %v542, %v541
  %v553 = vpack.c.b16 %v544, %v543
  %v554 = vpack.c.b16 %v546, %v545
  %563 = vmatprep.subr.bf16.mxu0 0
  %564 = vmatpush1.bf16.msra.mxu0 %v547
  %565 = vmatprep.subr.bf16.mxu0 0
  %566 = vmatpush1.bf16.msra.mxu0 %v548
  %567 = vmatprep.subr.bf16.mxu0 0
  %568 = vmatpush1.bf16.msra.mxu0 %v549
  %569 = vmatprep.subr.bf16.mxu0 0
  %570 = vmatpush1.bf16.msra.mxu0 %v550
  %571 = vmatprep.subr.bf16.mxu0 0
  %572 = vmatpush1.bf16.msra.mxu0 %v551
  %573 = vmatprep.subr.bf16.mxu0 0
  %574 = vmatpush1.bf16.msra.mxu0 %v552
  %575 = vmatprep.subr.bf16.mxu0 0
  %576 = vmatpush1.bf16.msra.mxu0 %v553
  %577 = vmatprep.subr.bf16.mxu0 0
  %578 = vmatpush1.bf16.msra.mxu0 %v554
  %579 = vmatprep.subr.bf16.mxu0 0
  %580 = vmatpush1.bf16.msra.mxu0 0
  %581 = vmatprep.subr.bf16.mxu0 0
  %582 = vmatpush1.bf16.msra.mxu0 0
  %583 = vmatprep.subr.bf16.mxu0 0
  %584 = vmatpush1.bf16.msra.mxu0 0
  %585 = vmatprep.subr.bf16.mxu0 0
  %586 = vmatpush1.bf16.msra.mxu0 0
  %587 = vmatprep.subr.bf16.mxu0 0
  %588 = vmatpush1.bf16.msra.mxu0 0
  %589 = vmatprep.subr.bf16.mxu0 0
  %590 = vmatpush1.bf16.msra.mxu0 0
  %591 = vmatprep.subr.bf16.mxu0 0
  %592 = vmatpush1.bf16.msra.mxu0 0
  %593 = vmatprep.subr.bf16.mxu0 0
  %594 = vmatpush1.bf16.msra.mxu0 0
  %595 = vmatprep.mubr.bf16.mxu0 0
  %596 = vmatmul.mubr.bf16.gmra.mrb[0].mxu0 %v506
  %v597 = vpop.f32.mrb[0].mxu0
  %v598 = vadd.f32 0.0, %v597
  %v599 = vpop.f32.mrb[0].mxu0
  %v600 = vpop.f32.mrb[0].mxu0
  %v601 = vadd.f32 0.0, %v600
  %v602 = vpop.f32.mrb[0].mxu0
  %603 = vmatprep.mubr.bf16.mxu0 0
  %604 = vmatmul.mubr.bf16.gmra.mrb[0].mxu0 %v508
  %v605 = vpop.f32.mrb[0].mxu0
  %v606 = vadd.f32 0.0, %v605
  %v607 = vpop.f32.mrb[0].mxu0
  %v608 = vpop.f32.mrb[0].mxu0
  %v609 = vadd.f32 0.0, %v608
  %v610 = vpop.f32.mrb[0].mxu0
  %611 = vmatprep.mubr.bf16.mxu0 0
  %612 = vmatmul.mubr.bf16.gmra.mrb[0].mxu0 %v510
  %v613 = vpop.f32.mrb[0].mxu0
  %v614 = vadd.f32 0.0, %v613
  %v615 = vpop.f32.mrb[0].mxu0
  %v616 = vpop.f32.mrb[0].mxu0
  %v617 = vadd.f32 0.0, %v616
  %v618 = vpop.f32.mrb[0].mxu0
  %619 = vmatprep.mubr.bf16.mxu0 0
  %620 = vmatmul.mubr.bf16.gmra.mrb[0].mxu0 %v509
  %v621 = vpop.f32.mrb[0].mxu0
  %v622 = vadd.f32 0.0, %v621
  %v623 = vpop.f32.mrb[0].mxu0
  %v624 = vpop.f32.mrb[0].mxu0
  %v625 = vadd.f32 0.0, %v624
  %v626 = vpop.f32.mrb[0].mxu0
  %627 = vdwg.mxu0
  %v628 = vadd.f32 %v478, %v598
  %v629 = vadd.f32 %v479, %v601
  %v630 = vadd.f32 %v480, %v606
  %v631 = vadd.f32 %v481, %v609
  %v632 = vadd.f32 %v482, %v614
  %v633 = vadd.f32 %v483, %v617
  %v634 = vadd.f32 %v484, %v622
  %v635 = vadd.f32 %v485, %v625
  %v636 = vpack.c.bf16 %v32, %v32
  %s637 = scalar_lea.vmem %s1, 256
  %v638 = vld [vmem:[%s637] sm:$0xf]
  %v639 = vld [vmem:[%s637 + $0x4] sm:$0xf]
  %v640 = vld [vmem:[%s637 + $0x8] sm:$0xf]
  %v641 = vld [vmem:[%s637 + $0xc] sm:$0xf]
  %v642 = vld [vmem:[%s637 + $0x10] sm:$0xf]
  %v643 = vld [vmem:[%s637 + $0x14] sm:$0xf]
  %v644 = vld [vmem:[%s637 + $0x18] sm:$0xf]
  %v645 = vld [vmem:[%s637 + $0x1c] sm:$0xf]
  %v646 = vld [vmem:[%s637 + $0x20] sm:$0xf]
  %v647 = vld [vmem:[%s637 + $0x24] sm:$0xf]
  %v648 = vld [vmem:[%s637 + $0x28] sm:$0xf]
  %v649 = vld [vmem:[%s637 + $0x2c] sm:$0xf]
  %v650 = vld [vmem:[%s637 + $0x30] sm:$0xf]
  %v651 = vld [vmem:[%s637 + $0x34] sm:$0xf]
  %v652 = vld [vmem:[%s637 + $0x38] sm:$0xf]
  %v653 = vld [vmem:[%s637 + $0x3c] sm:$0xf]
  %vm654 = vsmask.f32 4352
  %v655 = vrot.slane %v72, 3
  %v656 = vrot.slane %v74, 4
  %v657 = vor.u32 %v655, %v656
  %v658 = vrot.slane %v83, 3
  %v659 = vrot.slane %v79, 4
  %v660 = vor.u32 %v658, %v659
  %v661 = vsel %vm654, %v657, %v660
  %v662 = vrot.slane %v91, 3
  %v663 = vrot.slane %v87, 4
  %v664 = vor.u32 %v662, %v663
  %v665 = vsel %vm654, %v660, %v664
  %v666 = vrot.slane %v99, 3
  %v667 = vrot.slane %v95, 4
  %v668 = vor.u32 %v666, %v667
  %v669 = vsel %vm654, %v664, %v668
  %v671 = vshll.u32 %v636, 16
  %v673 = vrot.slane %v671, 4
  %v674 = vsel %vm654, %v668, %v673
  %v695 = vunpack.c.l.b16 %v638
  %v696 = vunpack.c.l.b16 %v639
  %v697 = vunpack.c.l.b16 %v640
  %v698 = vunpack.c.l.b16 %v641
  %v699 = vunpack.c.l.b16 %v642
  %v700 = vunpack.c.l.b16 %v643
  %v701 = vunpack.c.l.b16 %v644
  %v702 = vunpack.c.l.b16 %v645
  %v703 = vunpack.c.l.b16 %v646
  %v704 = vunpack.c.l.b16 %v647
  %v705 = vunpack.c.l.b16 %v648
  %v706 = vunpack.c.l.b16 %v649
  %v707 = vunpack.c.l.b16 %v650
  %v708 = vunpack.c.l.b16 %v651
  %v709 = vunpack.c.l.b16 %v652
  %v710 = vunpack.c.l.b16 %v653
  %v711 = vpack.c.b16 %v696, %v695
  %v712 = vpack.c.b16 %v698, %v697
  %v713 = vpack.c.b16 %v700, %v699
  %v714 = vpack.c.b16 %v702, %v701
  %v715 = vpack.c.b16 %v704, %v703
  %v716 = vpack.c.b16 %v706, %v705
  %v717 = vpack.c.b16 %v708, %v707
  %v718 = vpack.c.b16 %v710, %v709
  %727 = vmatprep.subr.bf16.mxu0 0
  %728 = vmatpush1.bf16.msra.mxu0 %v711
  %729 = vmatprep.subr.bf16.mxu0 0
  %730 = vmatpush1.bf16.msra.mxu0 %v712
  %731 = vmatprep.subr.bf16.mxu0 0
  %732 = vmatpush1.bf16.msra.mxu0 %v713
  %733 = vmatprep.subr.bf16.mxu0 0
  %734 = vmatpush1.bf16.msra.mxu0 %v714
  %735 = vmatprep.subr.bf16.mxu0 0
  %736 = vmatpush1.bf16.msra.mxu0 %v715
  %737 = vmatprep.subr.bf16.mxu0 0
  %738 = vmatpush1.bf16.msra.mxu0 %v716
  %739 = vmatprep.subr.bf16.mxu0 0
  %740 = vmatpush1.bf16.msra.mxu0 %v717
  %741 = vmatprep.subr.bf16.mxu0 0
  %742 = vmatpush1.bf16.msra.mxu0 %v718
  %743 = vmatprep.subr.bf16.mxu0 0
  %744 = vmatpush1.bf16.msra.mxu0 0
  %745 = vmatprep.subr.bf16.mxu0 0
  %746 = vmatpush1.bf16.msra.mxu0 0
  %747 = vmatprep.subr.bf16.mxu0 0
  %748 = vmatpush1.bf16.msra.mxu0 0
  %749 = vmatprep.subr.bf16.mxu0 0
  %750 = vmatpush1.bf16.msra.mxu0 0
  %751 = vmatprep.subr.bf16.mxu0 0
  %752 = vmatpush1.bf16.msra.mxu0 0
  %753 = vmatprep.subr.bf16.mxu0 0
  %754 = vmatpush1.bf16.msra.mxu0 0
  %755 = vmatprep.subr.bf16.mxu0 0
  %756 = vmatpush1.bf16.msra.mxu0 0
  %757 = vmatprep.subr.bf16.mxu0 0
  %758 = vmatpush1.bf16.msra.mxu0 0
  %759 = vmatprep.mubr.bf16.mxu0 0
  %760 = vmatmul.mubr.bf16.gmra.mrb[0].mxu0 %v661
  %v761 = vpop.f32.mrb[0].mxu0
  %v762 = vadd.f32 0.0, %v761
  %v763 = vpop.f32.mrb[0].mxu0
  %v764 = vpop.f32.mrb[0].mxu0
  %v765 = vadd.f32 0.0, %v764
  %v766 = vpop.f32.mrb[0].mxu0
  %767 = vmatprep.mubr.bf16.mxu0 0
  %768 = vmatmul.mubr.bf16.gmra.mrb[0].mxu0 %v665
  %v769 = vpop.f32.mrb[0].mxu0
  %v770 = vadd.f32 0.0, %v769
  %v771 = vpop.f32.mrb[0].mxu0
  %v772 = vpop.f32.mrb[0].mxu0
  %v773 = vadd.f32 0.0, %v772
  %v774 = vpop.f32.mrb[0].mxu0
  %775 = vmatprep.mubr.bf16.mxu0 0
  %776 = vmatmul.mubr.bf16.gmra.mrb[0].mxu0 %v669
  %v777 = vpop.f32.mrb[0].mxu0
  %v778 = vadd.f32 0.0, %v777
  %v779 = vpop.f32.mrb[0].mxu0
  %v780 = vpop.f32.mrb[0].mxu0
  %v781 = vadd.f32 0.0, %v780
  %v782 = vpop.f32.mrb[0].mxu0
  %783 = vmatprep.mubr.bf16.mxu0 0
  %784 = vmatmul.mubr.bf16.gmra.mrb[0].mxu0 %v674
  %v785 = vpop.f32.mrb[0].mxu0
  %v786 = vadd.f32 0.0, %v785
  %v787 = vpop.f32.mrb[0].mxu0
  %v788 = vpop.f32.mrb[0].mxu0
  %v789 = vadd.f32 0.0, %v788
  %v790 = vpop.f32.mrb[0].mxu0
  %791 = vdwg.mxu0
  %v792 = vadd.f32 %v628, %v762
  %v793 = vadd.f32 %v629, %v765
  %v794 = vadd.f32 %v630, %v770
  %v795 = vadd.f32 %v631, %v773
  %v796 = vadd.f32 %v632, %v778
  %v797 = vadd.f32 %v633, %v781
  %v798 = vadd.f32 %v634, %v786
  %v799 = vadd.f32 %v635, %v789
  %v800 = vpack.c.bf16 %v26, %v25
  %v801 = vpack.c.bf16 %v28, %v27
  %v802 = vpack.c.bf16 %v30, %v29
  %v803 = vpack.c.bf16 %v32, %v31
  %s804 = scalar_lea.vmem %s1, 320
  %v805 = vld [vmem:[%s804] sm:$0xf]
  %v806 = vld [vmem:[%s804 + $0x4] sm:$0xf]
  %v807 = vld [vmem:[%s804 + $0x8] sm:$0xf]
  %v808 = vld [vmem:[%s804 + $0xc] sm:$0xf]
  %v809 = vld [vmem:[%s804 + $0x10] sm:$0xf]
  %v810 = vld [vmem:[%s804 + $0x14] sm:$0xf]
  %v811 = vld [vmem:[%s804 + $0x18] sm:$0xf]
  %v812 = vld [vmem:[%s804 + $0x1c] sm:$0xf]
  %v813 = vld [vmem:[%s804 + $0x20] sm:$0xf]
  %v814 = vld [vmem:[%s804 + $0x24] sm:$0xf]
  %v815 = vld [vmem:[%s804 + $0x28] sm:$0xf]
  %v816 = vld [vmem:[%s804 + $0x2c] sm:$0xf]
  %v817 = vld [vmem:[%s804 + $0x30] sm:$0xf]
  %v818 = vld [vmem:[%s804 + $0x34] sm:$0xf]
  %v819 = vld [vmem:[%s804 + $0x38] sm:$0xf]
  %v820 = vld [vmem:[%s804 + $0x3c] sm:$0xf]
  %v837 = vunpack.c.l.b16 %v805
  %v838 = vunpack.c.l.b16 %v806
  %v839 = vunpack.c.l.b16 %v807
  %v840 = vunpack.c.l.b16 %v808
  %v841 = vunpack.c.l.b16 %v809
  %v842 = vunpack.c.l.b16 %v810
  %v843 = vunpack.c.l.b16 %v811
  %v844 = vunpack.c.l.b16 %v812
  %v845 = vunpack.c.l.b16 %v813
  %v846 = vunpack.c.l.b16 %v814
  %v847 = vunpack.c.l.b16 %v815
  %v848 = vunpack.c.l.b16 %v816
  %v849 = vunpack.c.l.b16 %v817
  %v850 = vunpack.c.l.b16 %v818
  %v851 = vunpack.c.l.b16 %v819
  %v852 = vunpack.c.l.b16 %v820
  %v853 = vpack.c.b16 %v838, %v837
  %v854 = vpack.c.b16 %v840, %v839
  %v855 = vpack.c.b16 %v842, %v841
  %v856 = vpack.c.b16 %v844, %v843
  %v857 = vpack.c.b16 %v846, %v845
  %v858 = vpack.c.b16 %v848, %v847
  %v859 = vpack.c.b16 %v850, %v849
  %v860 = vpack.c.b16 %v852, %v851
  %869 = vmatprep.subr.bf16.mxu0 0
  %870 = vmatpush1.bf16.msra.mxu0 %v853
  %871 = vmatprep.subr.bf16.mxu0 0
  %872 = vmatpush1.bf16.msra.mxu0 %v854
  %873 = vmatprep.subr.bf16.mxu0 0
  %874 = vmatpush1.bf16.msra.mxu0 %v855
  %875 = vmatprep.subr.bf16.mxu0 0
  %876 = vmatpush1.bf16.msra.mxu0 %v856
  %877 = vmatprep.subr.bf16.mxu0 0
  %878 = vmatpush1.bf16.msra.mxu0 %v857
  %879 = vmatprep.subr.bf16.mxu0 0
  %880 = vmatpush1.bf16.msra.mxu0 %v858
  %881 = vmatprep.subr.bf16.mxu0 0
  %882 = vmatpush1.bf16.msra.mxu0 %v859
  %883 = vmatprep.subr.bf16.mxu0 0
  %884 = vmatpush1.bf16.msra.mxu0 %v860
  %885 = vmatprep.subr.bf16.mxu0 0
  %886 = vmatpush1.bf16.msra.mxu0 0
  %887 = vmatprep.subr.bf16.mxu0 0
  %888 = vmatpush1.bf16.msra.mxu0 0
  %889 = vmatprep.subr.bf16.mxu0 0
  %890 = vmatpush1.bf16.msra.mxu0 0
  %891 = vmatprep.subr.bf16.mxu0 0
  %892 = vmatpush1.bf16.msra.mxu0 0
  %893 = vmatprep.subr.bf16.mxu0 0
  %894 = vmatpush1.bf16.msra.mxu0 0
  %895 = vmatprep.subr.bf16.mxu0 0
  %896 = vmatpush1.bf16.msra.mxu0 0
  %897 = vmatprep.subr.bf16.mxu0 0
  %898 = vmatpush1.bf16.msra.mxu0 0
  %899 = vmatprep.subr.bf16.mxu0 0
  %900 = vmatpush1.bf16.msra.mxu0 0
  %901 = vmatprep.mubr.bf16.mxu0 0
  %902 = vmatmul.mubr.bf16.gmra.mrb[0].mxu0 %v800
  %v903 = vpop.f32.mrb[0].mxu0
  %v904 = vadd.f32 0.0, %v903
  %v905 = vpop.f32.mrb[0].mxu0
  %v906 = vpop.f32.mrb[0].mxu0
  %v907 = vadd.f32 0.0, %v906
  %v908 = vpop.f32.mrb[0].mxu0
  %909 = vmatprep.mubr.bf16.mxu0 0
  %910 = vmatmul.mubr.bf16.gmra.mrb[0].mxu0 %v801
  %v911 = vpop.f32.mrb[0].mxu0
  %v912 = vadd.f32 0.0, %v911
  %v913 = vpop.f32.mrb[0].mxu0
  %v914 = vpop.f32.mrb[0].mxu0
  %v915 = vadd.f32 0.0, %v914
  %v916 = vpop.f32.mrb[0].mxu0
  %917 = vmatprep.mubr.bf16.mxu0 0
  %918 = vmatmul.mubr.bf16.gmra.mrb[0].mxu0 %v802
  %v919 = vpop.f32.mrb[0].mxu0
  %v920 = vadd.f32 0.0, %v919
  %v921 = vpop.f32.mrb[0].mxu0
  %v922 = vpop.f32.mrb[0].mxu0
  %v923 = vadd.f32 0.0, %v922
  %v924 = vpop.f32.mrb[0].mxu0
  %925 = vmatprep.mubr.bf16.mxu0 0
  %926 = vmatmul.mubr.bf16.gmra.mrb[0].mxu0 %v803
  %v927 = vpop.f32.mrb[0].mxu0
  %v928 = vadd.f32 0.0, %v927
  %v929 = vpop.f32.mrb[0].mxu0
  %v930 = vpop.f32.mrb[0].mxu0
  %v931 = vadd.f32 0.0, %v930
  %v932 = vpop.f32.mrb[0].mxu0
  %933 = vdwg.mxu0
  %v934 = vadd.f32 %v792, %v904
  %v935 = vadd.f32 %v793, %v907
  %v936 = vadd.f32 %v794, %v912
  %v937 = vadd.f32 %v795, %v915
  %v938 = vadd.f32 %v796, %v920
  %v939 = vadd.f32 %v797, %v923
  %v940 = vadd.f32 %v798, %v928
  %v941 = vadd.f32 %v799, %v931
  %s942 = scalar_lea.vmem %s1, 384
  %v943 = vld [vmem:[%s942] sm:$0xf]
  %v944 = vld [vmem:[%s942 + $0x4] sm:$0xf]
  %v945 = vld [vmem:[%s942 + $0x8] sm:$0xf]
  %v946 = vld [vmem:[%s942 + $0xc] sm:$0xf]
  %v947 = vld [vmem:[%s942 + $0x10] sm:$0xf]
  %v948 = vld [vmem:[%s942 + $0x14] sm:$0xf]
  %v949 = vld [vmem:[%s942 + $0x18] sm:$0xf]
  %v950 = vld [vmem:[%s942 + $0x1c] sm:$0xf]
  %v951 = vld [vmem:[%s942 + $0x20] sm:$0xf]
  %v952 = vld [vmem:[%s942 + $0x24] sm:$0xf]
  %v953 = vld [vmem:[%s942 + $0x28] sm:$0xf]
  %v954 = vld [vmem:[%s942 + $0x2c] sm:$0xf]
  %v955 = vld [vmem:[%s942 + $0x30] sm:$0xf]
  %v956 = vld [vmem:[%s942 + $0x34] sm:$0xf]
  %v957 = vld [vmem:[%s942 + $0x38] sm:$0xf]
  %v958 = vld [vmem:[%s942 + $0x3c] sm:$0xf]
  %vm963 = vcmask 1045504
  %v964 = vrot.slane %v800, 2
  %v965 = vrot.slane %v801, 2
  %v966 = vsel %vm963, %v964, %v965
  %v967 = vrot.slane %v802, 2
  %v968 = vsel %vm963, %v965, %v967
  %v969 = vrot.slane %v803, 2
  %v970 = vsel %vm963, %v967, %v969
  %v991 = vunpack.c.l.b16 %v943
  %v992 = vunpack.c.l.b16 %v944
  %v993 = vunpack.c.l.b16 %v945
  %v994 = vunpack.c.l.b16 %v946
  %v995 = vunpack.c.l.b16 %v947
  %v996 = vunpack.c.l.b16 %v948
  %v997 = vunpack.c.l.b16 %v949
  %v998 = vunpack.c.l.b16 %v950
  %v999 = vunpack.c.l.b16 %v951
  %v1000 = vunpack.c.l.b16 %v952
  %v1001 = vunpack.c.l.b16 %v953
  %v1002 = vunpack.c.l.b16 %v954
  %v1003 = vunpack.c.l.b16 %v955
  %v1004 = vunpack.c.l.b16 %v956
  %v1005 = vunpack.c.l.b16 %v957
  %v1006 = vunpack.c.l.b16 %v958
  %v1007 = vpack.c.b16 %v992, %v991
  %v1008 = vpack.c.b16 %v994, %v993
  %v1009 = vpack.c.b16 %v996, %v995
  %v1010 = vpack.c.b16 %v998, %v997
  %v1011 = vpack.c.b16 %v1000, %v999
  %v1012 = vpack.c.b16 %v1002, %v1001
  %v1013 = vpack.c.b16 %v1004, %v1003
  %v1014 = vpack.c.b16 %v1006, %v1005
  %1023 = vmatprep.subr.bf16.mxu0 0
  %1024 = vmatpush1.bf16.msra.mxu0 %v1007
  %1025 = vmatprep.subr.bf16.mxu0 0
  %1026 = vmatpush1.bf16.msra.mxu0 %v1008
  %1027 = vmatprep.subr.bf16.mxu0 0
  %1028 = vmatpush1.bf16.msra.mxu0 %v1009
  %1029 = vmatprep.subr.bf16.mxu0 0
  %1030 = vmatpush1.bf16.msra.mxu0 %v1010
  %1031 = vmatprep.subr.bf16.mxu0 0
  %1032 = vmatpush1.bf16.msra.mxu0 %v1011
  %1033 = vmatprep.subr.bf16.mxu0 0
  %1034 = vmatpush1.bf16.msra.mxu0 %v1012
  %1035 = vmatprep.subr.bf16.mxu0 0
  %1036 = vmatpush1.bf16.msra.mxu0 %v1013
  %1037 = vmatprep.subr.bf16.mxu0 0
  %1038 = vmatpush1.bf16.msra.mxu0 %v1014
  %1039 = vmatprep.subr.bf16.mxu0 0
  %1040 = vmatpush1.bf16.msra.mxu0 0
  %1041 = vmatprep.subr.bf16.mxu0 0
  %1042 = vmatpush1.bf16.msra.mxu0 0
  %1043 = vmatprep.subr.bf16.mxu0 0
  %1044 = vmatpush1.bf16.msra.mxu0 0
  %1045 = vmatprep.subr.bf16.mxu0 0
  %1046 = vmatpush1.bf16.msra.mxu0 0
  %1047 = vmatprep.subr.bf16.mxu0 0
  %1048 = vmatpush1.bf16.msra.mxu0 0
  %1049 = vmatprep.subr.bf16.mxu0 0
  %1050 = vmatpush1.bf16.msra.mxu0 0
  %1051 = vmatprep.subr.bf16.mxu0 0
  %1052 = vmatpush1.bf16.msra.mxu0 0
  %1053 = vmatprep.subr.bf16.mxu0 0
  %1054 = vmatpush1.bf16.msra.mxu0 0
  %1055 = vmatprep.mubr.bf16.mxu0 0
  %1056 = vmatmul.mubr.bf16.gmra.mrb[0].mxu0 %v966
  %v1057 = vpop.f32.mrb[0].mxu0
  %v1058 = vadd.f32 0.0, %v1057
  %v1059 = vpop.f32.mrb[0].mxu0
  %v1060 = vpop.f32.mrb[0].mxu0
  %v1061 = vadd.f32 0.0, %v1060
  %v1062 = vpop.f32.mrb[0].mxu0
  %1063 = vmatprep.mubr.bf16.mxu0 0
  %1064 = vmatmul.mubr.bf16.gmra.mrb[0].mxu0 %v968
  %v1065 = vpop.f32.mrb[0].mxu0
  %v1066 = vadd.f32 0.0, %v1065
  %v1067 = vpop.f32.mrb[0].mxu0
  %v1068 = vpop.f32.mrb[0].mxu0
  %v1069 = vadd.f32 0.0, %v1068
  %v1070 = vpop.f32.mrb[0].mxu0
  %1071 = vmatprep.mubr.bf16.mxu0 0
  %1072 = vmatmul.mubr.bf16.gmra.mrb[0].mxu0 %v970
  %v1073 = vpop.f32.mrb[0].mxu0
  %v1074 = vadd.f32 0.0, %v1073
  %v1075 = vpop.f32.mrb[0].mxu0
  %v1076 = vpop.f32.mrb[0].mxu0
  %v1077 = vadd.f32 0.0, %v1076
  %v1078 = vpop.f32.mrb[0].mxu0
  %1079 = vmatprep.mubr.bf16.mxu0 0
  %1080 = vmatmul.mubr.bf16.gmra.mrb[0].mxu0 %v969
  %v1081 = vpop.f32.mrb[0].mxu0
  %v1082 = vadd.f32 0.0, %v1081
  %v1083 = vpop.f32.mrb[0].mxu0
  %v1084 = vpop.f32.mrb[0].mxu0
  %v1085 = vadd.f32 0.0, %v1084
  %v1086 = vpop.f32.mrb[0].mxu0
  %1087 = vdwg.mxu0
  %v1088 = vadd.f32 %v934, %v1058
  %v1089 = vadd.f32 %v935, %v1061
  %v1090 = vadd.f32 %v936, %v1066
  %v1091 = vadd.f32 %v937, %v1069
  %v1092 = vadd.f32 %v938, %v1074
  %v1093 = vadd.f32 %v939, %v1077
  %v1094 = vadd.f32 %v940, %v1082
  %v1095 = vadd.f32 %v941, %v1085
  %s1096 = scalar_lea.vmem %s1, 448
  %v1097 = vld [vmem:[%s1096] sm:$0xf]
  %v1098 = vld [vmem:[%s1096 + $0x4] sm:$0xf]
  %v1099 = vld [vmem:[%s1096 + $0x8] sm:$0xf]
  %v1100 = vld [vmem:[%s1096 + $0xc] sm:$0xf]
  %v1101 = vld [vmem:[%s1096 + $0x10] sm:$0xf]
  %v1102 = vld [vmem:[%s1096 + $0x14] sm:$0xf]
  %v1103 = vld [vmem:[%s1096 + $0x18] sm:$0xf]
  %v1104 = vld [vmem:[%s1096 + $0x1c] sm:$0xf]
  %v1105 = vld [vmem:[%s1096 + $0x20] sm:$0xf]
  %v1106 = vld [vmem:[%s1096 + $0x24] sm:$0xf]
  %v1107 = vld [vmem:[%s1096 + $0x28] sm:$0xf]
  %v1108 = vld [vmem:[%s1096 + $0x2c] sm:$0xf]
  %v1109 = vld [vmem:[%s1096 + $0x30] sm:$0xf]
  %v1110 = vld [vmem:[%s1096 + $0x34] sm:$0xf]
  %v1111 = vld [vmem:[%s1096 + $0x38] sm:$0xf]
  %v1112 = vld [vmem:[%s1096 + $0x3c] sm:$0xf]
  %vm1113 = vsmask.f32 5376
  %v1115 = vshrl.u32 %v800, 16
  %v1117 = vrot.slane %v1115, 2
  %v1118 = vshll.u32 %v800, 16
  %v1120 = vrot.slane %v1118, 3
  %v1121 = vor.u32 %v1117, %v1120
  %v1123 = vshrl.u32 %v801, 16
  %v1125 = vrot.slane %v1123, 2
  %v1126 = vshll.u32 %v801, 16
  %v1128 = vrot.slane %v1126, 3
  %v1129 = vor.u32 %v1125, %v1128
  %v1130 = vsel %vm1113, %v1121, %v1129
  %v1132 = vshrl.u32 %v802, 16
  %v1134 = vrot.slane %v1132, 2
  %v1135 = vshll.u32 %v802, 16
  %v1137 = vrot.slane %v1135, 3
  %v1138 = vor.u32 %v1134, %v1137
  %v1139 = vsel %vm1113, %v1129, %v1138
  %v1141 = vshrl.u32 %v803, 16
  %v1143 = vrot.slane %v1141, 2
  %v1144 = vshll.u32 %v803, 16
  %v1146 = vrot.slane %v1144, 3
  %v1147 = vor.u32 %v1143, %v1146
  %v1148 = vsel %vm1113, %v1138, %v1147
  %v1169 = vunpack.c.l.b16 %v1097
  %v1170 = vunpack.c.l.b16 %v1098
  %v1171 = vunpack.c.l.b16 %v1099
  %v1172 = vunpack.c.l.b16 %v1100
  %v1173 = vunpack.c.l.b16 %v1101
  %v1174 = vunpack.c.l.b16 %v1102
  %v1175 = vunpack.c.l.b16 %v1103
  %v1176 = vunpack.c.l.b16 %v1104
  %v1177 = vunpack.c.l.b16 %v1105
  %v1178 = vunpack.c.l.b16 %v1106
  %v1179 = vunpack.c.l.b16 %v1107
  %v1180 = vunpack.c.l.b16 %v1108
  %v1181 = vunpack.c.l.b16 %v1109
  %v1182 = vunpack.c.l.b16 %v1110
  %v1183 = vunpack.c.l.b16 %v1111
  %v1184 = vunpack.c.l.b16 %v1112
  %v1185 = vpack.c.b16 %v1170, %v1169
  %v1186 = vpack.c.b16 %v1172, %v1171
  %v1187 = vpack.c.b16 %v1174, %v1173
  %v1188 = vpack.c.b16 %v1176, %v1175
  %v1189 = vpack.c.b16 %v1178, %v1177
  %v1190 = vpack.c.b16 %v1180, %v1179
  %v1191 = vpack.c.b16 %v1182, %v1181
  %v1192 = vpack.c.b16 %v1184, %v1183
  %1201 = vmatprep.subr.bf16.mxu0 0
  %1202 = vmatpush1.bf16.msra.mxu0 %v1185
  %1203 = vmatprep.subr.bf16.mxu0 0
  %1204 = vmatpush1.bf16.msra.mxu0 %v1186
  %1205 = vmatprep.subr.bf16.mxu0 0
  %1206 = vmatpush1.bf16.msra.mxu0 %v1187
  %1207 = vmatprep.subr.bf16.mxu0 0
  %1208 = vmatpush1.bf16.msra.mxu0 %v1188
  %1209 = vmatprep.subr.bf16.mxu0 0
  %1210 = vmatpush1.bf16.msra.mxu0 %v1189
  %1211 = vmatprep.subr.bf16.mxu0 0
  %1212 = vmatpush1.bf16.msra.mxu0 %v1190
  %1213 = vmatprep.subr.bf16.mxu0 0
  %1214 = vmatpush1.bf16.msra.mxu0 %v1191
  %1215 = vmatprep.subr.bf16.mxu0 0
  %1216 = vmatpush1.bf16.msra.mxu0 %v1192
  %1217 = vmatprep.subr.bf16.mxu0 0
  %1218 = vmatpush1.bf16.msra.mxu0 0
  %1219 = vmatprep.subr.bf16.mxu0 0
  %1220 = vmatpush1.bf16.msra.mxu0 0
  %1221 = vmatprep.subr.bf16.mxu0 0
  %1222 = vmatpush1.bf16.msra.mxu0 0
  %1223 = vmatprep.subr.bf16.mxu0 0
  %1224 = vmatpush1.bf16.msra.mxu0 0
  %1225 = vmatprep.subr.bf16.mxu0 0
  %1226 = vmatpush1.bf16.msra.mxu0 0
  %1227 = vmatprep.subr.bf16.mxu0 0
  %1228 = vmatpush1.bf16.msra.mxu0 0
  %1229 = vmatprep.subr.bf16.mxu0 0
  %1230 = vmatpush1.bf16.msra.mxu0 0
  %1231 = vmatprep.subr.bf16.mxu0 0
  %1232 = vmatpush1.bf16.msra.mxu0 0
  %1233 = vmatprep.mubr.bf16.mxu0 0
  %1234 = vmatmul.mubr.bf16.gmra.mrb[0].mxu0 %v1130
  %v1235 = vpop.f32.mrb[0].mxu0
  %v1236 = vadd.f32 0.0, %v1235
  %v1237 = vpop.f32.mrb[0].mxu0
  %v1238 = vpop.f32.mrb[0].mxu0
  %v1239 = vadd.f32 0.0, %v1238
  %v1240 = vpop.f32.mrb[0].mxu0
  %1241 = vmatprep.mubr.bf16.mxu0 0
  %1242 = vmatmul.mubr.bf16.gmra.mrb[0].mxu0 %v1139
  %v1243 = vpop.f32.mrb[0].mxu0
  %v1244 = vadd.f32 0.0, %v1243
  %v1245 = vpop.f32.mrb[0].mxu0
  %v1246 = vpop.f32.mrb[0].mxu0
  %v1247 = vadd.f32 0.0, %v1246
  %v1248 = vpop.f32.mrb[0].mxu0
  %1249 = vmatprep.mubr.bf16.mxu0 0
  %1250 = vmatmul.mubr.bf16.gmra.mrb[0].mxu0 %v1148
  %v1251 = vpop.f32.mrb[0].mxu0
  %v1252 = vadd.f32 0.0, %v1251
  %v1253 = vpop.f32.mrb[0].mxu0
  %v1254 = vpop.f32.mrb[0].mxu0
  %v1255 = vadd.f32 0.0, %v1254
  %v1256 = vpop.f32.mrb[0].mxu0
  %1257 = vmatprep.mubr.bf16.mxu0 0
  %1258 = vmatmul.mubr.bf16.gmra.mrb[0].mxu0 %v1147
  %v1259 = vpop.f32.mrb[0].mxu0
  %v1260 = vadd.f32 0.0, %v1259
  %v1261 = vpop.f32.mrb[0].mxu0
  %v1262 = vpop.f32.mrb[0].mxu0
  %v1263 = vadd.f32 0.0, %v1262
  %v1264 = vpop.f32.mrb[0].mxu0
  %1265 = vdwg.mxu0
  %v1266 = vadd.f32 %v1088, %v1236
  %v1267 = vadd.f32 %v1089, %v1239
  %v1268 = vadd.f32 %v1090, %v1244
  %v1269 = vadd.f32 %v1091, %v1247
  %v1270 = vadd.f32 %v1092, %v1252
  %v1271 = vadd.f32 %v1093, %v1255
  %v1272 = vadd.f32 %v1094, %v1260
  %v1273 = vadd.f32 %v1095, %v1263
  %s1274 = scalar_lea.vmem %s1, 512
  %v1275 = vld [vmem:[%s1274] sm:$0xf]
  %v1276 = vld [vmem:[%s1274 + $0x4] sm:$0xf]
  %v1277 = vld [vmem:[%s1274 + $0x8] sm:$0xf]
  %v1278 = vld [vmem:[%s1274 + $0xc] sm:$0xf]
  %v1279 = vld [vmem:[%s1274 + $0x10] sm:$0xf]
  %v1280 = vld [vmem:[%s1274 + $0x14] sm:$0xf]
  %v1281 = vld [vmem:[%s1274 + $0x18] sm:$0xf]
  %v1282 = vld [vmem:[%s1274 + $0x1c] sm:$0xf]
  %v1283 = vld [vmem:[%s1274 + $0x20] sm:$0xf]
  %v1284 = vld [vmem:[%s1274 + $0x24] sm:$0xf]
  %v1285 = vld [vmem:[%s1274 + $0x28] sm:$0xf]
  %v1286 = vld [vmem:[%s1274 + $0x2c] sm:$0xf]
  %v1287 = vld [vmem:[%s1274 + $0x30] sm:$0xf]
  %v1288 = vld [vmem:[%s1274 + $0x34] sm:$0xf]
  %v1289 = vld [vmem:[%s1274 + $0x38] sm:$0xf]
  %v1290 = vld [vmem:[%s1274 + $0x3c] sm:$0xf]
  %v1291 = vrot.slane %v800, 3
  %v1292 = vrot.slane %v801, 3
  %v1293 = vsel %vm503, %v1291, %v1292
  %v1294 = vrot.slane %v802, 3
  %v1295 = vsel %vm503, %v1292, %v1294
  %v1296 = vrot.slane %v803, 3
  %v1297 = vsel %vm503, %v1294, %v1296
  %v1318 = vunpack.c.l.b16 %v1275
  %v1319 = vunpack.c.l.b16 %v1276
  %v1320 = vunpack.c.l.b16 %v1277
  %v1321 = vunpack.c.l.b16 %v1278
  %v1322 = vunpack.c.l.b16 %v1279
  %v1323 = vunpack.c.l.b16 %v1280
  %v1324 = vunpack.c.l.b16 %v1281
  %v1325 = vunpack.c.l.b16 %v1282
  %v1326 = vunpack.c.l.b16 %v1283
  %v1327 = vunpack.c.l.b16 %v1284
  %v1328 = vunpack.c.l.b16 %v1285
  %v1329 = vunpack.c.l.b16 %v1286
  %v1330 = vunpack.c.l.b16 %v1287
  %v1331 = vunpack.c.l.b16 %v1288
  %v1332 = vunpack.c.l.b16 %v1289
  %v1333 = vunpack.c.l.b16 %v1290
  %v1334 = vpack.c.b16 %v1319, %v1318
  %v1335 = vpack.c.b16 %v1321, %v1320
  %v1336 = vpack.c.b16 %v1323, %v1322
  %v1337 = vpack.c.b16 %v1325, %v1324
  %v1338 = vpack.c.b16 %v1327, %v1326
  %v1339 = vpack.c.b16 %v1329, %v1328
  %v1340 = vpack.c.b16 %v1331, %v1330
  %v1341 = vpack.c.b16 %v1333, %v1332
  %1350 = vmatprep.subr.bf16.mxu0 0
  %1351 = vmatpush1.bf16.msra.mxu0 %v1334
  %1352 = vmatprep.subr.bf16.mxu0 0
  %1353 = vmatpush1.bf16.msra.mxu0 %v1335
  %1354 = vmatprep.subr.bf16.mxu0 0
  %1355 = vmatpush1.bf16.msra.mxu0 %v1336
  %1356 = vmatprep.subr.bf16.mxu0 0
  %1357 = vmatpush1.bf16.msra.mxu0 %v1337
  %1358 = vmatprep.subr.bf16.mxu0 0
  %1359 = vmatpush1.bf16.msra.mxu0 %v1338
  %1360 = vmatprep.subr.bf16.mxu0 0
  %1361 = vmatpush1.bf16.msra.mxu0 %v1339
  %1362 = vmatprep.subr.bf16.mxu0 0
  %1363 = vmatpush1.bf16.msra.mxu0 %v1340
  %1364 = vmatprep.subr.bf16.mxu0 0
  %1365 = vmatpush1.bf16.msra.mxu0 %v1341
  %1366 = vmatprep.subr.bf16.mxu0 0
  %1367 = vmatpush1.bf16.msra.mxu0 0
  %1368 = vmatprep.subr.bf16.mxu0 0
  %1369 = vmatpush1.bf16.msra.mxu0 0
  %1370 = vmatprep.subr.bf16.mxu0 0
  %1371 = vmatpush1.bf16.msra.mxu0 0
  %1372 = vmatprep.subr.bf16.mxu0 0
  %1373 = vmatpush1.bf16.msra.mxu0 0
  %1374 = vmatprep.subr.bf16.mxu0 0
  %1375 = vmatpush1.bf16.msra.mxu0 0
  %1376 = vmatprep.subr.bf16.mxu0 0
  %1377 = vmatpush1.bf16.msra.mxu0 0
  %1378 = vmatprep.subr.bf16.mxu0 0
  %1379 = vmatpush1.bf16.msra.mxu0 0
  %1380 = vmatprep.subr.bf16.mxu0 0
  %1381 = vmatpush1.bf16.msra.mxu0 0
  %1382 = vmatprep.mubr.bf16.mxu0 0
  %1383 = vmatmul.mubr.bf16.gmra.mrb[0].mxu0 %v1293
  %v1384 = vpop.f32.mrb[0].mxu0
  %v1385 = vadd.f32 0.0, %v1384
  %v1386 = vpop.f32.mrb[0].mxu0
  %v1387 = vpop.f32.mrb[0].mxu0
  %v1388 = vadd.f32 0.0, %v1387
  %v1389 = vpop.f32.mrb[0].mxu0
  %1390 = vmatprep.mubr.bf16.mxu0 0
  %1391 = vmatmul.mubr.bf16.gmra.mrb[0].mxu0 %v1295
  %v1392 = vpop.f32.mrb[0].mxu0
  %v1393 = vadd.f32 0.0, %v1392
  %v1394 = vpop.f32.mrb[0].mxu0
  %v1395 = vpop.f32.mrb[0].mxu0
  %v1396 = vadd.f32 0.0, %v1395
  %v1397 = vpop.f32.mrb[0].mxu0
  %1398 = vmatprep.mubr.bf16.mxu0 0
  %1399 = vmatmul.mubr.bf16.gmra.mrb[0].mxu0 %v1297
  %v1400 = vpop.f32.mrb[0].mxu0
  %v1401 = vadd.f32 0.0, %v1400
  %v1402 = vpop.f32.mrb[0].mxu0
  %v1403 = vpop.f32.mrb[0].mxu0
  %v1404 = vadd.f32 0.0, %v1403
  %v1405 = vpop.f32.mrb[0].mxu0
  %1406 = vmatprep.mubr.bf16.mxu0 0
  %1407 = vmatmul.mubr.bf16.gmra.mrb[0].mxu0 %v1296
  %v1408 = vpop.f32.mrb[0].mxu0
  %v1409 = vadd.f32 0.0, %v1408
  %v1410 = vpop.f32.mrb[0].mxu0
  %v1411 = vpop.f32.mrb[0].mxu0
  %v1412 = vadd.f32 0.0, %v1411
  %v1413 = vpop.f32.mrb[0].mxu0
  %1414 = vdwg.mxu0
  %v1415 = vadd.f32 %v1266, %v1385
  %v1416 = vadd.f32 %v1267, %v1388
  %v1417 = vadd.f32 %v1268, %v1393
  %v1418 = vadd.f32 %v1269, %v1396
  %v1419 = vadd.f32 %v1270, %v1401
  %v1420 = vadd.f32 %v1271, %v1404
  %v1421 = vadd.f32 %v1272, %v1409
  %v1422 = vadd.f32 %v1273, %v1412
  %v1423 = vmax.f32 %v1415, 0.0
  %v1424 = vmax.f32 %v1416, 0.0
  %v1425 = vmax.f32 %v1417, 0.0
  %v1426 = vmax.f32 %v1418, 0.0
  %v1427 = vmax.f32 %v1419, 0.0
  %v1428 = vmax.f32 %v1420, 0.0
  %v1429 = vmax.f32 %v1421, 0.0
  %v1430 = vmax.f32 %v1422, 0.0
  %v1431 = vpack.c.bf16 %v1424, %v1423
  %v1432 = vpack.c.bf16 %v1426, %v1425
  %v1433 = vpack.c.bf16 %v1428, %v1427
  %v1434 = vpack.c.bf16 %v1430, %v1429
  %v1435 = vld [vmem:[%s2] sm:$0xf]
  %v1436 = vld [vmem:[%s2 + $0x4] sm:$0xf]
  %v1437 = vld [vmem:[%s2 + $0x8] sm:$0xf]
  %v1438 = vld [vmem:[%s2 + $0xc] sm:$0xf]
  %v1439 = vld [vmem:[%s2 + $0x10] sm:$0xf]
  %v1440 = vld [vmem:[%s2 + $0x14] sm:$0xf]
  %v1441 = vld [vmem:[%s2 + $0x18] sm:$0xf]
  %v1442 = vld [vmem:[%s2 + $0x1c] sm:$0xf]
  %v1443 = vld [vmem:[%s2 + $0x20] sm:$0xf]
  %v1444 = vld [vmem:[%s2 + $0x24] sm:$0xf]
  %v1445 = vld [vmem:[%s2 + $0x28] sm:$0xf]
  %v1446 = vld [vmem:[%s2 + $0x2c] sm:$0xf]
  %v1447 = vld [vmem:[%s2 + $0x30] sm:$0xf]
  %v1448 = vld [vmem:[%s2 + $0x34] sm:$0xf]
  %v1449 = vld [vmem:[%s2 + $0x38] sm:$0xf]
  %v1450 = vld [vmem:[%s2 + $0x3c] sm:$0xf]
  %v1467 = vunpack.c.l.b16 %v1435
  %v1468 = vunpack.c.l.b16 %v1436
  %v1469 = vunpack.c.l.b16 %v1437
  %v1470 = vunpack.c.l.b16 %v1438
  %v1471 = vunpack.c.l.b16 %v1439
  %v1472 = vunpack.c.l.b16 %v1440
  %v1473 = vunpack.c.l.b16 %v1441
  %v1474 = vunpack.c.l.b16 %v1442
  %v1475 = vunpack.c.l.b16 %v1443
  %v1476 = vunpack.c.l.b16 %v1444
  %v1477 = vunpack.c.l.b16 %v1445
  %v1478 = vunpack.c.l.b16 %v1446
  %v1479 = vunpack.c.l.b16 %v1447
  %v1480 = vunpack.c.l.b16 %v1448
  %v1481 = vunpack.c.l.b16 %v1449
  %v1482 = vunpack.c.l.b16 %v1450
  %v1483 = vpack.c.b16 %v1468, %v1467
  %v1484 = vpack.c.b16 %v1470, %v1469
  %v1485 = vpack.c.b16 %v1472, %v1471
  %v1486 = vpack.c.b16 %v1474, %v1473
  %v1487 = vpack.c.b16 %v1476, %v1475
  %v1488 = vpack.c.b16 %v1478, %v1477
  %v1489 = vpack.c.b16 %v1480, %v1479
  %v1490 = vpack.c.b16 %v1482, %v1481
  %1499 = vmatprep.subr.bf16.mxu0 0
  %1500 = vmatpush1.bf16.msra.mxu0 %v1483
  %1501 = vmatprep.subr.bf16.mxu0 0
  %1502 = vmatpush1.bf16.msra.mxu0 %v1484
  %1503 = vmatprep.subr.bf16.mxu0 0
  %1504 = vmatpush1.bf16.msra.mxu0 %v1485
  %1505 = vmatprep.subr.bf16.mxu0 0
  %1506 = vmatpush1.bf16.msra.mxu0 %v1486
  %1507 = vmatprep.subr.bf16.mxu0 0
  %1508 = vmatpush1.bf16.msra.mxu0 %v1487
  %1509 = vmatprep.subr.bf16.mxu0 0
  %1510 = vmatpush1.bf16.msra.mxu0 %v1488
  %1511 = vmatprep.subr.bf16.mxu0 0
  %1512 = vmatpush1.bf16.msra.mxu0 %v1489
  %1513 = vmatprep.subr.bf16.mxu0 0
  %1514 = vmatpush1.bf16.msra.mxu0 %v1490
  %1515 = vmatprep.subr.bf16.mxu0 0
  %1516 = vmatpush1.bf16.msra.mxu0 0
  %1517 = vmatprep.subr.bf16.mxu0 0
  %1518 = vmatpush1.bf16.msra.mxu0 0
  %1519 = vmatprep.subr.bf16.mxu0 0
  %1520 = vmatpush1.bf16.msra.mxu0 0
  %1521 = vmatprep.subr.bf16.mxu0 0
  %1522 = vmatpush1.bf16.msra.mxu0 0
  %1523 = vmatprep.subr.bf16.mxu0 0
  %1524 = vmatpush1.bf16.msra.mxu0 0
  %1525 = vmatprep.subr.bf16.mxu0 0
  %1526 = vmatpush1.bf16.msra.mxu0 0
  %1527 = vmatprep.subr.bf16.mxu0 0
  %1528 = vmatpush1.bf16.msra.mxu0 0
  %1529 = vmatprep.subr.bf16.mxu0 0
  %1530 = vmatpush1.bf16.msra.mxu0 0
  %1531 = vmatprep.mubr.bf16.mxu0 0
  %1532 = vmatmul.mubr.bf16.gmra.mrb[0].mxu0 %v1431
  %v1533 = vpop.f32.mrb[0].mxu0
  %v1534 = vadd.f32 0.0, %v1533
  %v1535 = vpop.f32.mrb[0].mxu0
  %v1536 = vpop.f32.mrb[0].mxu0
  %v1537 = vadd.f32 0.0, %v1536
  %v1538 = vpop.f32.mrb[0].mxu0
  %1539 = vmatprep.mubr.bf16.mxu0 0
  %1540 = vmatmul.mubr.bf16.gmra.mrb[0].mxu0 %v1432
  %v1541 = vpop.f32.mrb[0].mxu0
  %v1542 = vadd.f32 0.0, %v1541
  %v1543 = vpop.f32.mrb[0].mxu0
  %v1544 = vpop.f32.mrb[0].mxu0
  %v1545 = vadd.f32 0.0, %v1544
  %v1546 = vpop.f32.mrb[0].mxu0
  %1547 = vmatprep.mubr.bf16.mxu0 0
  %1548 = vmatmul.mubr.bf16.gmra.mrb[0].mxu0 %v1433
  %v1549 = vpop.f32.mrb[0].mxu0
  %v1550 = vadd.f32 0.0, %v1549
  %v1551 = vpop.f32.mrb[0].mxu0
  %v1552 = vpop.f32.mrb[0].mxu0
  %v1553 = vadd.f32 0.0, %v1552
  %v1554 = vpop.f32.mrb[0].mxu0
  %1555 = vmatprep.mubr.bf16.mxu0 0
  %1556 = vmatmul.mubr.bf16.gmra.mrb[0].mxu0 %v1434
  %v1557 = vpop.f32.mrb[0].mxu0
  %v1558 = vadd.f32 0.0, %v1557
  %v1559 = vpop.f32.mrb[0].mxu0
  %v1560 = vpop.f32.mrb[0].mxu0
  %v1561 = vadd.f32 0.0, %v1560
  %v1562 = vpop.f32.mrb[0].mxu0
  %1563 = vdwg.mxu0
  %vm1572 = vcmask 1046528
  %v1573 = vrot.slane %v1534, 1
  %v1574 = vrot.slane %v1537, 1
  %v1575 = vsel %vm1572, %v1573, %v1574
  %v1576 = vrot.slane %v1542, 1
  %v1577 = vsel %vm1572, %v1574, %v1576
  %v1578 = vrot.slane %v1545, 1
  %v1579 = vsel %vm1572, %v1576, %v1578
  %v1580 = vrot.slane %v1550, 1
  %v1581 = vsel %vm1572, %v1578, %v1580
  %v1582 = vrot.slane %v1553, 1
  %v1583 = vsel %vm1572, %v1580, %v1582
  %v1584 = vrot.slane %v1558, 1
  %v1585 = vsel %vm1572, %v1582, %v1584
  %v1586 = vrot.slane %v1561, 1
  %v1587 = vsel %vm1572, %v1584, %v1586
  %v1597 = vadd.f32 %v15, %v1573
  %v1598 = vadd.f32 %v16, %v1575
  %v1599 = vadd.f32 %v17, %v1577
  %v1600 = vadd.f32 %v18, %v1579
  %v1601 = vadd.f32 %v19, %v1581
  %v1602 = vadd.f32 %v20, %v1583
  %v1603 = vadd.f32 %v21, %v1585
  %v1604 = vadd.f32 %v22, %v1587
  %v1605 = vadd.f32 %v23, %v1586
  %1606 = vst [vmem:[%s3 - $0x7] sm:$0x80] %v1597
  %1607 = vst [vmem:[%s3 + $0x1] sm:$0xff] %v1598
  %1608 = vst [vmem:[%s3 + $0x9] sm:$0xff] %v1599
  %1609 = vst [vmem:[%s3 + $0x11] sm:$0xff] %v1600
  %1610 = vst [vmem:[%s3 + $0x19] sm:$0xff] %v1601
  %1611 = vst [vmem:[%s3 + $0x21] sm:$0xff] %v1602
  %1612 = vst [vmem:[%s3 + $0x29] sm:$0xff] %v1603
  %1613 = vst [vmem:[%s3 + $0x31] sm:$0xff] %v1604
  %1614 = vst [vmem:[%s3 + $0x39] sm:$0x1] %v1605
  // Predicated region
  $region14: #{encoder_forward.6} parent=0 // pred_check
    _
  $region15: #{encoder_forward.6} parent=0 // pred_check_branch
    %1616 = sbr.rel (0) target = $region17
  $region16: #{encoder_forward.6} parent=0 // pred_region
    _
  $region17: #{encoder_forward.6} parent=0 // pred_fallthru
    _
  // Predicated region
  $region18: #{encoder_forward.6} parent=0 // pred_check
    _
  $region19: #{encoder_forward.6} parent=0 // pred_check_branch
    %1618 = sbr.rel (0) target = $region21
  $region20: #{encoder_forward.6} parent=0 // pred_region
    _
  $region21: #{encoder_forward.6} parent=0 // pred_fallthru
    _

</llo_original>
